<compile_context>
chip_gen: v7x
topology: tpu7x:2x2x1
jax: 0.10.0
libtpu: 0.0.40
codegen_flags: <defaults>
</compile_context>

<pallas_src>
import functools

import jax
import jax.numpy as jnp
from jax.experimental import pallas as pl
from jax.experimental.pallas import tpu as pltpu


def _round_up(x, m):
    return ((x + m - 1) // m) * m


# ------------------------------------------------------------------ conv kernel
def _conv_bn_relu_pool_kernel(xp_ref, w_ref, g_ref, beta_ref, o_ref,
                              patch_ref, *pool_scratch, H, W, eps, pool):
    """Fused 3x3 conv (pad=1, no bias) + BatchNorm2d(train stats) + ReLU
    [+ MaxPool2d(2,2)].

    xp_ref    : (N, H+2, W+2, Cin)  spatially pre-padded NHWC input, bf16
    w_ref     : (Kp, Cout)          weight rows ((kh*3+kw)*Cin + c), bf16,
                                    K zero-padded to a multiple of 128
    g/beta_ref: (1, Cout)           BatchNorm gamma / beta, f32
    o_ref     : (N*Ho*Wo, Cout)     pooled (or unpooled) NHWC rows, bf16
    patch_ref : (N*H*W, Kp)         VMEM scratch for the im2col patch, bf16
    pool_scratch[0] (if pool): (N*(H//2)*W, Cout) f32 scratch for W-pooling
    """
    N = xp_ref.shape[0]
    Cin = xp_ref.shape[3]
    Cout = o_ref.shape[1]
    M = N * H * W

    # ---- in-kernel im2col: ONE (M, Kp) bf16 patch, taps packed along K ----
    patch_ref[...] = jnp.zeros_like(patch_ref)          # zero the K padding tail
    xp = xp_ref[...]                                     # whole padded slab in VMEM
    for kh in range(3):                                  # unrolled at trace time
        for kw in range(3):
            t = kh * 3 + kw
            # W is a multiple of 8 -> this collapse reshape is layout-preserving.
            patch_ref[:, t * Cin:(t + 1) * Cin] = (
                xp[:, kh:kh + H, kw:kw + W, :].reshape(M, Cin))

    # ---- single MXU matmul, f32 accumulation in the MXU result path ----
    acc = jnp.dot(patch_ref[...], w_ref[...], preferred_element_type=jnp.float32)

    # ---- BatchNorm2d training batch stats (one sum / sum-of-squares pass).
    # Conv bias is dropped: mean subtraction cancels it exactly.
    # E[x^2]-mean^2 is slightly less stable than two-pass, fine in f32 here.
    inv_m = 1.0 / M
    mean = jnp.sum(acc, axis=0, keepdims=True) * inv_m
    mean_sq = jnp.sum(acc * acc, axis=0, keepdims=True) * inv_m
    var = mean_sq - mean * mean                          # biased variance
    scale = jax.lax.rsqrt(var + eps) * g_ref[...]        # EUP rsqrt
    y = jnp.maximum((acc - mean) * scale + beta_ref[...], 0.0)   # BN + ReLU

    if pool:
        # ---- fused MaxPool2d(2,2) ----
        H2, W2 = H // 2, W // 2
        yh_ref = pool_scratch[0]
        # pool along H: split the leading (row-group) dim, static middle index.
        v = y.reshape(N, H2, 2, W, Cout)
        vh = jnp.maximum(v[:, :, 0], v[:, :, 1])         # (N, H2, W, Cout)
        yh_ref[...] = vh.reshape(N * H2 * W, Cout)
        # pool along W: rows alternate even/odd w -> sublane-strided reads.
        half = N * H2 * W2
        w_even = yh_ref[pl.ds(0, half, stride=2), :]
        w_odd = yh_ref[pl.ds(1, half, stride=2), :]
        o_ref[...] = jnp.maximum(w_even, w_odd).astype(o_ref.dtype)
    else:
        o_ref[...] = y.astype(o_ref.dtype)


def pallas_conv_bn_relu_pool(xp, w, g, beta, *, H, W, eps=1e-5, pool=True):
    """xp: (N, H+2, W+2, Cin) bf16.  w: (Kp, Cout) bf16.  g/beta: (1, Cout) f32.
    Returns (N*Ho*Wo, Cout) bf16 rows in NHWC order (Ho/Wo halved if pool)."""
    N, HP, WP, Cin = xp.shape
    Kp, Cout = w.shape
    assert HP == H + 2 and WP == W + 2
    assert W % 8 == 0, "in-kernel reshapes assume W is a multiple of 8"
    if pool:
        assert H % 2 == 0 and W % 2 == 0, "fused maxpool needs even H and W"
    M = N * H * W
    Ho, Wo = (H // 2, W // 2) if pool else (H, W)
    Mout = N * Ho * Wo

    scratch = [pltpu.VMEM((M, Kp), jnp.bfloat16)]
    if pool:
        scratch.append(pltpu.VMEM((N * Ho * W, Cout), jnp.float32))

    flops = 2 * M * Kp * Cout + 12 * M * Cout
    bytes_accessed = xp.size * 2 + w.size * 2 + Mout * Cout * 2
    return pl.pallas_call(
        functools.partial(_conv_bn_relu_pool_kernel, H=H, W=W, eps=eps, pool=pool),
        out_shape=jax.ShapeDtypeStruct((Mout, Cout), jnp.bfloat16),
        grid=(1,),   # BN batch stats need the whole (M, Cout) map resident
        in_specs=[
            pl.BlockSpec((N, HP, WP, Cin), lambda i: (0, 0, 0, 0)),
            pl.BlockSpec((Kp, Cout), lambda i: (0, 0)),
            pl.BlockSpec((1, Cout), lambda i: (0, 0)),
            pl.BlockSpec((1, Cout), lambda i: (0, 0)),
        ],
        out_specs=pl.BlockSpec((Mout, Cout), lambda i: (0, 0)),
        scratch_shapes=scratch,
        compiler_params=pltpu.CompilerParams(
            dimension_semantics=("arbitrary",),
            vmem_limit_bytes=32 * 1024 * 1024),
        cost_estimate=pl.CostEstimate(flops=flops, transcendentals=Cout,
                                      bytes_accessed=bytes_accessed),
    )(xp, w, g, beta)


# ------------------------------------------------------------------ FC kernel
def _fc_stack_kernel(*refs):
    """refs = (x, w1, b1, w2, b2, ..., o).  h = relu(h @ w + b) per layer.
    The reference nn.Sequential places ReLU after EVERY Linear (incl. last)."""
    x_ref, o_ref = refs[0], refs[-1]
    wb = refs[1:-1]
    h = x_ref[...]
    for i in range(len(wb) // 2):
        w = wb[2 * i][...]                               # (K, O) bf16
        b = wb[2 * i + 1][...]                           # (1, O) f32
        h = jnp.dot(h.astype(jnp.bfloat16), w,
                    preferred_element_type=jnp.float32) + b
        h = jnp.maximum(h, 0.0)
    o_ref[...] = h


def pallas_fc_stack(x, fc_params):
    """x: (N, K0) bf16.  fc_params: [(w (K,O) bf16, b (1,O) f32), ...].
    Whole FC stack fused in one pallas_call (all weights VMEM resident)."""
    N = x.shape[0]
    Nout = fc_params[-1][0].shape[1]
    operands = [x]
    in_specs = [pl.BlockSpec(x.shape, lambda i: (0, 0))]
    flops, byts = 0, x.size * 2 + N * Nout * 4
    for (w, b) in fc_params:
        operands += [w, b]
        in_specs += [pl.BlockSpec(w.shape, lambda i: (0, 0)),
                     pl.BlockSpec(b.shape, lambda i: (0, 0))]
        flops += 2 * N * w.shape[0] * w.shape[1]
        byts += w.size * 2 + b.size * 4
    return pl.pallas_call(
        _fc_stack_kernel,
        out_shape=jax.ShapeDtypeStruct((N, Nout), jnp.float32),
        grid=(1,),   # TODO(synk): M-tile with a "parallel" axis for large batch
        in_specs=in_specs,
        out_specs=pl.BlockSpec((N, Nout), lambda i: (0, 0)),
        compiler_params=pltpu.CompilerParams(
            dimension_semantics=("arbitrary",),
            vmem_limit_bytes=32 * 1024 * 1024),
        cost_estimate=pl.CostEstimate(flops=flops, transcendentals=0,
                                      bytes_accessed=byts),
    )(*operands)


# ------------------------------------------------------------------ params
def init_params(key, input_channels, conv_layers_config, fc_layers,
                input_size, use_maxpool):
    """Raw parameters in torch layouts (Conv2d OIHW, Linear (out, in))."""
    params = {"conv": [], "fc": []}
    in_ch = input_channels
    H, W = input_size
    for cfg in conv_layers_config:
        oc = cfg["out_channels"]
        key, k1, k2 = jax.random.split(key, 3)
        w = jax.random.normal(k1, (oc, in_ch, 3, 3), jnp.float32) * 0.1
        b = jax.random.normal(k2, (oc,), jnp.float32) * 0.01
        gamma = jnp.ones((oc,), jnp.float32)             # BatchNorm2d defaults
        beta = jnp.zeros((oc,), jnp.float32)
        params["conv"].append((w, b, gamma, beta))
        in_ch = oc
        if use_maxpool:
            H //= 2
            W //= 2
    in_features = in_ch * H * W
    for out_f in fc_layers:
        key, k1, k2 = jax.random.split(key, 3)
        w = jax.random.normal(k1, (out_f, in_features), jnp.float32) * 0.1
        b = jax.random.normal(k2, (out_f,), jnp.float32) * 0.01
        params["fc"].append((w, b))
        in_features = out_f
    return params


def prepare_params(raw, input_channels, input_size, use_maxpool):
    """One-time layout prep (all per-forward transposes / repacks hoisted here).

    - conv weight OIHW -> (Kp, Cout) bf16 with rows ((kh*3+kw)*Cin + c), K
      (=9*Cin, real channels only) zero-padded to a 128 multiple
    - conv bias dropped (cancels exactly under train-mode BatchNorm)
    - gamma/beta -> (1, Cout) f32, REAL (unpadded) channel count
    - FC1 weight rows fold torch.flatten's NCHW order, K = H*W*C_real
    - all FC weights -> (in, out) bf16, unpadded real dims
    """
    prepared = {"conv": [], "fc": []}
    H, W = input_size
    last_c = input_channels
    for (w, _b, g, beta) in raw["conv"]:
        O, I, KH, KW = w.shape
        K = KH * KW * I
        Kp = _round_up(K, 128)
        wk = jnp.transpose(w, (2, 3, 1, 0)).reshape(K, O)     # row = (kh*3+kw)*I + c
        wk = jnp.pad(wk, ((0, Kp - K), (0, 0))).astype(jnp.bfloat16)
        prepared["conv"].append((wk, g.reshape(1, O), beta.reshape(1, O)))
        last_c = O
        if use_maxpool:
            H //= 2
            W //= 2

    first = True
    for (w, b) in raw["fc"]:
        O, I = w.shape
        if first:
            # Fold torch.flatten(NCHW) order into FC1 rows; K = H*W*C_real.
            wm = w.reshape(O, last_c, H, W)
            wm = jnp.transpose(wm, (2, 3, 1, 0)).reshape(H * W * last_c, O)
            first = False
        else:
            wm = w.T
        prepared["fc"].append((wm.astype(jnp.bfloat16),
                               b.reshape(1, O).astype(jnp.float32)))
    return prepared


# ------------------------------------------------------------------ forward
def cnn_forward(params, x_nchw, *, use_maxpool=True):
    # NCHW -> NHWC once; bf16 once (all kernels consume/produce bf16 activations).
    x = jnp.transpose(x_nchw, (0, 2, 3, 1)).astype(jnp.bfloat16)
    for (wk, g, beta) in params["conv"]:
        N, H, W, _ = x.shape
        xp = jnp.pad(x, ((0, 0), (1, 1), (1, 1), (0, 0)))     # conv padding=1 (XLA glue)
        y = pallas_conv_bn_relu_pool(xp, wk, g, beta, H=H, W=W, pool=use_maxpool)
        Ho, Wo = (H // 2, W // 2) if use_maxpool else (H, W)
        x = y.reshape(N, Ho, Wo, wk.shape[1])
    # NHWC flatten; the NCHW flatten permutation lives in the FC1 weight rows.
    x = x.reshape(x.shape[0], -1)
    return pallas_fc_stack(x, params["fc"])


if __name__ == "__main__":
    key = jax.random.PRNGKey(0)
    k_params, k_x = jax.random.split(key)

    input_channels = 4
    input_size = (16, 16)
    conv_layers_config = [{"out_channels": 8, "kernel_size": 3},
                          {"out_channels": 16, "kernel_size": 3}]
    fc_layers = [32, 10]
    use_maxpool = True
    batch = 2

    raw = init_params(k_params, input_channels, conv_layers_config,
                      fc_layers, input_size, use_maxpool)
    params = prepare_params(raw, input_channels, input_size, use_maxpool)
    x = jax.random.normal(k_x, (batch, input_channels, *input_size), jnp.float32)

    fwd = jax.jit(functools.partial(cnn_forward, use_maxpool=use_maxpool))
    out = fwd(params, x)
    jax.block_until_ready(out)

    assert out.shape == (batch, fc_layers[-1]), out.shape
    assert out.dtype == jnp.float32
    print("KERNEL_OK")
</pallas_src>

<mosaic_0001>
module attributes {stable_mosaic.version = 11 : i64} {
  func.func @_conv_bn_relu_pool_kernel(%arg0: i32, %arg1: memref<2x18x18x4xbf16, #tpu.memory_space<vmem>>, %arg2: memref<128x8xbf16, #tpu.memory_space<vmem>>, %arg3: memref<1x8xf32, #tpu.memory_space<vmem>>, %arg4: memref<1x8xf32, #tpu.memory_space<vmem>>, %arg5: memref<128x8xbf16, #tpu.memory_space<vmem>>, %arg6: memref<512x128xbf16, #tpu.memory_space<vmem>>, %arg7: memref<256x8xf32, #tpu.memory_space<vmem>>) attributes {dimension_semantics = [#tpu.dimension_semantics<arbitrary>], iteration_bounds = array<i64: 1>, scalar_prefetch = 0 : i64, scratch_operands = 2 : i64, tpu.core_type = #tpu.core_type<tc>, window_params = [{pipeline_mode = #tpu.pipeline_mode<synchronous>, transform_indices = @transform_0, window_bounds = array<i64: 2, 18, 18, 4>}, {pipeline_mode = #tpu.pipeline_mode<synchronous>, transform_indices = @transform_1, window_bounds = array<i64: 128, 8>}, {pipeline_mode = #tpu.pipeline_mode<synchronous>, transform_indices = @transform_2, window_bounds = array<i64: 1, 8>}, {pipeline_mode = #tpu.pipeline_mode<synchronous>, transform_indices = @transform_3, window_bounds = array<i64: 1, 8>}, {pipeline_mode = #tpu.pipeline_mode<synchronous>, transform_indices = @transform_4, window_bounds = array<i64: 128, 8>}]} {
    %cst = arith.constant 0.000000e+00 : bf16
    %0 = vector.broadcast %cst : bf16 to vector<512x128xbf16>
    %c0 = arith.constant 0 : index
    %c0_0 = arith.constant 0 : index
    %1 = vector.load %arg6[%c0, %c0_0] : memref<512x128xbf16, #tpu.memory_space<vmem>>, vector<512x128xbf16>
    tpu.vector_store %arg6[%c0, %c0_0], %0 {strides = array<i32>} : memref<512x128xbf16, #tpu.memory_space<vmem>>, vector<512x128xbf16>,
    %c0_1 = arith.constant 0 : index
    %c0_2 = arith.constant 0 : index
    %c0_3 = arith.constant 0 : index
    %c0_4 = arith.constant 0 : index
    %2 = vector.load %arg1[%c0_1, %c0_2, %c0_3, %c0_4] : memref<2x18x18x4xbf16, #tpu.memory_space<vmem>>, vector<2x18x18x4xbf16>
    %3 = vector.extract_strided_slice %2 {offsets = [0, 0, 0, 0], sizes = [2, 16, 16, 4], strides = [1, 1, 1, 1]} : vector<2x18x18x4xbf16> to vector<2x16x16x4xbf16>
    %4 = vector.shape_cast %3 : vector<2x16x16x4xbf16> to vector<512x4xbf16>
    %c0_5 = arith.constant 0 : index
    %c0_6 = arith.constant 0 : index
    %5 = vector.load %arg6[%c0_5, %c0_6] : memref<512x128xbf16, #tpu.memory_space<vmem>>, vector<512x4xbf16>
    tpu.vector_store %arg6[%c0_5, %c0_6], %4 {strides = array<i32>} : memref<512x128xbf16, #tpu.memory_space<vmem>>, vector<512x4xbf16>,
    %6 = vector.extract_strided_slice %2 {offsets = [0, 0, 1, 0], sizes = [2, 16, 16, 4], strides = [1, 1, 1, 1]} : vector<2x18x18x4xbf16> to vector<2x16x16x4xbf16>
    %7 = vector.shape_cast %6 : vector<2x16x16x4xbf16> to vector<512x4xbf16>
    %c0_7 = arith.constant 0 : index
    %c4 = arith.constant 4 : index
    %8 = vector.load %arg6[%c0_7, %c4] : memref<512x128xbf16, #tpu.memory_space<vmem>>, vector<512x4xbf16>
    tpu.vector_store %arg6[%c0_7, %c4], %7 {strides = array<i32>} : memref<512x128xbf16, #tpu.memory_space<vmem>>, vector<512x4xbf16>,
    %9 = vector.extract_strided_slice %2 {offsets = [0, 0, 2, 0], sizes = [2, 16, 16, 4], strides = [1, 1, 1, 1]} : vector<2x18x18x4xbf16> to vector<2x16x16x4xbf16>
    %10 = vector.shape_cast %9 : vector<2x16x16x4xbf16> to vector<512x4xbf16>
    %c0_8 = arith.constant 0 : index
    %c8 = arith.constant 8 : index
    %11 = vector.load %arg6[%c0_8, %c8] : memref<512x128xbf16, #tpu.memory_space<vmem>>, vector<512x4xbf16>
    tpu.vector_store %arg6[%c0_8, %c8], %10 {strides = array<i32>} : memref<512x128xbf16, #tpu.memory_space<vmem>>, vector<512x4xbf16>,
    %12 = vector.extract_strided_slice %2 {offsets = [0, 1, 0, 0], sizes = [2, 16, 16, 4], strides = [1, 1, 1, 1]} : vector<2x18x18x4xbf16> to vector<2x16x16x4xbf16>
    %13 = vector.shape_cast %12 : vector<2x16x16x4xbf16> to vector<512x4xbf16>
    %c0_9 = arith.constant 0 : index
    %c12 = arith.constant 12 : index
    %14 = vector.load %arg6[%c0_9, %c12] : memref<512x128xbf16, #tpu.memory_space<vmem>>, vector<512x4xbf16>
    tpu.vector_store %arg6[%c0_9, %c12], %13 {strides = array<i32>} : memref<512x128xbf16, #tpu.memory_space<vmem>>, vector<512x4xbf16>,
    %15 = vector.extract_strided_slice %2 {offsets = [0, 1, 1, 0], sizes = [2, 16, 16, 4], strides = [1, 1, 1, 1]} : vector<2x18x18x4xbf16> to vector<2x16x16x4xbf16>
    %16 = vector.shape_cast %15 : vector<2x16x16x4xbf16> to vector<512x4xbf16>
    %c0_10 = arith.constant 0 : index
    %c16 = arith.constant 16 : index
    %17 = vector.load %arg6[%c0_10, %c16] : memref<512x128xbf16, #tpu.memory_space<vmem>>, vector<512x4xbf16>
    tpu.vector_store %arg6[%c0_10, %c16], %16 {strides = array<i32>} : memref<512x128xbf16, #tpu.memory_space<vmem>>, vector<512x4xbf16>,
    %18 = vector.extract_strided_slice %2 {offsets = [0, 1, 2, 0], sizes = [2, 16, 16, 4], strides = [1, 1, 1, 1]} : vector<2x18x18x4xbf16> to vector<2x16x16x4xbf16>
    %19 = vector.shape_cast %18 : vector<2x16x16x4xbf16> to vector<512x4xbf16>
    %c0_11 = arith.constant 0 : index
    %c20 = arith.constant 20 : index
    %20 = vector.load %arg6[%c0_11, %c20] : memref<512x128xbf16, #tpu.memory_space<vmem>>, vector<512x4xbf16>
    tpu.vector_store %arg6[%c0_11, %c20], %19 {strides = array<i32>} : memref<512x128xbf16, #tpu.memory_space<vmem>>, vector<512x4xbf16>,
    %21 = vector.extract_strided_slice %2 {offsets = [0, 2, 0, 0], sizes = [2, 16, 16, 4], strides = [1, 1, 1, 1]} : vector<2x18x18x4xbf16> to vector<2x16x16x4xbf16>
    %22 = vector.shape_cast %21 : vector<2x16x16x4xbf16> to vector<512x4xbf16>
    %c0_12 = arith.constant 0 : index
    %c24 = arith.constant 24 : index
    %23 = vector.load %arg6[%c0_12, %c24] : memref<512x128xbf16, #tpu.memory_space<vmem>>, vector<512x4xbf16>
    tpu.vector_store %arg6[%c0_12, %c24], %22 {strides = array<i32>} : memref<512x128xbf16, #tpu.memory_space<vmem>>, vector<512x4xbf16>,
    %24 = vector.extract_strided_slice %2 {offsets = [0, 2, 1, 0], sizes = [2, 16, 16, 4], strides = [1, 1, 1, 1]} : vector<2x18x18x4xbf16> to vector<2x16x16x4xbf16>
    %25 = vector.shape_cast %24 : vector<2x16x16x4xbf16> to vector<512x4xbf16>
    %c0_13 = arith.constant 0 : index
    %c28 = arith.constant 28 : index
    %26 = vector.load %arg6[%c0_13, %c28] : memref<512x128xbf16, #tpu.memory_space<vmem>>, vector<512x4xbf16>
    tpu.vector_store %arg6[%c0_13, %c28], %25 {strides = array<i32>} : memref<512x128xbf16, #tpu.memory_space<vmem>>, vector<512x4xbf16>,
    %27 = vector.extract_strided_slice %2 {offsets = [0, 2, 2, 0], sizes = [2, 16, 16, 4], strides = [1, 1, 1, 1]} : vector<2x18x18x4xbf16> to vector<2x16x16x4xbf16>
    %28 = vector.shape_cast %27 : vector<2x16x16x4xbf16> to vector<512x4xbf16>
    %c0_14 = arith.constant 0 : index
    %c32 = arith.constant 32 : index
    %29 = vector.load %arg6[%c0_14, %c32] : memref<512x128xbf16, #tpu.memory_space<vmem>>, vector<512x4xbf16>
    tpu.vector_store %arg6[%c0_14, %c32], %28 {strides = array<i32>} : memref<512x128xbf16, #tpu.memory_space<vmem>>, vector<512x4xbf16>,
    %c0_15 = arith.constant 0 : index
    %c0_16 = arith.constant 0 : index
    %30 = vector.load %arg6[%c0_15, %c0_16] : memref<512x128xbf16, #tpu.memory_space<vmem>>, vector<512x128xbf16>
    %c0_17 = arith.constant 0 : index
    %c0_18 = arith.constant 0 : index
    %31 = vector.load %arg2[%c0_17, %c0_18] : memref<128x8xbf16, #tpu.memory_space<vmem>>, vector<128x8xbf16>
    %cst_19 = arith.constant dense<0.000000e+00> : vector<512x8xf32>
    %32 = tpu.matmul %30, %31, %cst_19 {dimension_numbers = #tpu.dot_dimension_numbers<[1], [0], [0], [1], [0, 0, 1, 1], [], []>} : vector<512x128xbf16>, vector<128x8xbf16>, vector<512x8xf32> -> vector<512x8xf32>
    %cst_20 = arith.constant dense<0.000000e+00> : vector<8xf32>
    %33 = vector.multi_reduction <add>, %32, %cst_20 [0] : vector<512x8xf32> to vector<8xf32>
    %34 = vector.shape_cast %33 : vector<8xf32> to vector<1x8xf32>
    %cst_21 = arith.constant 0.001953125 : f32
    %35 = vector.broadcast %cst_21 : f32 to vector<1x8xf32>
    %36 = arith.mulf %34, %35 : vector<1x8xf32>
    %37 = arith.mulf %32, %32 : vector<512x8xf32>
    %cst_22 = arith.constant dense<0.000000e+00> : vector<8xf32>
    %38 = vector.multi_reduction <add>, %37, %cst_22 [0] : vector<512x8xf32> to vector<8xf32>
    %39 = vector.shape_cast %38 : vector<8xf32> to vector<1x8xf32>
    %cst_23 = arith.constant 0.001953125 : f32
    %40 = vector.broadcast %cst_23 : f32 to vector<1x8xf32>
    %41 = arith.mulf %39, %40 : vector<1x8xf32>
    %42 = arith.mulf %36, %36 : vector<1x8xf32>
    %43 = arith.subf %41, %42 : vector<1x8xf32>
    %cst_24 = arith.constant 9.99999974E-6 : f32
    %44 = vector.broadcast %cst_24 : f32 to vector<1x8xf32>
    %45 = arith.addf %43, %44 : vector<1x8xf32>
    %46 = math.rsqrt %45 : vector<1x8xf32>
    %c0_25 = arith.constant 0 : index
    %c0_26 = arith.constant 0 : index
    %47 = vector.load %arg3[%c0_25, %c0_26] : memref<1x8xf32, #tpu.memory_space<vmem>>, vector<1x8xf32>
    %48 = arith.mulf %46, %47 : vector<1x8xf32>
    %49 = vector.broadcast %36 : vector<1x8xf32> to vector<512x8xf32>
    %50 = arith.subf %32, %49 : vector<512x8xf32>
    %51 = vector.broadcast %48 : vector<1x8xf32> to vector<512x8xf32>
    %52 = arith.mulf %50, %51 : vector<512x8xf32>
    %c0_27 = arith.constant 0 : index
    %c0_28 = arith.constant 0 : index
    %53 = vector.load %arg4[%c0_27, %c0_28] : memref<1x8xf32, #tpu.memory_space<vmem>>, vector<1x8xf32>
    %54 = vector.broadcast %53 : vector<1x8xf32> to vector<512x8xf32>
    %55 = arith.addf %52, %54 : vector<512x8xf32>
    %cst_29 = arith.constant 0.000000e+00 : f32
    %56 = vector.broadcast %cst_29 : f32 to vector<512x8xf32>
    %57 = arith.maximumf %55, %56 : vector<512x8xf32>
    %58 = vector.shape_cast %57 : vector<512x8xf32> to vector<2x8x2x16x8xf32>
    %59 = vector.extract_strided_slice %58 {offsets = [0, 0, 0, 0, 0], sizes = [2, 8, 1, 16, 8], strides = [1, 1, 1, 1, 1]} : vector<2x8x2x16x8xf32> to vector<2x8x1x16x8xf32>
    %60 = vector.shape_cast %59 : vector<2x8x1x16x8xf32> to vector<2x8x16x8xf32>
    %61 = vector.extract_strided_slice %58 {offsets = [0, 0, 1, 0, 0], sizes = [2, 8, 1, 16, 8], strides = [1, 1, 1, 1, 1]} : vector<2x8x2x16x8xf32> to vector<2x8x1x16x8xf32>
    %62 = vector.shape_cast %61 : vector<2x8x1x16x8xf32> to vector<2x8x16x8xf32>
    %63 = arith.maximumf %60, %62 : vector<2x8x16x8xf32>
    %64 = vector.shape_cast %63 : vector<2x8x16x8xf32> to vector<256x8xf32>
    %c0_30 = arith.constant 0 : index
    %c0_31 = arith.constant 0 : index
    %65 = vector.load %arg7[%c0_30, %c0_31] : memref<256x8xf32, #tpu.memory_space<vmem>>, vector<256x8xf32>
    tpu.vector_store %arg7[%c0_30, %c0_31], %64 {strides = array<i32>} : memref<256x8xf32, #tpu.memory_space<vmem>>, vector<256x8xf32>,
    %c0_32 = arith.constant 0 : index
    %c0_33 = arith.constant 0 : index
    %66 = tpu.strided_load %arg7[%c0_32, %c0_33] {strides = array<i32: 2, 1>} : memref<256x8xf32, #tpu.memory_space<vmem>>, vector<128x8xf32>
    %c1 = arith.constant 1 : index
    %c0_34 = arith.constant 0 : index
    %67 = tpu.strided_load %arg7[%c1, %c0_34] {strides = array<i32: 2, 1>} : memref<256x8xf32, #tpu.memory_space<vmem>>, vector<128x8xf32>
    %68 = arith.maximumf %66, %67 : vector<128x8xf32>
    %69 = arith.truncf %68 : vector<128x8xf32> to vector<128x8xbf16>
    %c0_35 = arith.constant 0 : index
    %c0_36 = arith.constant 0 : index
    %70 = vector.load %arg5[%c0_35, %c0_36] : memref<128x8xbf16, #tpu.memory_space<vmem>>, vector<128x8xbf16>
    tpu.vector_store %arg5[%c0_35, %c0_36], %69 {strides = array<i32>} : memref<128x8xbf16, #tpu.memory_space<vmem>>, vector<128x8xbf16>,
    return
  }
  func.func @transform_0(%arg0: i32) -> (i32, i32, i32, i32) {
    %c0_i32 = arith.constant 0 : i32
    %c0_i32_0 = arith.constant 0 : i32
    %c0_i32_1 = arith.constant 0 : i32
    %c0_i32_2 = arith.constant 0 : i32
    %c0_i32_3 = arith.constant 0 : i32
    return %c0_i32, %c0_i32_0, %c0_i32_1, %c0_i32_2 : i32, i32, i32, i32
  }
  func.func @transform_1(%arg0: i32) -> (i32, i32) {
    %c0_i32 = arith.constant 0 : i32
    %c0_i32_0 = arith.constant 0 : i32
    %c0_i32_1 = arith.constant 0 : i32
    return %c0_i32, %c0_i32_0 : i32, i32
  }
  func.func @transform_2(%arg0: i32) -> (i32, i32) {
    %c0_i32 = arith.constant 0 : i32
    %c0_i32_0 = arith.constant 0 : i32
    %c0_i32_1 = arith.constant 0 : i32
    return %c0_i32, %c0_i32_0 : i32, i32
  }
  func.func @transform_3(%arg0: i32) -> (i32, i32) {
    %c0_i32 = arith.constant 0 : i32
    %c0_i32_0 = arith.constant 0 : i32
    %c0_i32_1 = arith.constant 0 : i32
    return %c0_i32, %c0_i32_0 : i32, i32
  }
  func.func @transform_4(%arg0: i32) -> (i32, i32) {
    %c0_i32 = arith.constant 0 : i32
    %c0_i32_0 = arith.constant 0 : i32
    %c0_i32_1 = arith.constant 0 : i32
    return %c0_i32, %c0_i32_0 : i32, i32
  }
}

module attributes {stable_mosaic.version = 11 : i64} {
  func.func @_conv_bn_relu_pool_kernel(%arg0: i32, %arg1: memref<2x10x10x8xbf16, #tpu.memory_space<vmem>>, %arg2: memref<128x16xbf16, #tpu.memory_space<vmem>>, %arg3: memref<1x16xf32, #tpu.memory_space<vmem>>, %arg4: memref<1x16xf32, #tpu.memory_space<vmem>>, %arg5: memref<32x16xbf16, #tpu.memory_space<vmem>>, %arg6: memref<128x128xbf16, #tpu.memory_space<vmem>>, %arg7: memref<64x16xf32, #tpu.memory_space<vmem>>) attributes {dimension_semantics = [#tpu.dimension_semantics<arbitrary>], iteration_bounds = array<i64: 1>, scalar_prefetch = 0 : i64, scratch_operands = 2 : i64, tpu.core_type = #tpu.core_type<tc>, window_params = [{pipeline_mode = #tpu.pipeline_mode<synchronous>, transform_indices = @transform_0, window_bounds = array<i64: 2, 10, 10, 8>}, {pipeline_mode = #tpu.pipeline_mode<synchronous>, transform_indices = @transform_1, window_bounds = array<i64: 128, 16>}, {pipeline_mode = #tpu.pipeline_mode<synchronous>, transform_indices = @transform_2, window_bounds = array<i64: 1, 16>}, {pipeline_mode = #tpu.pipeline_mode<synchronous>, transform_indices = @transform_3, window_bounds = array<i64: 1, 16>}, {pipeline_mode = #tpu.pipeline_mode<synchronous>, transform_indices = @transform_4, window_bounds = array<i64: 32, 16>}]} {
    %cst = arith.constant 0.000000e+00 : bf16
    %0 = vector.broadcast %cst : bf16 to vector<128x128xbf16>
    %c0 = arith.constant 0 : index
    %c0_0 = arith.constant 0 : index
    %1 = vector.load %arg6[%c0, %c0_0] : memref<128x128xbf16, #tpu.memory_space<vmem>>, vector<128x128xbf16>
    tpu.vector_store %arg6[%c0, %c0_0], %0 {strides = array<i32>} : memref<128x128xbf16, #tpu.memory_space<vmem>>, vector<128x128xbf16>,
    %c0_1 = arith.constant 0 : index
    %c0_2 = arith.constant 0 : index
    %c0_3 = arith.constant 0 : index
    %c0_4 = arith.constant 0 : index
    %2 = vector.load %arg1[%c0_1, %c0_2, %c0_3, %c0_4] : memref<2x10x10x8xbf16, #tpu.memory_space<vmem>>, vector<2x10x10x8xbf16>
    %3 = vector.extract_strided_slice %2 {offsets = [0, 0, 0, 0], sizes = [2, 8, 8, 8], strides = [1, 1, 1, 1]} : vector<2x10x10x8xbf16> to vector<2x8x8x8xbf16>
    %4 = vector.shape_cast %3 : vector<2x8x8x8xbf16> to vector<128x8xbf16>
    %c0_5 = arith.constant 0 : index
    %c0_6 = arith.constant 0 : index
    %5 = vector.load %arg6[%c0_5, %c0_6] : memref<128x128xbf16, #tpu.memory_space<vmem>>, vector<128x8xbf16>
    tpu.vector_store %arg6[%c0_5, %c0_6], %4 {strides = array<i32>} : memref<128x128xbf16, #tpu.memory_space<vmem>>, vector<128x8xbf16>,
    %6 = vector.extract_strided_slice %2 {offsets = [0, 0, 1, 0], sizes = [2, 8, 8, 8], strides = [1, 1, 1, 1]} : vector<2x10x10x8xbf16> to vector<2x8x8x8xbf16>
    %7 = vector.shape_cast %6 : vector<2x8x8x8xbf16> to vector<128x8xbf16>
    %c0_7 = arith.constant 0 : index
    %c8 = arith.constant 8 : index
    %8 = vector.load %arg6[%c0_7, %c8] : memref<128x128xbf16, #tpu.memory_space<vmem>>, vector<128x8xbf16>
    tpu.vector_store %arg6[%c0_7, %c8], %7 {strides = array<i32>} : memref<128x128xbf16, #tpu.memory_space<vmem>>, vector<128x8xbf16>,
    %9 = vector.extract_strided_slice %2 {offsets = [0, 0, 2, 0], sizes = [2, 8, 8, 8], strides = [1, 1, 1, 1]} : vector<2x10x10x8xbf16> to vector<2x8x8x8xbf16>
    %10 = vector.shape_cast %9 : vector<2x8x8x8xbf16> to vector<128x8xbf16>
    %c0_8 = arith.constant 0 : index
    %c16 = arith.constant 16 : index
    %11 = vector.load %arg6[%c0_8, %c16] : memref<128x128xbf16, #tpu.memory_space<vmem>>, vector<128x8xbf16>
    tpu.vector_store %arg6[%c0_8, %c16], %10 {strides = array<i32>} : memref<128x128xbf16, #tpu.memory_space<vmem>>, vector<128x8xbf16>,
    %12 = vector.extract_strided_slice %2 {offsets = [0, 1, 0, 0], sizes = [2, 8, 8, 8], strides = [1, 1, 1, 1]} : vector<2x10x10x8xbf16> to vector<2x8x8x8xbf16>
    %13 = vector.shape_cast %12 : vector<2x8x8x8xbf16> to vector<128x8xbf16>
    %c0_9 = arith.constant 0 : index
    %c24 = arith.constant 24 : index
    %14 = vector.load %arg6[%c0_9, %c24] : memref<128x128xbf16, #tpu.memory_space<vmem>>, vector<128x8xbf16>
    tpu.vector_store %arg6[%c0_9, %c24], %13 {strides = array<i32>} : memref<128x128xbf16, #tpu.memory_space<vmem>>, vector<128x8xbf16>,
    %15 = vector.extract_strided_slice %2 {offsets = [0, 1, 1, 0], sizes = [2, 8, 8, 8], strides = [1, 1, 1, 1]} : vector<2x10x10x8xbf16> to vector<2x8x8x8xbf16>
    %16 = vector.shape_cast %15 : vector<2x8x8x8xbf16> to vector<128x8xbf16>
    %c0_10 = arith.constant 0 : index
    %c32 = arith.constant 32 : index
    %17 = vector.load %arg6[%c0_10, %c32] : memref<128x128xbf16, #tpu.memory_space<vmem>>, vector<128x8xbf16>
    tpu.vector_store %arg6[%c0_10, %c32], %16 {strides = array<i32>} : memref<128x128xbf16, #tpu.memory_space<vmem>>, vector<128x8xbf16>,
    %18 = vector.extract_strided_slice %2 {offsets = [0, 1, 2, 0], sizes = [2, 8, 8, 8], strides = [1, 1, 1, 1]} : vector<2x10x10x8xbf16> to vector<2x8x8x8xbf16>
    %19 = vector.shape_cast %18 : vector<2x8x8x8xbf16> to vector<128x8xbf16>
    %c0_11 = arith.constant 0 : index
    %c40 = arith.constant 40 : index
    %20 = vector.load %arg6[%c0_11, %c40] : memref<128x128xbf16, #tpu.memory_space<vmem>>, vector<128x8xbf16>
    tpu.vector_store %arg6[%c0_11, %c40], %19 {strides = array<i32>} : memref<128x128xbf16, #tpu.memory_space<vmem>>, vector<128x8xbf16>,
    %21 = vector.extract_strided_slice %2 {offsets = [0, 2, 0, 0], sizes = [2, 8, 8, 8], strides = [1, 1, 1, 1]} : vector<2x10x10x8xbf16> to vector<2x8x8x8xbf16>
    %22 = vector.shape_cast %21 : vector<2x8x8x8xbf16> to vector<128x8xbf16>
    %c0_12 = arith.constant 0 : index
    %c48 = arith.constant 48 : index
    %23 = vector.load %arg6[%c0_12, %c48] : memref<128x128xbf16, #tpu.memory_space<vmem>>, vector<128x8xbf16>
    tpu.vector_store %arg6[%c0_12, %c48], %22 {strides = array<i32>} : memref<128x128xbf16, #tpu.memory_space<vmem>>, vector<128x8xbf16>,
    %24 = vector.extract_strided_slice %2 {offsets = [0, 2, 1, 0], sizes = [2, 8, 8, 8], strides = [1, 1, 1, 1]} : vector<2x10x10x8xbf16> to vector<2x8x8x8xbf16>
    %25 = vector.shape_cast %24 : vector<2x8x8x8xbf16> to vector<128x8xbf16>
    %c0_13 = arith.constant 0 : index
    %c56 = arith.constant 56 : index
    %26 = vector.load %arg6[%c0_13, %c56] : memref<128x128xbf16, #tpu.memory_space<vmem>>, vector<128x8xbf16>
    tpu.vector_store %arg6[%c0_13, %c56], %25 {strides = array<i32>} : memref<128x128xbf16, #tpu.memory_space<vmem>>, vector<128x8xbf16>,
    %27 = vector.extract_strided_slice %2 {offsets = [0, 2, 2, 0], sizes = [2, 8, 8, 8], strides = [1, 1, 1, 1]} : vector<2x10x10x8xbf16> to vector<2x8x8x8xbf16>
    %28 = vector.shape_cast %27 : vector<2x8x8x8xbf16> to vector<128x8xbf16>
    %c0_14 = arith.constant 0 : index
    %c64 = arith.constant 64 : index
    %29 = vector.load %arg6[%c0_14, %c64] : memref<128x128xbf16, #tpu.memory_space<vmem>>, vector<128x8xbf16>
    tpu.vector_store %arg6[%c0_14, %c64], %28 {strides = array<i32>} : memref<128x128xbf16, #tpu.memory_space<vmem>>, vector<128x8xbf16>,
    %c0_15 = arith.constant 0 : index
    %c0_16 = arith.constant 0 : index
    %30 = vector.load %arg6[%c0_15, %c0_16] : memref<128x128xbf16, #tpu.memory_space<vmem>>, vector<128x128xbf16>
    %c0_17 = arith.constant 0 : index
    %c0_18 = arith.constant 0 : index
    %31 = vector.load %arg2[%c0_17, %c0_18] : memref<128x16xbf16, #tpu.memory_space<vmem>>, vector<128x16xbf16>
    %cst_19 = arith.constant dense<0.000000e+00> : vector<128x16xf32>
    %32 = tpu.matmul %30, %31, %cst_19 {dimension_numbers = #tpu.dot_dimension_numbers<[1], [0], [0], [1], [0, 0, 1, 1], [], []>} : vector<128x128xbf16>, vector<128x16xbf16>, vector<128x16xf32> -> vector<128x16xf32>
    %cst_20 = arith.constant dense<0.000000e+00> : vector<16xf32>
    %33 = vector.multi_reduction <add>, %32, %cst_20 [0] : vector<128x16xf32> to vector<16xf32>
    %34 = vector.shape_cast %33 : vector<16xf32> to vector<1x16xf32>
    %cst_21 = arith.constant 7.812500e-03 : f32
    %35 = vector.broadcast %cst_21 : f32 to vector<1x16xf32>
    %36 = arith.mulf %34, %35 : vector<1x16xf32>
    %37 = arith.mulf %32, %32 : vector<128x16xf32>
    %cst_22 = arith.constant dense<0.000000e+00> : vector<16xf32>
    %38 = vector.multi_reduction <add>, %37, %cst_22 [0] : vector<128x16xf32> to vector<16xf32>
    %39 = vector.shape_cast %38 : vector<16xf32> to vector<1x16xf32>
    %cst_23 = arith.constant 7.812500e-03 : f32
    %40 = vector.broadcast %cst_23 : f32 to vector<1x16xf32>
    %41 = arith.mulf %39, %40 : vector<1x16xf32>
    %42 = arith.mulf %36, %36 : vector<1x16xf32>
    %43 = arith.subf %41, %42 : vector<1x16xf32>
    %cst_24 = arith.constant 9.99999974E-6 : f32
    %44 = vector.broadcast %cst_24 : f32 to vector<1x16xf32>
    %45 = arith.addf %43, %44 : vector<1x16xf32>
    %46 = math.rsqrt %45 : vector<1x16xf32>
    %c0_25 = arith.constant 0 : index
    %c0_26 = arith.constant 0 : index
    %47 = vector.load %arg3[%c0_25, %c0_26] : memref<1x16xf32, #tpu.memory_space<vmem>>, vector<1x16xf32>
    %48 = arith.mulf %46, %47 : vector<1x16xf32>
    %49 = vector.broadcast %36 : vector<1x16xf32> to vector<128x16xf32>
    %50 = arith.subf %32, %49 : vector<128x16xf32>
    %51 = vector.broadcast %48 : vector<1x16xf32> to vector<128x16xf32>
    %52 = arith.mulf %50, %51 : vector<128x16xf32>
    %c0_27 = arith.constant 0 : index
    %c0_28 = arith.constant 0 : index
    %53 = vector.load %arg4[%c0_27, %c0_28] : memref<1x16xf32, #tpu.memory_space<vmem>>, vector<1x16xf32>
    %54 = vector.broadcast %53 : vector<1x16xf32> to vector<128x16xf32>
    %55 = arith.addf %52, %54 : vector<128x16xf32>
    %cst_29 = arith.constant 0.000000e+00 : f32
    %56 = vector.broadcast %cst_29 : f32 to vector<128x16xf32>
    %57 = arith.maximumf %55, %56 : vector<128x16xf32>
    %58 = vector.shape_cast %57 : vector<128x16xf32> to vector<2x4x2x8x16xf32>
    %59 = vector.extract_strided_slice %58 {offsets = [0, 0, 0, 0, 0], sizes = [2, 4, 1, 8, 16], strides = [1, 1, 1, 1, 1]} : vector<2x4x2x8x16xf32> to vector<2x4x1x8x16xf32>
    %60 = vector.shape_cast %59 : vector<2x4x1x8x16xf32> to vector<2x4x8x16xf32>
    %61 = vector.extract_strided_slice %58 {offsets = [0, 0, 1, 0, 0], sizes = [2, 4, 1, 8, 16], strides = [1, 1, 1, 1, 1]} : vector<2x4x2x8x16xf32> to vector<2x4x1x8x16xf32>
    %62 = vector.shape_cast %61 : vector<2x4x1x8x16xf32> to vector<2x4x8x16xf32>
    %63 = arith.maximumf %60, %62 : vector<2x4x8x16xf32>
    %64 = vector.shape_cast %63 : vector<2x4x8x16xf32> to vector<64x16xf32>
    %c0_30 = arith.constant 0 : index
    %c0_31 = arith.constant 0 : index
    %65 = vector.load %arg7[%c0_30, %c0_31] : memref<64x16xf32, #tpu.memory_space<vmem>>, vector<64x16xf32>
    tpu.vector_store %arg7[%c0_30, %c0_31], %64 {strides = array<i32>} : memref<64x16xf32, #tpu.memory_space<vmem>>, vector<64x16xf32>,
    %c0_32 = arith.constant 0 : index
    %c0_33 = arith.constant 0 : index
    %66 = tpu.strided_load %arg7[%c0_32, %c0_33] {strides = array<i32: 2, 1>} : memref<64x16xf32, #tpu.memory_space<vmem>>, vector<32x16xf32>
    %c1 = arith.constant 1 : index
    %c0_34 = arith.constant 0 : index
    %67 = tpu.strided_load %arg7[%c1, %c0_34] {strides = array<i32: 2, 1>} : memref<64x16xf32, #tpu.memory_space<vmem>>, vector<32x16xf32>
    %68 = arith.maximumf %66, %67 : vector<32x16xf32>
    %69 = arith.truncf %68 : vector<32x16xf32> to vector<32x16xbf16>
    %c0_35 = arith.constant 0 : index
    %c0_36 = arith.constant 0 : index
    %70 = vector.load %arg5[%c0_35, %c0_36] : memref<32x16xbf16, #tpu.memory_space<vmem>>, vector<32x16xbf16>
    tpu.vector_store %arg5[%c0_35, %c0_36], %69 {strides = array<i32>} : memref<32x16xbf16, #tpu.memory_space<vmem>>, vector<32x16xbf16>,
    return
  }
  func.func @transform_0(%arg0: i32) -> (i32, i32, i32, i32) {
    %c0_i32 = arith.constant 0 : i32
    %c0_i32_0 = arith.constant 0 : i32
    %c0_i32_1 = arith.constant 0 : i32
    %c0_i32_2 = arith.constant 0 : i32
    %c0_i32_3 = arith.constant 0 : i32
    return %c0_i32, %c0_i32_0, %c0_i32_1, %c0_i32_2 : i32, i32, i32, i32
  }
  func.func @transform_1(%arg0: i32) -> (i32, i32) {
    %c0_i32 = arith.constant 0 : i32
    %c0_i32_0 = arith.constant 0 : i32
    %c0_i32_1 = arith.constant 0 : i32
    return %c0_i32, %c0_i32_0 : i32, i32
  }
  func.func @transform_2(%arg0: i32) -> (i32, i32) {
    %c0_i32 = arith.constant 0 : i32
    %c0_i32_0 = arith.constant 0 : i32
    %c0_i32_1 = arith.constant 0 : i32
    return %c0_i32, %c0_i32_0 : i32, i32
  }
  func.func @transform_3(%arg0: i32) -> (i32, i32) {
    %c0_i32 = arith.constant 0 : i32
    %c0_i32_0 = arith.constant 0 : i32
    %c0_i32_1 = arith.constant 0 : i32
    return %c0_i32, %c0_i32_0 : i32, i32
  }
  func.func @transform_4(%arg0: i32) -> (i32, i32) {
    %c0_i32 = arith.constant 0 : i32
    %c0_i32_0 = arith.constant 0 : i32
    %c0_i32_1 = arith.constant 0 : i32
    return %c0_i32, %c0_i32_0 : i32, i32
  }
}

module attributes {stable_mosaic.version = 11 : i64} {
  func.func @_fc_stack_kernel(%arg0: i32, %arg1: memref<2x256xbf16, #tpu.memory_space<vmem>>, %arg2: memref<256x32xbf16, #tpu.memory_space<vmem>>, %arg3: memref<1x32xf32, #tpu.memory_space<vmem>>, %arg4: memref<32x10xbf16, #tpu.memory_space<vmem>>, %arg5: memref<1x10xf32, #tpu.memory_space<vmem>>, %arg6: memref<2x10xf32, #tpu.memory_space<vmem>>) attributes {dimension_semantics = [#tpu.dimension_semantics<arbitrary>], iteration_bounds = array<i64: 1>, scalar_prefetch = 0 : i64, scratch_operands = 0 : i64, tpu.core_type = #tpu.core_type<tc>, window_params = [{pipeline_mode = #tpu.pipeline_mode<synchronous>, transform_indices = @transform_0, window_bounds = array<i64: 2, 256>}, {pipeline_mode = #tpu.pipeline_mode<synchronous>, transform_indices = @transform_1, window_bounds = array<i64: 256, 32>}, {pipeline_mode = #tpu.pipeline_mode<synchronous>, transform_indices = @transform_2, window_bounds = array<i64: 1, 32>}, {pipeline_mode = #tpu.pipeline_mode<synchronous>, transform_indices = @transform_3, window_bounds = array<i64: 32, 10>}, {pipeline_mode = #tpu.pipeline_mode<synchronous>, transform_indices = @transform_4, window_bounds = array<i64: 1, 10>}, {pipeline_mode = #tpu.pipeline_mode<synchronous>, transform_indices = @transform_5, window_bounds = array<i64: 2, 10>}]} {
    %c0 = arith.constant 0 : index
    %c0_0 = arith.constant 0 : index
    %0 = vector.load %arg1[%c0, %c0_0] : memref<2x256xbf16, #tpu.memory_space<vmem>>, vector<2x256xbf16>
    %c0_1 = arith.constant 0 : index
    %c0_2 = arith.constant 0 : index
    %1 = vector.load %arg2[%c0_1, %c0_2] : memref<256x32xbf16, #tpu.memory_space<vmem>>, vector<256x32xbf16>
    %c0_3 = arith.constant 0 : index
    %c0_4 = arith.constant 0 : index
    %2 = vector.load %arg3[%c0_3, %c0_4] : memref<1x32xf32, #tpu.memory_space<vmem>>, vector<1x32xf32>
    %cst = arith.constant dense<0.000000e+00> : vector<2x32xf32>
    %3 = tpu.matmul %0, %1, %cst {dimension_numbers = #tpu.dot_dimension_numbers<[1], [0], [0], [1], [0, 0, 1, 1], [], []>} : vector<2x256xbf16>, vector<256x32xbf16>, vector<2x32xf32> -> vector<2x32xf32>
    %4 = vector.broadcast %2 : vector<1x32xf32> to vector<2x32xf32>
    %5 = arith.addf %3, %4 : vector<2x32xf32>
    %cst_5 = arith.constant 0.000000e+00 : f32
    %6 = vector.broadcast %cst_5 : f32 to vector<2x32xf32>
    %7 = arith.maximumf %5, %6 : vector<2x32xf32>
    %c0_6 = arith.constant 0 : index
    %c0_7 = arith.constant 0 : index
    %8 = vector.load %arg4[%c0_6, %c0_7] : memref<32x10xbf16, #tpu.memory_space<vmem>>, vector<32x10xbf16>
    %c0_8 = arith.constant 0 : index
    %c0_9 = arith.constant 0 : index
    %9 = vector.load %arg5[%c0_8, %c0_9] : memref<1x10xf32, #tpu.memory_space<vmem>>, vector<1x10xf32>
    %10 = arith.truncf %7 : vector<2x32xf32> to vector<2x32xbf16>
    %cst_10 = arith.constant dense<0.000000e+00> : vector<2x10xf32>
    %11 = tpu.matmul %10, %8, %cst_10 {dimension_numbers = #tpu.dot_dimension_numbers<[1], [0], [0], [1], [0, 0, 1, 1], [], []>} : vector<2x32xbf16>, vector<32x10xbf16>, vector<2x10xf32> -> vector<2x10xf32>
    %12 = vector.broadcast %9 : vector<1x10xf32> to vector<2x10xf32>
    %13 = arith.addf %11, %12 : vector<2x10xf32>
    %cst_11 = arith.constant 0.000000e+00 : f32
    %14 = vector.broadcast %cst_11 : f32 to vector<2x10xf32>
    %15 = arith.maximumf %13, %14 : vector<2x10xf32>
    %c0_12 = arith.constant 0 : index
    %c0_13 = arith.constant 0 : index
    %16 = vector.load %arg6[%c0_12, %c0_13] : memref<2x10xf32, #tpu.memory_space<vmem>>, vector<2x10xf32>
    tpu.vector_store %arg6[%c0_12, %c0_13], %15 {strides = array<i32>} : memref<2x10xf32, #tpu.memory_space<vmem>>, vector<2x10xf32>,
    return
  }
  func.func @transform_0(%arg0: i32) -> (i32, i32) {
    %c0_i32 = arith.constant 0 : i32
    %c0_i32_0 = arith.constant 0 : i32
    %c0_i32_1 = arith.constant 0 : i32
    return %c0_i32, %c0_i32_0 : i32, i32
  }
  func.func @transform_1(%arg0: i32) -> (i32, i32) {
    %c0_i32 = arith.constant 0 : i32
    %c0_i32_0 = arith.constant 0 : i32
    %c0_i32_1 = arith.constant 0 : i32
    return %c0_i32, %c0_i32_0 : i32, i32
  }
  func.func @transform_2(%arg0: i32) -> (i32, i32) {
    %c0_i32 = arith.constant 0 : i32
    %c0_i32_0 = arith.constant 0 : i32
    %c0_i32_1 = arith.constant 0 : i32
    return %c0_i32, %c0_i32_0 : i32, i32
  }
  func.func @transform_3(%arg0: i32) -> (i32, i32) {
    %c0_i32 = arith.constant 0 : i32
    %c0_i32_0 = arith.constant 0 : i32
    %c0_i32_1 = arith.constant 0 : i32
    return %c0_i32, %c0_i32_0 : i32, i32
  }
  func.func @transform_4(%arg0: i32) -> (i32, i32) {
    %c0_i32 = arith.constant 0 : i32
    %c0_i32_0 = arith.constant 0 : i32
    %c0_i32_1 = arith.constant 0 : i32
    return %c0_i32, %c0_i32_0 : i32, i32
  }
  func.func @transform_5(%arg0: i32) -> (i32, i32) {
    %c0_i32 = arith.constant 0 : i32
    %c0_i32_0 = arith.constant 0 : i32
    %c0_i32_1 = arith.constant 0 : i32
    return %c0_i32, %c0_i32_0 : i32, i32
  }
}

</mosaic_0001>

<llo_original>
// kernel: cnn_forward.5
$region0: #{cnn_forward.5}
  #allocation0 [shape = 'u32[]', space=smem, size = 0x4, offset = 0x4, fixed_abs, tag = 'smem constant byte address 0x4 - core index']
  #allocation1 [shape = 'u32[144,128]{1,0:T(1,128)}', space=vmem, size = 0x12000, scoped, tag = 'internal scratch']
  %s0 = inlined_call_operand.vmem [shape: bf16[2,256], index: 0, kind: input, shape index: {}]
  %s1 = inlined_call_operand.vmem [shape: bf16[256,32], index: 1, kind: input, shape index: {}]
  %s2 = inlined_call_operand.vmem [shape: f32[1,32], index: 2, kind: input, shape index: {}]
  %s3 = inlined_call_operand.vmem [shape: bf16[32,10], index: 3, kind: input, shape index: {}]
  %s4 = inlined_call_operand.vmem [shape: f32[1,10], index: 4, kind: input, shape index: {}]
  %s5 = inlined_call_operand.hbm [shape: f32[2,10], index: 5, kind: output, shape index: {}]
  %s6 = sld [smem:[#allocation0]]
  $region30: #{cnn_forward.5} parent=0
    _
  %s8 = ssub.s32 1, %s6
  %s9 = scalar_select 0, %s8, %s6
  $region1: #{cnn_forward.5} parent=0
    #allocation2 [shape = 'u8[1024]{0}', space=vmem, size = 0x400, scoped, tag = 'output window, operand 0, single buffered']
    #allocation3 [shape = 's32[1]{0}', space=sflag, size = 0x4, scoped, tag = 'scoped memory for cnn_forward.5']
    %10 = vsyncpa [#allocation3], 0
    // Predicated region
    $region2: #{cnn_forward.5} parent=1 // pred_check
      _
    $region3: #{cnn_forward.5} parent=1 // pred_check_branch
      %12 = sbr.rel (0) target = $region5
    $region4: #{cnn_forward.5} parent=1 // pred_region
      _
    $region5: #{cnn_forward.5} parent=1 // pred_fallthru
      _
    // Predicated region
    $region6: #{cnn_forward.5} parent=1 // pred_check
      _
    $region7: #{cnn_forward.5} parent=1 // pred_check_branch
      %14 = sbr.rel (0) target = $region9
    $region8: #{cnn_forward.5} parent=1 // pred_region
      _
    $region9: #{cnn_forward.5} parent=1 // pred_fallthru
      _
    // Predicated region
    $region10: #{cnn_forward.5} parent=1 // pred_check
      _
    $region11: #{cnn_forward.5} parent=1 // pred_check_branch
      %16 = sbr.rel (0) target = $region13
    $region12: #{cnn_forward.5} parent=1 // pred_region
      _
    $region13: #{cnn_forward.5} parent=1 // pred_fallthru
      _
    // Predicated region
    $region14: #{cnn_forward.5} parent=1 // pred_check
      _
    $region15: #{cnn_forward.5} parent=1 // pred_check_branch
      %18 = sbr.rel (0) target = $region17
    $region16: #{cnn_forward.5} parent=1 // pred_region
      _
    $region17: #{cnn_forward.5} parent=1 // pred_fallthru
      _
    // Predicated region
    $region18: #{cnn_forward.5} parent=1 // pred_check
      _
    $region19: #{cnn_forward.5} parent=1 // pred_check_branch
      %20 = sbr.rel (0) target = $region21
    $region20: #{cnn_forward.5} parent=1 // pred_region
      _
    $region21: #{cnn_forward.5} parent=1 // pred_fallthru
      _
    %v22 = vld [vmem:[%s0] sm:$0x3]
    %v23 = vld [vmem:[%s1] sm:$0xf]
    %v24 = vld [vmem:[%s1 + $0x4] sm:$0xf]
    %v25 = vld [vmem:[%s1 + $0x8] sm:$0xf]
    %v26 = vld [vmem:[%s1 + $0xc] sm:$0xf]
    %v27 = vld [vmem:[%s1 + $0x10] sm:$0xf]
    %v28 = vld [vmem:[%s1 + $0x14] sm:$0xf]
    %v29 = vld [vmem:[%s1 + $0x18] sm:$0xf]
    %v30 = vld [vmem:[%s1 + $0x1c] sm:$0xf]
    %v31 = vld [vmem:[%s1 + $0x20] sm:$0xf]
    %v32 = vld [vmem:[%s1 + $0x24] sm:$0xf]
    %v33 = vld [vmem:[%s1 + $0x28] sm:$0xf]
    %v34 = vld [vmem:[%s1 + $0x2c] sm:$0xf]
    %v35 = vld [vmem:[%s1 + $0x30] sm:$0xf]
    %v36 = vld [vmem:[%s1 + $0x34] sm:$0xf]
    %v37 = vld [vmem:[%s1 + $0x38] sm:$0xf]
    %v38 = vld [vmem:[%s1 + $0x3c] sm:$0xf]
    %v39 = vld [vmem:[%s1 + $0x40] sm:$0xf]
    %v40 = vld [vmem:[%s1 + $0x44] sm:$0xf]
    %v41 = vld [vmem:[%s1 + $0x48] sm:$0xf]
    %v42 = vld [vmem:[%s1 + $0x4c] sm:$0xf]
    %v43 = vld [vmem:[%s1 + $0x50] sm:$0xf]
    %v44 = vld [vmem:[%s1 + $0x54] sm:$0xf]
    %v45 = vld [vmem:[%s1 + $0x58] sm:$0xf]
    %v46 = vld [vmem:[%s1 + $0x5c] sm:$0xf]
    %v47 = vld [vmem:[%s1 + $0x60] sm:$0xf]
    %v48 = vld [vmem:[%s1 + $0x64] sm:$0xf]
    %v49 = vld [vmem:[%s1 + $0x68] sm:$0xf]
    %v50 = vld [vmem:[%s1 + $0x6c] sm:$0xf]
    %v51 = vld [vmem:[%s1 + $0x70] sm:$0xf]
    %v52 = vld [vmem:[%s1 + $0x74] sm:$0xf]
    %v53 = vld [vmem:[%s1 + $0x78] sm:$0xf]
    %v54 = vld [vmem:[%s1 + $0x7c] sm:$0xf]
    %v55 = vld [vmem:[%s2] sm:$0x1]
    %v57 = vlaneseq
    %v58 = vshrl.u32 %v57, 7
    %v59 = vsub.s32 0, %v58
    %v60 = vrot.slane %v55, %v59
    %v64 = vunpack.c.l.s4 1966171168
    %v65 = vunpack.c.0.s8 %v64
    %v66 = vlaneseq
    %v67 = vshrl.u32 %v66, 7
    %v68 = vsub.s32 %v65, %v67
    %v69 = vrot.slane %v22, %v68
    %v70 = vcombine.high %v69, %v69
    %v72 = vunpack.c.l.s4 1966171168
    %v73 = vunpack.c.0.s8 %v72
    %v74 = vlaneseq
    %v75 = vshrl.u32 %v74, 7
    %v76 = vsub.s32 %v73, %v75
    %v77 = vrot.slane %v69, %v76
    %v79 = vunpack.c.l.s4 1966171168
    %v80 = vunpack.c.0.s8 %v79
    %v81 = vlaneseq
    %v82 = vshrl.u32 %v81, 7
    %v83 = vsub.s32 %v80, %v82
    %v84 = vrot.slane %v70, %v83
    %v119 = vunpack.c.l.b16 %v23
    %v120 = vunpack.c.l.b16 %v24
    %v121 = vunpack.c.l.b16 %v25
    %v122 = vunpack.c.l.b16 %v26
    %v123 = vunpack.c.l.b16 %v27
    %v124 = vunpack.c.l.b16 %v28
    %v125 = vunpack.c.l.b16 %v29
    %v126 = vunpack.c.l.b16 %v30
    %v127 = vunpack.c.l.b16 %v31
    %v128 = vunpack.c.l.b16 %v32
    %v129 = vunpack.c.l.b16 %v33
    %v130 = vunpack.c.l.b16 %v34
    %v131 = vunpack.c.l.b16 %v35
    %v132 = vunpack.c.l.b16 %v36
    %v133 = vunpack.c.l.b16 %v37
    %v134 = vunpack.c.l.b16 %v38
    %v135 = vunpack.c.l.b16 %v39
    %v136 = vunpack.c.l.b16 %v40
    %v137 = vunpack.c.l.b16 %v41
    %v138 = vunpack.c.l.b16 %v42
    %v139 = vunpack.c.l.b16 %v43
    %v140 = vunpack.c.l.b16 %v44
    %v141 = vunpack.c.l.b16 %v45
    %v142 = vunpack.c.l.b16 %v46
    %v143 = vunpack.c.l.b16 %v47
    %v144 = vunpack.c.l.b16 %v48
    %v145 = vunpack.c.l.b16 %v49
    %v146 = vunpack.c.l.b16 %v50
    %v147 = vunpack.c.l.b16 %v51
    %v148 = vunpack.c.l.b16 %v52
    %v149 = vunpack.c.l.b16 %v53
    %v150 = vunpack.c.l.b16 %v54
    %v151 = vpack.c.b16 %v120, %v119
    %v152 = vpack.c.b16 %v122, %v121
    %v153 = vpack.c.b16 %v124, %v123
    %v154 = vpack.c.b16 %v126, %v125
    %v155 = vpack.c.b16 %v128, %v127
    %v156 = vpack.c.b16 %v130, %v129
    %v157 = vpack.c.b16 %v132, %v131
    %v158 = vpack.c.b16 %v134, %v133
    %v159 = vpack.c.b16 %v136, %v135
    %v160 = vpack.c.b16 %v138, %v137
    %v161 = vpack.c.b16 %v140, %v139
    %v162 = vpack.c.b16 %v142, %v141
    %v163 = vpack.c.b16 %v144, %v143
    %v164 = vpack.c.b16 %v146, %v145
    %v165 = vpack.c.b16 %v148, %v147
    %v166 = vpack.c.b16 %v150, %v149
    %183 = vmatprep.subr.bf16.mxu0 0
    %184 = vmatpush1.bf16.msra.mxu0 %v151
    %185 = vmatprep.subr.bf16.mxu0 0
    %186 = vmatpush1.bf16.msra.mxu0 %v152
    %187 = vmatprep.subr.bf16.mxu0 0
    %188 = vmatpush1.bf16.msra.mxu0 %v153
    %189 = vmatprep.subr.bf16.mxu0 0
    %190 = vmatpush1.bf16.msra.mxu0 %v154
    %191 = vmatprep.subr.bf16.mxu0 0
    %192 = vmatpush1.bf16.msra.mxu0 %v155
    %193 = vmatprep.subr.bf16.mxu0 0
    %194 = vmatpush1.bf16.msra.mxu0 %v156
    %195 = vmatprep.subr.bf16.mxu0 0
    %196 = vmatpush1.bf16.msra.mxu0 %v157
    %197 = vmatprep.subr.bf16.mxu0 0
    %198 = vmatpush1.bf16.msra.mxu0 %v158
    %199 = vmatprep.subr.bf16.mxu0 0
    %200 = vmatpush1.bf16.msra.mxu0 %v159
    %201 = vmatprep.subr.bf16.mxu0 0
    %202 = vmatpush1.bf16.msra.mxu0 %v160
    %203 = vmatprep.subr.bf16.mxu0 0
    %204 = vmatpush1.bf16.msra.mxu0 %v161
    %205 = vmatprep.subr.bf16.mxu0 0
    %206 = vmatpush1.bf16.msra.mxu0 %v162
    %207 = vmatprep.subr.bf16.mxu0 0
    %208 = vmatpush1.bf16.msra.mxu0 %v163
    %209 = vmatprep.subr.bf16.mxu0 0
    %210 = vmatpush1.bf16.msra.mxu0 %v164
    %211 = vmatprep.subr.bf16.mxu0 0
    %212 = vmatpush1.bf16.msra.mxu0 %v165
    %213 = vmatprep.subr.bf16.mxu0 0
    %214 = vmatpush1.bf16.msra.mxu0 %v166
    %215 = vmatprep.mubr.bf16.mxu0 %v84
    %216 = vmatmul.mubr.bf16.gmra.mrb[0].mxu0 %v77
    %v217 = vpop.f32.mrb[0].mxu0
    %v218 = vadd.f32 %v60, %v217
    %v219 = vpop.f32.mrb[0].mxu0
    %v220 = vpop.f32.mrb[0].mxu0
    %v221 = vpop.f32.mrb[0].mxu0
    %222 = vdwg.mxu0
    %v223 = vmax.f32 %v218, 0.0
    %v224 = vld [vmem:[%s3] sm:$0xf]
    %v225 = vld [vmem:[%s3 + $0x4] sm:$0xf]
    %v226 = vld [vmem:[%s3 + $0x8] sm:$0xf]
    %v227 = vld [vmem:[%s3 + $0xc] sm:$0xf]
    %v228 = vld [vmem:[%s4] sm:$0x1]
    %v229 = vpack.c.bf16 %v223, %v223
    %v231 = vlaneseq
    %v232 = vshrl.u32 %v231, 7
    %v233 = vsub.s32 0, %v232
    %v234 = vrot.slane %v228, %v233
    %v240 = vunpack.c.l.b16 %v224
    %v241 = vunpack.c.l.b16 %v225
    %v242 = vunpack.c.l.b16 %v226
    %v243 = vunpack.c.l.b16 %v227
    %v244 = vpack.c.b16 %v241, %v240
    %v245 = vpack.c.b16 %v243, %v242
    %vm248 = vcmask 261120
    %v250 = vsel %vm248, %v229, 0
    %252 = vmatprep.subr.bf16.mxu0 0
    %253 = vmatpush1.bf16.msra.mxu0 %v244
    %254 = vmatprep.subr.bf16.mxu0 0
    %255 = vmatpush1.bf16.msra.mxu0 %v245
    %256 = vmatprep.subr.bf16.mxu0 0
    %257 = vmatpush1.bf16.msra.mxu0 0
    %258 = vmatprep.subr.bf16.mxu0 0
    %259 = vmatpush1.bf16.msra.mxu0 0
    %260 = vmatprep.subr.bf16.mxu0 0
    %261 = vmatpush1.bf16.msra.mxu0 0
    %262 = vmatprep.subr.bf16.mxu0 0
    %263 = vmatpush1.bf16.msra.mxu0 0
    %264 = vmatprep.subr.bf16.mxu0 0
    %265 = vmatpush1.bf16.msra.mxu0 0
    %266 = vmatprep.subr.bf16.mxu0 0
    %267 = vmatpush1.bf16.msra.mxu0 0
    %268 = vmatprep.subr.bf16.mxu0 0
    %269 = vmatpush1.bf16.msra.mxu0 0
    %270 = vmatprep.subr.bf16.mxu0 0
    %271 = vmatpush1.bf16.msra.mxu0 0
    %272 = vmatprep.subr.bf16.mxu0 0
    %273 = vmatpush1.bf16.msra.mxu0 0
    %274 = vmatprep.subr.bf16.mxu0 0
    %275 = vmatpush1.bf16.msra.mxu0 0
    %276 = vmatprep.subr.bf16.mxu0 0
    %277 = vmatpush1.bf16.msra.mxu0 0
    %278 = vmatprep.subr.bf16.mxu0 0
    %279 = vmatpush1.bf16.msra.mxu0 0
    %280 = vmatprep.subr.bf16.mxu0 0
    %281 = vmatpush1.bf16.msra.mxu0 0
    %282 = vmatprep.subr.bf16.mxu0 0
    %283 = vmatpush1.bf16.msra.mxu0 0
    %284 = vmatprep.mubr.bf16.mxu0 0
    %285 = vmatmul.mubr.bf16.gmra.mrb[0].mxu0 %v250
    %v286 = vpop.f32.mrb[0].mxu0
    %v287 = vadd.f32 %v234, %v286
    %v288 = vpop.f32.mrb[0].mxu0
    %v289 = vpop.f32.mrb[0].mxu0
    %v290 = vpop.f32.mrb[0].mxu0
    %291 = vdwg.mxu0
    %v292 = vmax.f32 %v287, 0.0
    %vm293 = vcmask 74752
    %294 = vst.msk [vmem:[#allocation2] sm:$0x3] %vm293, %v292
    // Predicated region
    $region22: #{cnn_forward.5} parent=1 // pred_check
      _
    $region23: #{cnn_forward.5} parent=1 // pred_check_branch
      %296 = sbr.rel (0) target = $region25
    $region24: #{cnn_forward.5} parent=1 // pred_region
      %s298 = ssub.s32 32, 32
      %299 = vsyncadd [#allocation3], %s298
      %s301 = sshll.u32 [#allocation2], 4
      %s302 = int_to_ptr.vmem [resolvable:$true] %s301
      %304 = dma.vmem_to_hbm [thread:$0]  %s302, 32, %s5, [#allocation3]
    $region25: #{cnn_forward.5} parent=1 // pred_fallthru
      _
    // Predicated region
    $region26: #{cnn_forward.5} parent=1 // pred_check
      _
    $region27: #{cnn_forward.5} parent=1 // pred_check_branch
      %306 = sbr.rel (0) target = $region29
    $region28: #{cnn_forward.5} parent=1 // pred_region
      %307 = dma.done [#allocation3], 32
    $region29: #{cnn_forward.5} parent=1 // pred_fallthru
      _
    %308 = vsyncpa [#allocation3], 1

// kernel: cnn_forward.4
$region0: #{cnn_forward.4}
  #allocation0 [shape = 'u32[]', space=smem, size = 0x4, offset = 0x4, fixed_abs, tag = 'smem constant byte address 0x4 - core index']
  #allocation1 [shape = 'u32[144,128]{1,0:T(1,128)}', space=vmem, size = 0x12000, scoped, tag = 'internal scratch']
  #allocation2 [shape = 'bf16[128,128]{1,0:T(16,128)(2,1)}', space=vmem, size = 0x8000, scoped, tag = 'scratch operand']
  #allocation3 [shape = 'f32[64,16]{1,0:T(8,128)}', space=vmem, size = 0x8000, scoped, tag = 'scratch operand']
  %s0 = inlined_call_operand.vmem [shape: bf16[2,10,10,8], index: 0, kind: input, shape index: {}]
  %s1 = inlined_call_operand.vmem [shape: bf16[128,16], index: 1, kind: input, shape index: {}]
  %s2 = inlined_call_operand.vmem [shape: f32[1,16], index: 2, kind: input, shape index: {}]
  %s3 = inlined_call_operand.vmem [shape: f32[1,16], index: 3, kind: input, shape index: {}]
  %s4 = inlined_call_operand.vmem [shape: bf16[32,16], index: 4, kind: output, shape index: {}]
  %s5 = sld [smem:[#allocation0]]
  $region26: #{cnn_forward.4} parent=0
    _
  %s7 = ssub.s32 1, %s5
  %s8 = scalar_select 0, %s7, %s5
  // Predicated region
  $region2: #{cnn_forward.4} parent=0 // pred_check
    _
  $region3: #{cnn_forward.4} parent=0 // pred_check_branch
    %10 = sbr.rel (0) target = $region5
  $region4: #{cnn_forward.4} parent=0 // pred_region
    _
  $region5: #{cnn_forward.4} parent=0 // pred_fallthru
    _
  // Predicated region
  $region6: #{cnn_forward.4} parent=0 // pred_check
    _
  $region7: #{cnn_forward.4} parent=0 // pred_check_branch
    %12 = sbr.rel (0) target = $region9
  $region8: #{cnn_forward.4} parent=0 // pred_region
    _
  $region9: #{cnn_forward.4} parent=0 // pred_fallthru
    _
  // Predicated region
  $region10: #{cnn_forward.4} parent=0 // pred_check
    _
  $region11: #{cnn_forward.4} parent=0 // pred_check_branch
    %14 = sbr.rel (0) target = $region13
  $region12: #{cnn_forward.4} parent=0 // pred_region
    _
  $region13: #{cnn_forward.4} parent=0 // pred_fallthru
    _
  // Predicated region
  $region14: #{cnn_forward.4} parent=0 // pred_check
    _
  $region15: #{cnn_forward.4} parent=0 // pred_check_branch
    %16 = sbr.rel (0) target = $region17
  $region16: #{cnn_forward.4} parent=0 // pred_region
    _
  $region17: #{cnn_forward.4} parent=0 // pred_fallthru
    _
  %18 = vst [vmem:[#allocation2] sm:$0xff] 0
  %19 = vst [vmem:[#allocation2 + $0x8] sm:$0xff] 0
  %20 = vst [vmem:[#allocation2 + $0x10] sm:$0xff] 0
  %21 = vst [vmem:[#allocation2 + $0x18] sm:$0xff] 0
  %22 = vst [vmem:[#allocation2 + $0x20] sm:$0xff] 0
  %23 = vst [vmem:[#allocation2 + $0x28] sm:$0xff] 0
  %24 = vst [vmem:[#allocation2 + $0x30] sm:$0xff] 0
  %25 = vst [vmem:[#allocation2 + $0x38] sm:$0xff] 0
  %v26 = vld [vmem:[%s0] sm:$0xf]
  %v27 = vld [vmem:[%s0 + $0x4] sm:$0x1]
  %v28 = vld [vmem:[%s0 + $0x8] sm:$0xf]
  %v29 = vld [vmem:[%s0 + $0xc] sm:$0x1]
  %v30 = vld [vmem:[%s0 + $0x10] sm:$0xf]
  %v31 = vld [vmem:[%s0 + $0x14] sm:$0x1]
  %v32 = vld [vmem:[%s0 + $0x18] sm:$0xf]
  %v33 = vld [vmem:[%s0 + $0x1c] sm:$0x1]
  %v34 = vld [vmem:[%s0 + $0x20] sm:$0xf]
  %v35 = vld [vmem:[%s0 + $0x24] sm:$0x1]
  %v36 = vld [vmem:[%s0 + $0x28] sm:$0xf]
  %v37 = vld [vmem:[%s0 + $0x2c] sm:$0x1]
  %v38 = vld [vmem:[%s0 + $0x30] sm:$0xf]
  %v39 = vld [vmem:[%s0 + $0x34] sm:$0x1]
  %v40 = vld [vmem:[%s0 + $0x38] sm:$0xf]
  %v41 = vld [vmem:[%s0 + $0x3c] sm:$0x1]
  %v42 = vld [vmem:[%s0 + $0x40] sm:$0xf]
  %v43 = vld [vmem:[%s0 + $0x44] sm:$0x1]
  %v44 = vld [vmem:[%s0 + $0x48] sm:$0xf]
  %v45 = vld [vmem:[%s0 + $0x4c] sm:$0x1]
  %v46 = vld [vmem:[%s0 + $0x50] sm:$0xf]
  %v47 = vld [vmem:[%s0 + $0x54] sm:$0x1]
  %v48 = vld [vmem:[%s0 + $0x58] sm:$0xf]
  %v49 = vld [vmem:[%s0 + $0x5c] sm:$0x1]
  %v50 = vld [vmem:[%s0 + $0x60] sm:$0xf]
  %v51 = vld [vmem:[%s0 + $0x64] sm:$0x1]
  %v52 = vld [vmem:[%s0 + $0x68] sm:$0xf]
  %v53 = vld [vmem:[%s0 + $0x6c] sm:$0x1]
  %v54 = vld [vmem:[%s0 + $0x70] sm:$0xf]
  %v55 = vld [vmem:[%s0 + $0x74] sm:$0x1]
  %v56 = vld [vmem:[%s0 + $0x78] sm:$0xf]
  %v57 = vld [vmem:[%s0 + $0x7c] sm:$0x1]
  %v58 = vld [vmem:[%s0 + $0x80] sm:$0xf]
  %v59 = vld [vmem:[%s0 + $0x84] sm:$0x1]
  %v60 = vld [vmem:[%s0 + $0x88] sm:$0xf]
  %v61 = vld [vmem:[%s0 + $0x8c] sm:$0x1]
  %v62 = vld [vmem:[%s0 + $0x90] sm:$0xf]
  %v63 = vld [vmem:[%s0 + $0x94] sm:$0x1]
  %v64 = vld [vmem:[%s0 + $0x98] sm:$0xf]
  %v65 = vld [vmem:[%s0 + $0x9c] sm:$0x1]
  %v82 = vunpack.c.l.b16 %v26
  %v83 = vunpack.c.l.b16 %v28
  %v84 = vunpack.c.l.b16 %v30
  %v85 = vunpack.c.l.b16 %v32
  %v86 = vunpack.c.l.b16 %v34
  %v87 = vunpack.c.l.b16 %v36
  %v88 = vunpack.c.l.b16 %v38
  %v89 = vunpack.c.l.b16 %v40
  %v90 = vunpack.c.l.b16 %v46
  %v91 = vunpack.c.l.b16 %v48
  %v92 = vunpack.c.l.b16 %v50
  %v93 = vunpack.c.l.b16 %v52
  %v94 = vunpack.c.l.b16 %v54
  %v95 = vunpack.c.l.b16 %v56
  %v96 = vunpack.c.l.b16 %v58
  %v97 = vunpack.c.l.b16 %v60
  %v98 = vpack.c.b16 %v83, %v82
  %v99 = vpack.c.b16 %v85, %v84
  %v100 = vpack.c.b16 %v87, %v86
  %v101 = vpack.c.b16 %v89, %v88
  %v102 = vpack.c.b16 %v91, %v90
  %v103 = vpack.c.b16 %v93, %v92
  %v104 = vpack.c.b16 %v95, %v94
  %v105 = vpack.c.b16 %v97, %v96
  %vm114 = vcmask 64512
  %115 = vst.msk [vmem:[#allocation2] sm:$0xff] %vm114, %v98
  %116 = vst.msk [vmem:[#allocation2 + $0x8] sm:$0xff] %vm114, %v99
  %117 = vst.msk [vmem:[#allocation2 + $0x10] sm:$0xff] %vm114, %v100
  %118 = vst.msk [vmem:[#allocation2 + $0x18] sm:$0xff] %vm114, %v101
  %119 = vst.msk [vmem:[#allocation2 + $0x20] sm:$0xff] %vm114, %v102
  %120 = vst.msk [vmem:[#allocation2 + $0x28] sm:$0xff] %vm114, %v103
  %121 = vst.msk [vmem:[#allocation2 + $0x30] sm:$0xff] %vm114, %v104
  %122 = vst.msk [vmem:[#allocation2 + $0x38] sm:$0xff] %vm114, %v105
  %vm123 = vsmask.f32 3328
  %vm124 = vsmask.f32 7440
  %vm125 = vmor %vm123, %vm124
  %v127 = vshrl.u32 %v26, 16
  %v129 = vrot.slane %v127, 4
  %v130 = vshll.u32 %v26, 16
  %v132 = vrot.slane %v130, 5
  %v133 = vor.u32 %v129, %v132
  %v134 = vrot.slane %v133, 4
  %v136 = vshll.u32 %v27, 16
  %v138 = vrot.slane %v136, 5
  %v139 = vsel %vm125, %v134, %v138
  %v141 = vshrl.u32 %v28, 16
  %v143 = vrot.slane %v141, 4
  %v144 = vshll.u32 %v28, 16
  %v146 = vrot.slane %v144, 5
  %v147 = vor.u32 %v143, %v146
  %v148 = vrot.slane %v147, 4
  %v150 = vshll.u32 %v29, 16
  %v152 = vrot.slane %v150, 5
  %v153 = vsel %vm125, %v148, %v152
  %v155 = vshrl.u32 %v30, 16
  %v157 = vrot.slane %v155, 4
  %v158 = vshll.u32 %v30, 16
  %v160 = vrot.slane %v158, 5
  %v161 = vor.u32 %v157, %v160
  %v162 = vrot.slane %v161, 4
  %v164 = vshll.u32 %v31, 16
  %v166 = vrot.slane %v164, 5
  %v167 = vsel %vm125, %v162, %v166
  %v169 = vshrl.u32 %v32, 16
  %v171 = vrot.slane %v169, 4
  %v172 = vshll.u32 %v32, 16
  %v174 = vrot.slane %v172, 5
  %v175 = vor.u32 %v171, %v174
  %v176 = vrot.slane %v175, 4
  %v178 = vshll.u32 %v33, 16
  %v180 = vrot.slane %v178, 5
  %v181 = vsel %vm125, %v176, %v180
  %v183 = vshrl.u32 %v34, 16
  %v185 = vrot.slane %v183, 4
  %v186 = vshll.u32 %v34, 16
  %v188 = vrot.slane %v186, 5
  %v189 = vor.u32 %v185, %v188
  %v190 = vrot.slane %v189, 4
  %v192 = vshll.u32 %v35, 16
  %v194 = vrot.slane %v192, 5
  %v195 = vsel %vm125, %v190, %v194
  %v197 = vshrl.u32 %v36, 16
  %v199 = vrot.slane %v197, 4
  %v200 = vshll.u32 %v36, 16
  %v202 = vrot.slane %v200, 5
  %v203 = vor.u32 %v199, %v202
  %v204 = vrot.slane %v203, 4
  %v206 = vshll.u32 %v37, 16
  %v208 = vrot.slane %v206, 5
  %v209 = vsel %vm125, %v204, %v208
  %v211 = vshrl.u32 %v38, 16
  %v213 = vrot.slane %v211, 4
  %v214 = vshll.u32 %v38, 16
  %v216 = vrot.slane %v214, 5
  %v217 = vor.u32 %v213, %v216
  %v218 = vrot.slane %v217, 4
  %v220 = vshll.u32 %v39, 16
  %v222 = vrot.slane %v220, 5
  %v223 = vsel %vm125, %v218, %v222
  %v225 = vshrl.u32 %v40, 16
  %v227 = vrot.slane %v225, 4
  %v228 = vshll.u32 %v40, 16
  %v230 = vrot.slane %v228, 5
  %v231 = vor.u32 %v227, %v230
  %v232 = vrot.slane %v231, 4
  %v234 = vshll.u32 %v41, 16
  %v236 = vrot.slane %v234, 5
  %v237 = vsel %vm125, %v232, %v236
  %v239 = vshrl.u32 %v46, 16
  %v241 = vrot.slane %v239, 4
  %v242 = vshll.u32 %v46, 16
  %v244 = vrot.slane %v242, 5
  %v245 = vor.u32 %v241, %v244
  %v246 = vrot.slane %v245, 4
  %v248 = vshll.u32 %v47, 16
  %v250 = vrot.slane %v248, 5
  %v251 = vsel %vm125, %v246, %v250
  %v253 = vshrl.u32 %v48, 16
  %v255 = vrot.slane %v253, 4
  %v256 = vshll.u32 %v48, 16
  %v258 = vrot.slane %v256, 5
  %v259 = vor.u32 %v255, %v258
  %v260 = vrot.slane %v259, 4
  %v262 = vshll.u32 %v49, 16
  %v264 = vrot.slane %v262, 5
  %v265 = vsel %vm125, %v260, %v264
  %v267 = vshrl.u32 %v50, 16
  %v269 = vrot.slane %v267, 4
  %v270 = vshll.u32 %v50, 16
  %v272 = vrot.slane %v270, 5
  %v273 = vor.u32 %v269, %v272
  %v274 = vrot.slane %v273, 4
  %v276 = vshll.u32 %v51, 16
  %v278 = vrot.slane %v276, 5
  %v279 = vsel %vm125, %v274, %v278
  %v281 = vshrl.u32 %v52, 16
  %v283 = vrot.slane %v281, 4
  %v284 = vshll.u32 %v52, 16
  %v286 = vrot.slane %v284, 5
  %v287 = vor.u32 %v283, %v286
  %v288 = vrot.slane %v287, 4
  %v290 = vshll.u32 %v53, 16
  %v292 = vrot.slane %v290, 5
  %v293 = vsel %vm125, %v288, %v292
  %v295 = vshrl.u32 %v54, 16
  %v297 = vrot.slane %v295, 4
  %v298 = vshll.u32 %v54, 16
  %v300 = vrot.slane %v298, 5
  %v301 = vor.u32 %v297, %v300
  %v302 = vrot.slane %v301, 4
  %v304 = vshll.u32 %v55, 16
  %v306 = vrot.slane %v304, 5
  %v307 = vsel %vm125, %v302, %v306
  %v309 = vshrl.u32 %v56, 16
  %v311 = vrot.slane %v309, 4
  %v312 = vshll.u32 %v56, 16
  %v314 = vrot.slane %v312, 5
  %v315 = vor.u32 %v311, %v314
  %v316 = vrot.slane %v315, 4
  %v318 = vshll.u32 %v57, 16
  %v320 = vrot.slane %v318, 5
  %v321 = vsel %vm125, %v316, %v320
  %v323 = vshrl.u32 %v58, 16
  %v325 = vrot.slane %v323, 4
  %v326 = vshll.u32 %v58, 16
  %v328 = vrot.slane %v326, 5
  %v329 = vor.u32 %v325, %v328
  %v330 = vrot.slane %v329, 4
  %v332 = vshll.u32 %v59, 16
  %v334 = vrot.slane %v332, 5
  %v335 = vsel %vm125, %v330, %v334
  %v337 = vshrl.u32 %v60, 16
  %v339 = vrot.slane %v337, 4
  %v340 = vshll.u32 %v60, 16
  %v342 = vrot.slane %v340, 5
  %v343 = vor.u32 %v339, %v342
  %v344 = vrot.slane %v343, 4
  %v346 = vshll.u32 %v61, 16
  %v348 = vrot.slane %v346, 5
  %v349 = vsel %vm125, %v344, %v348
  %v350 = vunpack.c.l.b16 %v139
  %v351 = vunpack.c.l.b16 %v153
  %v352 = vunpack.c.l.b16 %v167
  %v353 = vunpack.c.l.b16 %v181
  %v354 = vunpack.c.l.b16 %v195
  %v355 = vunpack.c.l.b16 %v209
  %v356 = vunpack.c.l.b16 %v223
  %v357 = vunpack.c.l.b16 %v237
  %v358 = vunpack.c.l.b16 %v251
  %v359 = vunpack.c.l.b16 %v265
  %v360 = vunpack.c.l.b16 %v279
  %v361 = vunpack.c.l.b16 %v293
  %v362 = vunpack.c.l.b16 %v307
  %v363 = vunpack.c.l.b16 %v321
  %v364 = vunpack.c.l.b16 %v335
  %v365 = vunpack.c.l.b16 %v349
  %v366 = vpack.c.b16 %v351, %v350
  %v367 = vpack.c.b16 %v353, %v352
  %v368 = vpack.c.b16 %v355, %v354
  %v369 = vpack.c.b16 %v357, %v356
  %v370 = vpack.c.b16 %v359, %v358
  %v371 = vpack.c.b16 %v361, %v360
  %v372 = vpack.c.b16 %v363, %v362
  %v373 = vpack.c.b16 %v365, %v364
  %374 = vrot.lane.b32.xlu0 %v366, 8
  %v375 = vpop.permute.xlu0 %374
  %376 = vrot.lane.b32.xlu0 %v367, 8
  %v377 = vpop.permute.xlu0 %376
  %378 = vrot.lane.b32.xlu0 %v368, 8
  %v379 = vpop.permute.xlu0 %378
  %380 = vrot.lane.b32.xlu0 %v369, 8
  %v381 = vpop.permute.xlu0 %380
  %382 = vrot.lane.b32.xlu0 %v370, 8
  %v383 = vpop.permute.xlu0 %382
  %384 = vrot.lane.b32.xlu0 %v371, 8
  %v385 = vpop.permute.xlu0 %384
  %386 = vrot.lane.b32.xlu0 %v372, 8
  %v387 = vpop.permute.xlu0 %386
  %388 = vrot.lane.b32.xlu0 %v373, 8
  %v389 = vpop.permute.xlu0 %388
  %vm398 = vcmask 130112
  %399 = vst.msk [vmem:[#allocation2] sm:$0xff] %vm398, %v375
  %400 = vst.msk [vmem:[#allocation2 + $0x8] sm:$0xff] %vm398, %v377
  %401 = vst.msk [vmem:[#allocation2 + $0x10] sm:$0xff] %vm398, %v379
  %402 = vst.msk [vmem:[#allocation2 + $0x18] sm:$0xff] %vm398, %v381
  %403 = vst.msk [vmem:[#allocation2 + $0x20] sm:$0xff] %vm398, %v383
  %404 = vst.msk [vmem:[#allocation2 + $0x28] sm:$0xff] %vm398, %v385
  %405 = vst.msk [vmem:[#allocation2 + $0x30] sm:$0xff] %vm398, %v387
  %406 = vst.msk [vmem:[#allocation2 + $0x38] sm:$0xff] %vm398, %v389
  %vm423 = vcmask 1042432
  %vm424 = vcmask 1046532
  %vm425 = vmor %vm423, %vm424
  %v426 = vrot.slane %v26, 5
  %v427 = vrot.slane %v426, 4
  %v428 = vrot.slane %v27, 5
  %v429 = vsel %vm425, %v427, %v428
  %v430 = vrot.slane %v28, 5
  %v431 = vrot.slane %v430, 4
  %v432 = vrot.slane %v29, 5
  %v433 = vsel %vm425, %v431, %v432
  %v434 = vrot.slane %v30, 5
  %v435 = vrot.slane %v434, 4
  %v436 = vrot.slane %v31, 5
  %v437 = vsel %vm425, %v435, %v436
  %v438 = vrot.slane %v32, 5
  %v439 = vrot.slane %v438, 4
  %v440 = vrot.slane %v33, 5
  %v441 = vsel %vm425, %v439, %v440
  %v442 = vrot.slane %v34, 5
  %v443 = vrot.slane %v442, 4
  %v444 = vrot.slane %v35, 5
  %v445 = vsel %vm425, %v443, %v444
  %v446 = vrot.slane %v36, 5
  %v447 = vrot.slane %v446, 4
  %v448 = vrot.slane %v37, 5
  %v449 = vsel %vm425, %v447, %v448
  %v450 = vrot.slane %v38, 5
  %v451 = vrot.slane %v450, 4
  %v452 = vrot.slane %v39, 5
  %v453 = vsel %vm425, %v451, %v452
  %v454 = vrot.slane %v40, 5
  %v455 = vrot.slane %v454, 4
  %v456 = vrot.slane %v41, 5
  %v457 = vsel %vm425, %v455, %v456
  %v458 = vrot.slane %v46, 5
  %v459 = vrot.slane %v458, 4
  %v460 = vrot.slane %v47, 5
  %v461 = vsel %vm425, %v459, %v460
  %v462 = vrot.slane %v48, 5
  %v463 = vrot.slane %v462, 4
  %v464 = vrot.slane %v49, 5
  %v465 = vsel %vm425, %v463, %v464
  %v466 = vrot.slane %v50, 5
  %v467 = vrot.slane %v466, 4
  %v468 = vrot.slane %v51, 5
  %v469 = vsel %vm425, %v467, %v468
  %v470 = vrot.slane %v52, 5
  %v471 = vrot.slane %v470, 4
  %v472 = vrot.slane %v53, 5
  %v473 = vsel %vm425, %v471, %v472
  %v474 = vrot.slane %v54, 5
  %v475 = vrot.slane %v474, 4
  %v476 = vrot.slane %v55, 5
  %v477 = vsel %vm425, %v475, %v476
  %v478 = vrot.slane %v56, 5
  %v479 = vrot.slane %v478, 4
  %v480 = vrot.slane %v57, 5
  %v481 = vsel %vm425, %v479, %v480
  %v482 = vrot.slane %v58, 5
  %v483 = vrot.slane %v482, 4
  %v484 = vrot.slane %v59, 5
  %v485 = vsel %vm425, %v483, %v484
  %v486 = vrot.slane %v60, 5
  %v487 = vrot.slane %v486, 4
  %v488 = vrot.slane %v61, 5
  %v489 = vsel %vm425, %v487, %v488
  %v490 = vunpack.c.l.b16 %v429
  %v491 = vunpack.c.l.b16 %v433
  %v492 = vunpack.c.l.b16 %v437
  %v493 = vunpack.c.l.b16 %v441
  %v494 = vunpack.c.l.b16 %v445
  %v495 = vunpack.c.l.b16 %v449
  %v496 = vunpack.c.l.b16 %v453
  %v497 = vunpack.c.l.b16 %v457
  %v498 = vunpack.c.l.b16 %v461
  %v499 = vunpack.c.l.b16 %v465
  %v500 = vunpack.c.l.b16 %v469
  %v501 = vunpack.c.l.b16 %v473
  %v502 = vunpack.c.l.b16 %v477
  %v503 = vunpack.c.l.b16 %v481
  %v504 = vunpack.c.l.b16 %v485
  %v505 = vunpack.c.l.b16 %v489
  %v506 = vpack.c.b16 %v491, %v490
  %v507 = vpack.c.b16 %v493, %v492
  %v508 = vpack.c.b16 %v495, %v494
  %v509 = vpack.c.b16 %v497, %v496
  %v510 = vpack.c.b16 %v499, %v498
  %v511 = vpack.c.b16 %v501, %v500
  %v512 = vpack.c.b16 %v503, %v502
  %v513 = vpack.c.b16 %v505, %v504
  %514 = vrot.lane.b32.xlu0 %v506, 16
  %v515 = vpop.permute.xlu0 %514
  %516 = vrot.lane.b32.xlu0 %v507, 16
  %v517 = vpop.permute.xlu0 %516
  %518 = vrot.lane.b32.xlu0 %v508, 16
  %v519 = vpop.permute.xlu0 %518
  %520 = vrot.lane.b32.xlu0 %v509, 16
  %v521 = vpop.permute.xlu0 %520
  %522 = vrot.lane.b32.xlu0 %v510, 16
  %v523 = vpop.permute.xlu0 %522
  %524 = vrot.lane.b32.xlu0 %v511, 16
  %v525 = vpop.permute.xlu0 %524
  %526 = vrot.lane.b32.xlu0 %v512, 16
  %v527 = vpop.permute.xlu0 %526
  %528 = vrot.lane.b32.xlu0 %v513, 16
  %v529 = vpop.permute.xlu0 %528
  %vm538 = vcmask 195712
  %539 = vst.msk [vmem:[#allocation2] sm:$0xff] %vm538, %v515
  %540 = vst.msk [vmem:[#allocation2 + $0x8] sm:$0xff] %vm538, %v517
  %541 = vst.msk [vmem:[#allocation2 + $0x10] sm:$0xff] %vm538, %v519
  %542 = vst.msk [vmem:[#allocation2 + $0x18] sm:$0xff] %vm538, %v521
  %543 = vst.msk [vmem:[#allocation2 + $0x20] sm:$0xff] %vm538, %v523
  %544 = vst.msk [vmem:[#allocation2 + $0x28] sm:$0xff] %vm538, %v525
  %545 = vst.msk [vmem:[#allocation2 + $0x30] sm:$0xff] %vm538, %v527
  %546 = vst.msk [vmem:[#allocation2 + $0x38] sm:$0xff] %vm538, %v529
  %v549 = vunpack.c.l.b16 %v42
  %v550 = vunpack.c.l.b16 %v62
  %v551 = vpack.c.b16 %v84, %v83
  %v552 = vpack.c.b16 %v86, %v85
  %v553 = vpack.c.b16 %v88, %v87
  %v554 = vpack.c.b16 %v549, %v89
  %v555 = vpack.c.b16 %v92, %v91
  %v556 = vpack.c.b16 %v94, %v93
  %v557 = vpack.c.b16 %v96, %v95
  %v558 = vpack.c.b16 %v550, %v97
  %559 = vrot.lane.b32.xlu0 %v551, 24
  %v560 = vpop.permute.xlu0 %559
  %561 = vrot.lane.b32.xlu0 %v552, 24
  %v562 = vpop.permute.xlu0 %561
  %563 = vrot.lane.b32.xlu0 %v553, 24
  %v564 = vpop.permute.xlu0 %563
  %565 = vrot.lane.b32.xlu0 %v554, 24
  %v566 = vpop.permute.xlu0 %565
  %567 = vrot.lane.b32.xlu0 %v555, 24
  %v568 = vpop.permute.xlu0 %567
  %569 = vrot.lane.b32.xlu0 %v556, 24
  %v570 = vpop.permute.xlu0 %569
  %571 = vrot.lane.b32.xlu0 %v557, 24
  %v572 = vpop.permute.xlu0 %571
  %573 = vrot.lane.b32.xlu0 %v558, 24
  %v574 = vpop.permute.xlu0 %573
  %vm583 = vcmask 261312
  %584 = vst.msk [vmem:[#allocation2] sm:$0xff] %vm583, %v560
  %585 = vst.msk [vmem:[#allocation2 + $0x8] sm:$0xff] %vm583, %v562
  %586 = vst.msk [vmem:[#allocation2 + $0x10] sm:$0xff] %vm583, %v564
  %587 = vst.msk [vmem:[#allocation2 + $0x18] sm:$0xff] %vm583, %v566
  %588 = vst.msk [vmem:[#allocation2 + $0x20] sm:$0xff] %vm583, %v568
  %589 = vst.msk [vmem:[#allocation2 + $0x28] sm:$0xff] %vm583, %v570
  %590 = vst.msk [vmem:[#allocation2 + $0x30] sm:$0xff] %vm583, %v572
  %591 = vst.msk [vmem:[#allocation2 + $0x38] sm:$0xff] %vm583, %v574
  %v593 = vshrl.u32 %v42, 16
  %v595 = vrot.slane %v593, 4
  %v596 = vshll.u32 %v42, 16
  %v598 = vrot.slane %v596, 5
  %v599 = vor.u32 %v595, %v598
  %v600 = vrot.slane %v599, 4
  %v602 = vshll.u32 %v43, 16
  %v604 = vrot.slane %v602, 5
  %v605 = vsel %vm125, %v600, %v604
  %v607 = vshrl.u32 %v62, 16
  %v609 = vrot.slane %v607, 4
  %v610 = vshll.u32 %v62, 16
  %v612 = vrot.slane %v610, 5
  %v613 = vor.u32 %v609, %v612
  %v614 = vrot.slane %v613, 4
  %v616 = vshll.u32 %v63, 16
  %v618 = vrot.slane %v616, 5
  %v619 = vsel %vm125, %v614, %v618
  %v620 = vunpack.c.l.b16 %v605
  %v621 = vunpack.c.l.b16 %v619
  %v622 = vpack.c.b16 %v352, %v351
  %v623 = vpack.c.b16 %v354, %v353
  %v624 = vpack.c.b16 %v356, %v355
  %v625 = vpack.c.b16 %v620, %v357
  %v626 = vpack.c.b16 %v360, %v359
  %v627 = vpack.c.b16 %v362, %v361
  %v628 = vpack.c.b16 %v364, %v363
  %v629 = vpack.c.b16 %v621, %v365
  %630 = vrot.lane.b32.xlu0 %v622, 32
  %v631 = vpop.permute.xlu0 %630
  %632 = vrot.lane.b32.xlu0 %v623, 32
  %v633 = vpop.permute.xlu0 %632
  %634 = vrot.lane.b32.xlu0 %v624, 32
  %v635 = vpop.permute.xlu0 %634
  %636 = vrot.lane.b32.xlu0 %v625, 32
  %v637 = vpop.permute.xlu0 %636
  %638 = vrot.lane.b32.xlu0 %v626, 32
  %v639 = vpop.permute.xlu0 %638
  %640 = vrot.lane.b32.xlu0 %v627, 32
  %v641 = vpop.permute.xlu0 %640
  %642 = vrot.lane.b32.xlu0 %v628, 32
  %v643 = vpop.permute.xlu0 %642
  %644 = vrot.lane.b32.xlu0 %v629, 32
  %v645 = vpop.permute.xlu0 %644
  %vm654 = vcmask 326912
  %655 = vst.msk [vmem:[#allocation2] sm:$0xff] %vm654, %v631
  %656 = vst.msk [vmem:[#allocation2 + $0x8] sm:$0xff] %vm654, %v633
  %657 = vst.msk [vmem:[#allocation2 + $0x10] sm:$0xff] %vm654, %v635
  %658 = vst.msk [vmem:[#allocation2 + $0x18] sm:$0xff] %vm654, %v637
  %659 = vst.msk [vmem:[#allocation2 + $0x20] sm:$0xff] %vm654, %v639
  %660 = vst.msk [vmem:[#allocation2 + $0x28] sm:$0xff] %vm654, %v641
  %661 = vst.msk [vmem:[#allocation2 + $0x30] sm:$0xff] %vm654, %v643
  %662 = vst.msk [vmem:[#allocation2 + $0x38] sm:$0xff] %vm654, %v645
  %v665 = vrot.slane %v42, 5
  %v666 = vrot.slane %v665, 4
  %v667 = vrot.slane %v43, 5
  %v668 = vsel %vm425, %v666, %v667
  %v669 = vrot.slane %v62, 5
  %v670 = vrot.slane %v669, 4
  %v671 = vrot.slane %v63, 5
  %v672 = vsel %vm425, %v670, %v671
  %v673 = vunpack.c.l.b16 %v668
  %v674 = vunpack.c.l.b16 %v672
  %v675 = vpack.c.b16 %v492, %v491
  %v676 = vpack.c.b16 %v494, %v493
  %v677 = vpack.c.b16 %v496, %v495
  %v678 = vpack.c.b16 %v673, %v497
  %v679 = vpack.c.b16 %v500, %v499
  %v680 = vpack.c.b16 %v502, %v501
  %v681 = vpack.c.b16 %v504, %v503
  %v682 = vpack.c.b16 %v674, %v505
  %683 = vrot.lane.b32.xlu0 %v675, 40
  %v684 = vpop.permute.xlu0 %683
  %685 = vrot.lane.b32.xlu0 %v676, 40
  %v686 = vpop.permute.xlu0 %685
  %687 = vrot.lane.b32.xlu0 %v677, 40
  %v688 = vpop.permute.xlu0 %687
  %689 = vrot.lane.b32.xlu0 %v678, 40
  %v690 = vpop.permute.xlu0 %689
  %691 = vrot.lane.b32.xlu0 %v679, 40
  %v692 = vpop.permute.xlu0 %691
  %693 = vrot.lane.b32.xlu0 %v680, 40
  %v694 = vpop.permute.xlu0 %693
  %695 = vrot.lane.b32.xlu0 %v681, 40
  %v696 = vpop.permute.xlu0 %695
  %697 = vrot.lane.b32.xlu0 %v682, 40
  %v698 = vpop.permute.xlu0 %697
  %vm707 = vcmask 392512
  %708 = vst.msk [vmem:[#allocation2] sm:$0xff] %vm707, %v684
  %709 = vst.msk [vmem:[#allocation2 + $0x8] sm:$0xff] %vm707, %v686
  %710 = vst.msk [vmem:[#allocation2 + $0x10] sm:$0xff] %vm707, %v688
  %711 = vst.msk [vmem:[#allocation2 + $0x18] sm:$0xff] %vm707, %v690
  %712 = vst.msk [vmem:[#allocation2 + $0x20] sm:$0xff] %vm707, %v692
  %713 = vst.msk [vmem:[#allocation2 + $0x28] sm:$0xff] %vm707, %v694
  %714 = vst.msk [vmem:[#allocation2 + $0x30] sm:$0xff] %vm707, %v696
  %715 = vst.msk [vmem:[#allocation2 + $0x38] sm:$0xff] %vm707, %v698
  %v718 = vunpack.c.l.b16 %v44
  %v719 = vunpack.c.l.b16 %v64
  %v720 = vpack.c.b16 %v718, %v549
  %v721 = vpack.c.b16 %v719, %v550
  %722 = vrot.lane.b32.xlu0 %v99, 48
  %v723 = vpop.permute.xlu0 %722
  %724 = vrot.lane.b32.xlu0 %v100, 48
  %v725 = vpop.permute.xlu0 %724
  %726 = vrot.lane.b32.xlu0 %v101, 48
  %v727 = vpop.permute.xlu0 %726
  %728 = vrot.lane.b32.xlu0 %v720, 48
  %v729 = vpop.permute.xlu0 %728
  %730 = vrot.lane.b32.xlu0 %v103, 48
  %v731 = vpop.permute.xlu0 %730
  %732 = vrot.lane.b32.xlu0 %v104, 48
  %v733 = vpop.permute.xlu0 %732
  %734 = vrot.lane.b32.xlu0 %v105, 48
  %v735 = vpop.permute.xlu0 %734
  %736 = vrot.lane.b32.xlu0 %v721, 48
  %v737 = vpop.permute.xlu0 %736
  %vm746 = vcmask 458112
  %747 = vst.msk [vmem:[#allocation2] sm:$0xff] %vm746, %v723
  %748 = vst.msk [vmem:[#allocation2 + $0x8] sm:$0xff] %vm746, %v725
  %749 = vst.msk [vmem:[#allocation2 + $0x10] sm:$0xff] %vm746, %v727
  %750 = vst.msk [vmem:[#allocation2 + $0x18] sm:$0xff] %vm746, %v729
  %751 = vst.msk [vmem:[#allocation2 + $0x20] sm:$0xff] %vm746, %v731
  %752 = vst.msk [vmem:[#allocation2 + $0x28] sm:$0xff] %vm746, %v733
  %753 = vst.msk [vmem:[#allocation2 + $0x30] sm:$0xff] %vm746, %v735
  %754 = vst.msk [vmem:[#allocation2 + $0x38] sm:$0xff] %vm746, %v737
  %v756 = vshrl.u32 %v44, 16
  %v758 = vrot.slane %v756, 4
  %v759 = vshll.u32 %v44, 16
  %v761 = vrot.slane %v759, 5
  %v762 = vor.u32 %v758, %v761
  %v763 = vrot.slane %v762, 4
  %v765 = vshll.u32 %v45, 16
  %v767 = vrot.slane %v765, 5
  %v768 = vsel %vm125, %v763, %v767
  %v770 = vshrl.u32 %v64, 16
  %v772 = vrot.slane %v770, 4
  %v773 = vshll.u32 %v64, 16
  %v775 = vrot.slane %v773, 5
  %v776 = vor.u32 %v772, %v775
  %v777 = vrot.slane %v776, 4
  %v779 = vshll.u32 %v65, 16
  %v781 = vrot.slane %v779, 5
  %v782 = vsel %vm125, %v777, %v781
  %v783 = vunpack.c.l.b16 %v768
  %v784 = vunpack.c.l.b16 %v782
  %v785 = vpack.c.b16 %v783, %v620
  %v786 = vpack.c.b16 %v784, %v621
  %787 = vrot.lane.b32.xlu0 %v367, 56
  %v788 = vpop.permute.xlu0 %787
  %789 = vrot.lane.b32.xlu0 %v368, 56
  %v790 = vpop.permute.xlu0 %789
  %791 = vrot.lane.b32.xlu0 %v369, 56
  %v792 = vpop.permute.xlu0 %791
  %793 = vrot.lane.b32.xlu0 %v785, 56
  %v794 = vpop.permute.xlu0 %793
  %795 = vrot.lane.b32.xlu0 %v371, 56
  %v796 = vpop.permute.xlu0 %795
  %797 = vrot.lane.b32.xlu0 %v372, 56
  %v798 = vpop.permute.xlu0 %797
  %799 = vrot.lane.b32.xlu0 %v373, 56
  %v800 = vpop.permute.xlu0 %799
  %801 = vrot.lane.b32.xlu0 %v786, 56
  %v802 = vpop.permute.xlu0 %801
  %vm811 = vcmask 523712
  %812 = vst.msk [vmem:[#allocation2] sm:$0xff] %vm811, %v788
  %813 = vst.msk [vmem:[#allocation2 + $0x8] sm:$0xff] %vm811, %v790
  %814 = vst.msk [vmem:[#allocation2 + $0x10] sm:$0xff] %vm811, %v792
  %815 = vst.msk [vmem:[#allocation2 + $0x18] sm:$0xff] %vm811, %v794
  %816 = vst.msk [vmem:[#allocation2 + $0x20] sm:$0xff] %vm811, %v796
  %817 = vst.msk [vmem:[#allocation2 + $0x28] sm:$0xff] %vm811, %v798
  %818 = vst.msk [vmem:[#allocation2 + $0x30] sm:$0xff] %vm811, %v800
  %819 = vst.msk [vmem:[#allocation2 + $0x38] sm:$0xff] %vm811, %v802
  %v822 = vrot.slane %v44, 5
  %v823 = vrot.slane %v822, 4
  %v824 = vrot.slane %v45, 5
  %v825 = vsel %vm425, %v823, %v824
  %v826 = vrot.slane %v64, 5
  %v827 = vrot.slane %v826, 4
  %v828 = vrot.slane %v65, 5
  %v829 = vsel %vm425, %v827, %v828
  %v830 = vunpack.c.l.b16 %v825
  %v831 = vunpack.c.l.b16 %v829
  %v832 = vpack.c.b16 %v830, %v673
  %v833 = vpack.c.b16 %v831, %v674
  %834 = vrot.lane.b32.xlu0 %v507, 64
  %v835 = vpop.permute.xlu0 %834
  %836 = vrot.lane.b32.xlu0 %v508, 64
  %v837 = vpop.permute.xlu0 %836
  %838 = vrot.lane.b32.xlu0 %v509, 64
  %v839 = vpop.permute.xlu0 %838
  %840 = vrot.lane.b32.xlu0 %v832, 64
  %v841 = vpop.permute.xlu0 %840
  %842 = vrot.lane.b32.xlu0 %v511, 64
  %v843 = vpop.permute.xlu0 %842
  %844 = vrot.lane.b32.xlu0 %v512, 64
  %v845 = vpop.permute.xlu0 %844
  %846 = vrot.lane.b32.xlu0 %v513, 64
  %v847 = vpop.permute.xlu0 %846
  %848 = vrot.lane.b32.xlu0 %v833, 64
  %v849 = vpop.permute.xlu0 %848
  %vm858 = vcmask 589312
  %859 = vst.msk [vmem:[#allocation2] sm:$0xff] %vm858, %v835
  %860 = vst.msk [vmem:[#allocation2 + $0x8] sm:$0xff] %vm858, %v837
  %861 = vst.msk [vmem:[#allocation2 + $0x10] sm:$0xff] %vm858, %v839
  %862 = vst.msk [vmem:[#allocation2 + $0x18] sm:$0xff] %vm858, %v841
  %863 = vst.msk [vmem:[#allocation2 + $0x20] sm:$0xff] %vm858, %v843
  %864 = vst.msk [vmem:[#allocation2 + $0x28] sm:$0xff] %vm858, %v845
  %865 = vst.msk [vmem:[#allocation2 + $0x30] sm:$0xff] %vm858, %v847
  %866 = vst.msk [vmem:[#allocation2 + $0x38] sm:$0xff] %vm858, %v849
  %v867 = vld [vmem:[#allocation2] sm:$0xff]
  %v868 = vld [vmem:[#allocation2 + $0x8] sm:$0xff]
  %v869 = vld [vmem:[#allocation2 + $0x10] sm:$0xff]
  %v870 = vld [vmem:[#allocation2 + $0x18] sm:$0xff]
  %v871 = vld [vmem:[#allocation2 + $0x20] sm:$0xff]
  %v872 = vld [vmem:[#allocation2 + $0x28] sm:$0xff]
  %v873 = vld [vmem:[#allocation2 + $0x30] sm:$0xff]
  %v874 = vld [vmem:[#allocation2 + $0x38] sm:$0xff]
  %v875 = vld [vmem:[%s1] sm:$0xf]
  %v876 = vld [vmem:[%s1 + $0x4] sm:$0xf]
  %v877 = vld [vmem:[%s1 + $0x8] sm:$0xf]
  %v878 = vld [vmem:[%s1 + $0xc] sm:$0xf]
  %v879 = vld [vmem:[%s1 + $0x10] sm:$0xf]
  %v880 = vld [vmem:[%s1 + $0x14] sm:$0xf]
  %v881 = vld [vmem:[%s1 + $0x18] sm:$0xf]
  %v882 = vld [vmem:[%s1 + $0x1c] sm:$0xf]
  %v883 = vld [vmem:[%s1 + $0x20] sm:$0xf]
  %v884 = vld [vmem:[%s1 + $0x24] sm:$0xf]
  %v885 = vld [vmem:[%s1 + $0x28] sm:$0xf]
  %v886 = vld [vmem:[%s1 + $0x2c] sm:$0xf]
  %v887 = vld [vmem:[%s1 + $0x30] sm:$0xf]
  %v888 = vld [vmem:[%s1 + $0x34] sm:$0xf]
  %v889 = vld [vmem:[%s1 + $0x38] sm:$0xf]
  %v890 = vld [vmem:[%s1 + $0x3c] sm:$0xf]
  %v907 = vunpack.c.l.b16 %v875
  %v908 = vunpack.c.l.b16 %v876
  %v909 = vunpack.c.l.b16 %v877
  %v910 = vunpack.c.l.b16 %v878
  %v911 = vunpack.c.l.b16 %v879
  %v912 = vunpack.c.l.b16 %v880
  %v913 = vunpack.c.l.b16 %v881
  %v914 = vunpack.c.l.b16 %v882
  %v915 = vunpack.c.l.b16 %v883
  %v916 = vunpack.c.l.b16 %v884
  %v917 = vunpack.c.l.b16 %v885
  %v918 = vunpack.c.l.b16 %v886
  %v919 = vunpack.c.l.b16 %v887
  %v920 = vunpack.c.l.b16 %v888
  %v921 = vunpack.c.l.b16 %v889
  %v922 = vunpack.c.l.b16 %v890
  %v923 = vpack.c.b16 %v908, %v907
  %v924 = vpack.c.b16 %v910, %v909
  %v925 = vpack.c.b16 %v912, %v911
  %v926 = vpack.c.b16 %v914, %v913
  %v927 = vpack.c.b16 %v916, %v915
  %v928 = vpack.c.b16 %v918, %v917
  %v929 = vpack.c.b16 %v920, %v919
  %v930 = vpack.c.b16 %v922, %v921
  %939 = vmatprep.subr.bf16.mxu0 0
  %940 = vmatpush1.bf16.msra.mxu0 %v923
  %941 = vmatprep.subr.bf16.mxu0 0
  %942 = vmatpush1.bf16.msra.mxu0 %v924
  %943 = vmatprep.subr.bf16.mxu0 0
  %944 = vmatpush1.bf16.msra.mxu0 %v925
  %945 = vmatprep.subr.bf16.mxu0 0
  %946 = vmatpush1.bf16.msra.mxu0 %v926
  %947 = vmatprep.subr.bf16.mxu0 0
  %948 = vmatpush1.bf16.msra.mxu0 %v927
  %949 = vmatprep.subr.bf16.mxu0 0
  %950 = vmatpush1.bf16.msra.mxu0 %v928
  %951 = vmatprep.subr.bf16.mxu0 0
  %952 = vmatpush1.bf16.msra.mxu0 %v929
  %953 = vmatprep.subr.bf16.mxu0 0
  %954 = vmatpush1.bf16.msra.mxu0 %v930
  %955 = vmatprep.subr.bf16.mxu0 0
  %956 = vmatpush1.bf16.msra.mxu0 0
  %957 = vmatprep.subr.bf16.mxu0 0
  %958 = vmatpush1.bf16.msra.mxu0 0
  %959 = vmatprep.subr.bf16.mxu0 0
  %960 = vmatpush1.bf16.msra.mxu0 0
  %961 = vmatprep.subr.bf16.mxu0 0
  %962 = vmatpush1.bf16.msra.mxu0 0
  %963 = vmatprep.subr.bf16.mxu0 0
  %964 = vmatpush1.bf16.msra.mxu0 0
  %965 = vmatprep.subr.bf16.mxu0 0
  %966 = vmatpush1.bf16.msra.mxu0 0
  %967 = vmatprep.subr.bf16.mxu0 0
  %968 = vmatpush1.bf16.msra.mxu0 0
  %969 = vmatprep.subr.bf16.mxu0 0
  %970 = vmatpush1.bf16.msra.mxu0 0
  %971 = vmatprep.mubr.bf16.mxu0 0
  %972 = vmatmul.mubr.bf16.gmra.mrb[0].mxu0 %v867
  %v973 = vpop.f32.mrb[0].mxu0
  %v974 = vadd.f32 0.0, %v973
  %v975 = vpop.f32.mrb[0].mxu0
  %v976 = vpop.f32.mrb[0].mxu0
  %v977 = vadd.f32 0.0, %v976
  %v978 = vpop.f32.mrb[0].mxu0
  %979 = vmatprep.mubr.bf16.mxu0 0
  %980 = vmatmul.mubr.bf16.gmra.mrb[0].mxu0 %v868
  %v981 = vpop.f32.mrb[0].mxu0
  %v982 = vadd.f32 0.0, %v981
  %v983 = vpop.f32.mrb[0].mxu0
  %v984 = vpop.f32.mrb[0].mxu0
  %v985 = vadd.f32 0.0, %v984
  %v986 = vpop.f32.mrb[0].mxu0
  %987 = vmatprep.mubr.bf16.mxu0 0
  %988 = vmatmul.mubr.bf16.gmra.mrb[0].mxu0 %v869
  %v989 = vpop.f32.mrb[0].mxu0
  %v990 = vadd.f32 0.0, %v989
  %v991 = vpop.f32.mrb[0].mxu0
  %v992 = vpop.f32.mrb[0].mxu0
  %v993 = vadd.f32 0.0, %v992
  %v994 = vpop.f32.mrb[0].mxu0
  %995 = vmatprep.mubr.bf16.mxu0 0
  %996 = vmatmul.mubr.bf16.gmra.mrb[0].mxu0 %v870
  %v997 = vpop.f32.mrb[0].mxu0
  %v998 = vadd.f32 0.0, %v997
  %v999 = vpop.f32.mrb[0].mxu0
  %v1000 = vpop.f32.mrb[0].mxu0
  %v1001 = vadd.f32 0.0, %v1000
  %v1002 = vpop.f32.mrb[0].mxu0
  %1003 = vmatprep.mubr.bf16.mxu0 0
  %1004 = vmatmul.mubr.bf16.gmra.mrb[0].mxu0 %v871
  %v1005 = vpop.f32.mrb[0].mxu0
  %v1006 = vadd.f32 0.0, %v1005
  %v1007 = vpop.f32.mrb[0].mxu0
  %v1008 = vpop.f32.mrb[0].mxu0
  %v1009 = vadd.f32 0.0, %v1008
  %v1010 = vpop.f32.mrb[0].mxu0
  %1011 = vmatprep.mubr.bf16.mxu0 0
  %1012 = vmatmul.mubr.bf16.gmra.mrb[0].mxu0 %v872
  %v1013 = vpop.f32.mrb[0].mxu0
  %v1014 = vadd.f32 0.0, %v1013
  %v1015 = vpop.f32.mrb[0].mxu0
  %v1016 = vpop.f32.mrb[0].mxu0
  %v1017 = vadd.f32 0.0, %v1016
  %v1018 = vpop.f32.mrb[0].mxu0
  %1019 = vmatprep.mubr.bf16.mxu0 0
  %1020 = vmatmul.mubr.bf16.gmra.mrb[0].mxu0 %v873
  %v1021 = vpop.f32.mrb[0].mxu0
  %v1022 = vadd.f32 0.0, %v1021
  %v1023 = vpop.f32.mrb[0].mxu0
  %v1024 = vpop.f32.mrb[0].mxu0
  %v1025 = vadd.f32 0.0, %v1024
  %v1026 = vpop.f32.mrb[0].mxu0
  %1027 = vmatprep.mubr.bf16.mxu0 0
  %1028 = vmatmul.mubr.bf16.gmra.mrb[0].mxu0 %v874
  %v1029 = vpop.f32.mrb[0].mxu0
  %v1030 = vadd.f32 0.0, %v1029
  %v1031 = vpop.f32.mrb[0].mxu0
  %v1032 = vpop.f32.mrb[0].mxu0
  %v1033 = vadd.f32 0.0, %v1032
  %v1034 = vpop.f32.mrb[0].mxu0
  %1035 = vdwg.mxu0
  %vm1036 = vcmask 130048
  %v1037 = vsel %vm1036, %v974, 0.0
  %v1038 = vsel %vm1036, %v977, 0.0
  %v1039 = vadd.f32 %v1037, %v1038
  %v1040 = vsel %vm1036, %v982, 0.0
  %v1041 = vadd.f32 %v1039, %v1040
  %v1042 = vsel %vm1036, %v985, 0.0
  %v1043 = vadd.f32 %v1041, %v1042
  %v1044 = vsel %vm1036, %v990, 0.0
  %v1045 = vadd.f32 %v1043, %v1044
  %v1046 = vsel %vm1036, %v993, 0.0
  %v1047 = vadd.f32 %v1045, %v1046
  %v1048 = vsel %vm1036, %v998, 0.0
  %v1049 = vadd.f32 %v1047, %v1048
  %v1050 = vsel %vm1036, %v1001, 0.0
  %v1051 = vadd.f32 %v1049, %v1050
  %v1052 = vsel %vm1036, %v1006, 0.0
  %v1053 = vadd.f32 %v1051, %v1052
  %v1054 = vsel %vm1036, %v1009, 0.0
  %v1055 = vadd.f32 %v1053, %v1054
  %v1056 = vsel %vm1036, %v1014, 0.0
  %v1057 = vadd.f32 %v1055, %v1056
  %v1058 = vsel %vm1036, %v1017, 0.0
  %v1059 = vadd.f32 %v1057, %v1058
  %v1060 = vsel %vm1036, %v1022, 0.0
  %v1061 = vadd.f32 %v1059, %v1060
  %v1062 = vsel %vm1036, %v1025, 0.0
  %v1063 = vadd.f32 %v1061, %v1062
  %v1064 = vsel %vm1036, %v1030, 0.0
  %v1065 = vadd.f32 %v1063, %v1064
  %v1066 = vsel %vm1036, %v1033, 0.0
  %v1067 = vadd.f32 %v1065, %v1066
  %v1068 = vrot.slane %v1067, 4
  %v1069 = vadd.f32 %v1067, %v1068
  %v1070 = vrot.slane %v1069, 2
  %v1071 = vadd.f32 %v1069, %v1070
  %v1072 = vrot.slane %v1071, 1
  %v1073 = vadd.f32 %v1071, %v1072
  %v1074 = vmul.f32 %v1073, 0.0078125
  %v1075 = vmul.f32 %v974, %v974
  %v1076 = vmul.f32 %v977, %v977
  %v1077 = vmul.f32 %v982, %v982
  %v1078 = vmul.f32 %v985, %v985
  %v1079 = vmul.f32 %v990, %v990
  %v1080 = vmul.f32 %v993, %v993
  %v1081 = vmul.f32 %v998, %v998
  %v1082 = vmul.f32 %v1001, %v1001
  %v1083 = vmul.f32 %v1006, %v1006
  %v1084 = vmul.f32 %v1009, %v1009
  %v1085 = vmul.f32 %v1014, %v1014
  %v1086 = vmul.f32 %v1017, %v1017
  %v1087 = vmul.f32 %v1022, %v1022
  %v1088 = vmul.f32 %v1025, %v1025
  %v1089 = vmul.f32 %v1030, %v1030
  %v1090 = vmul.f32 %v1033, %v1033
  %v1091 = vsel %vm1036, %v1075, 0.0
  %v1092 = vsel %vm1036, %v1076, 0.0
  %v1093 = vadd.f32 %v1091, %v1092
  %v1094 = vsel %vm1036, %v1077, 0.0
  %v1095 = vadd.f32 %v1093, %v1094
  %v1096 = vsel %vm1036, %v1078, 0.0
  %v1097 = vadd.f32 %v1095, %v1096
  %v1098 = vsel %vm1036, %v1079, 0.0
  %v1099 = vadd.f32 %v1097, %v1098
  %v1100 = vsel %vm1036, %v1080, 0.0
  %v1101 = vadd.f32 %v1099, %v1100
  %v1102 = vsel %vm1036, %v1081, 0.0
  %v1103 = vadd.f32 %v1101, %v1102
  %v1104 = vsel %vm1036, %v1082, 0.0
  %v1105 = vadd.f32 %v1103, %v1104
  %v1106 = vsel %vm1036, %v1083, 0.0
  %v1107 = vadd.f32 %v1105, %v1106
  %v1108 = vsel %vm1036, %v1084, 0.0
  %v1109 = vadd.f32 %v1107, %v1108
  %v1110 = vsel %vm1036, %v1085, 0.0
  %v1111 = vadd.f32 %v1109, %v1110
  %v1112 = vsel %vm1036, %v1086, 0.0
  %v1113 = vadd.f32 %v1111, %v1112
  %v1114 = vsel %vm1036, %v1087, 0.0
  %v1115 = vadd.f32 %v1113, %v1114
  %v1116 = vsel %vm1036, %v1088, 0.0
  %v1117 = vadd.f32 %v1115, %v1116
  %v1118 = vsel %vm1036, %v1089, 0.0
  %v1119 = vadd.f32 %v1117, %v1118
  %v1120 = vsel %vm1036, %v1090, 0.0
  %v1121 = vadd.f32 %v1119, %v1120
  %v1122 = vrot.slane %v1121, 4
  %v1123 = vadd.f32 %v1121, %v1122
  %v1124 = vrot.slane %v1123, 2
  %v1125 = vadd.f32 %v1123, %v1124
  %v1126 = vrot.slane %v1125, 1
  %v1127 = vadd.f32 %v1125, %v1126
  %v1128 = vmul.f32 %v1127, 0.0078125
  %v1129 = vmul.f32 %v1074, %v1074
  %v1130 = vsub.f32 %v1128, %v1129
  %v1131 = vadd.f32 %v1130, 1e-05
  %v1132 = vrsqrt.pop %v1131
  %v1133 = vld [vmem:[%s2] sm:$0x1]
  %v1134 = vmul.f32 %v1132, %v1133
  %v1135 = vsub.f32 %v974, %v1074
  %v1136 = vsub.f32 %v977, %v1074
  %v1137 = vsub.f32 %v982, %v1074
  %v1138 = vsub.f32 %v985, %v1074
  %v1139 = vsub.f32 %v990, %v1074
  %v1140 = vsub.f32 %v993, %v1074
  %v1141 = vsub.f32 %v998, %v1074
  %v1142 = vsub.f32 %v1001, %v1074
  %v1143 = vsub.f32 %v1006, %v1074
  %v1144 = vsub.f32 %v1009, %v1074
  %v1145 = vsub.f32 %v1014, %v1074
  %v1146 = vsub.f32 %v1017, %v1074
  %v1147 = vsub.f32 %v1022, %v1074
  %v1148 = vsub.f32 %v1025, %v1074
  %v1149 = vsub.f32 %v1030, %v1074
  %v1150 = vsub.f32 %v1033, %v1074
  %v1151 = vlaneseq
  %v1152 = vshrl.u32 %v1151, 7
  %v1153 = vsub.s32 0, %v1152
  %v1154 = vrot.slane %v1134, %v1153
  %v1155 = vmul.f32 %v1135, %v1154
  %v1156 = vmul.f32 %v1136, %v1154
  %v1157 = vmul.f32 %v1137, %v1154
  %v1158 = vmul.f32 %v1138, %v1154
  %v1159 = vmul.f32 %v1139, %v1154
  %v1160 = vmul.f32 %v1140, %v1154
  %v1161 = vmul.f32 %v1141, %v1154
  %v1162 = vmul.f32 %v1142, %v1154
  %v1163 = vmul.f32 %v1143, %v1154
  %v1164 = vmul.f32 %v1144, %v1154
  %v1165 = vmul.f32 %v1145, %v1154
  %v1166 = vmul.f32 %v1146, %v1154
  %v1167 = vmul.f32 %v1147, %v1154
  %v1168 = vmul.f32 %v1148, %v1154
  %v1169 = vmul.f32 %v1149, %v1154
  %v1170 = vmul.f32 %v1150, %v1154
  %v1171 = vld [vmem:[%s3] sm:$0x1]
  %v1173 = vlaneseq
  %v1174 = vshrl.u32 %v1173, 7
  %v1175 = vsub.s32 0, %v1174
  %v1176 = vrot.slane %v1171, %v1175
  %v1178 = vadd.f32 %v1155, %v1176
  %v1179 = vadd.f32 %v1156, %v1176
  %v1180 = vadd.f32 %v1157, %v1176
  %v1181 = vadd.f32 %v1158, %v1176
  %v1182 = vadd.f32 %v1159, %v1176
  %v1183 = vadd.f32 %v1160, %v1176
  %v1184 = vadd.f32 %v1161, %v1176
  %v1185 = vadd.f32 %v1162, %v1176
  %v1186 = vadd.f32 %v1163, %v1176
  %v1187 = vadd.f32 %v1164, %v1176
  %v1188 = vadd.f32 %v1165, %v1176
  %v1189 = vadd.f32 %v1166, %v1176
  %v1190 = vadd.f32 %v1167, %v1176
  %v1191 = vadd.f32 %v1168, %v1176
  %v1192 = vadd.f32 %v1169, %v1176
  %v1193 = vadd.f32 %v1170, %v1176
  %v1194 = vmax.f32 %v1178, 0.0
  %v1195 = vmax.f32 %v1179, 0.0
  %v1196 = vmax.f32 %v1180, 0.0
  %v1197 = vmax.f32 %v1181, 0.0
  %v1198 = vmax.f32 %v1182, 0.0
  %v1199 = vmax.f32 %v1183, 0.0
  %v1200 = vmax.f32 %v1184, 0.0
  %v1201 = vmax.f32 %v1185, 0.0
  %v1202 = vmax.f32 %v1186, 0.0
  %v1203 = vmax.f32 %v1187, 0.0
  %v1204 = vmax.f32 %v1188, 0.0
  %v1205 = vmax.f32 %v1189, 0.0
  %v1206 = vmax.f32 %v1190, 0.0
  %v1207 = vmax.f32 %v1191, 0.0
  %v1208 = vmax.f32 %v1192, 0.0
  %v1209 = vmax.f32 %v1193, 0.0
  %v1210 = vmax.f32 %v1194, %v1195
  %v1211 = vmax.f32 %v1196, %v1197
  %v1212 = vmax.f32 %v1198, %v1199
  %v1213 = vmax.f32 %v1200, %v1201
  %v1214 = vmax.f32 %v1202, %v1203
  %v1215 = vmax.f32 %v1204, %v1205
  %v1216 = vmax.f32 %v1206, %v1207
  %v1217 = vmax.f32 %v1208, %v1209
  %1218 = vst.msk [vmem:[#allocation3] sm:$0xff] %vm1036, %v1210
  %1219 = vst.msk [vmem:[#allocation3 + $0x8] sm:$0xff] %vm1036, %v1211
  %1220 = vst.msk [vmem:[#allocation3 + $0x10] sm:$0xff] %vm1036, %v1212
  %1221 = vst.msk [vmem:[#allocation3 + $0x18] sm:$0xff] %vm1036, %v1213
  %1222 = vst.msk [vmem:[#allocation3 + $0x20] sm:$0xff] %vm1036, %v1214
  %1223 = vst.msk [vmem:[#allocation3 + $0x28] sm:$0xff] %vm1036, %v1215
  %1224 = vst.msk [vmem:[#allocation3 + $0x30] sm:$0xff] %vm1036, %v1216
  %1225 = vst.msk [vmem:[#allocation3 + $0x38] sm:$0xff] %vm1036, %v1217
  %v1226 = vld [vmem:[#allocation3] ss:$2 sm:$0xff]
  %s1227 = scalar_lea.vmem [#allocation3], 16
  %v1228 = vld [vmem:[%s1227] ss:$2 sm:$0xff]
  %s1229 = scalar_lea.vmem [#allocation3], 32
  %v1230 = vld [vmem:[%s1229] ss:$2 sm:$0xff]
  %s1231 = scalar_lea.vmem [#allocation3], 48
  %v1232 = vld [vmem:[%s1231] ss:$2 sm:$0xff]
  %s1233 = scalar_lea.vmem [#allocation3], 1
  %v1234 = vld [vmem:[%s1233] ss:$2 sm:$0xff]
  %s1235 = scalar_lea.vmem [#allocation3], 17
  %v1236 = vld [vmem:[%s1235] ss:$2 sm:$0xff]
  %s1237 = scalar_lea.vmem [#allocation3], 33
  %v1238 = vld [vmem:[%s1237] ss:$2 sm:$0xff]
  %s1239 = scalar_lea.vmem [#allocation3], 49
  %v1240 = vld [vmem:[%s1239] ss:$2 sm:$0xff]
  %v1241 = vmax.f32 %v1226, %v1234
  %v1242 = vmax.f32 %v1228, %v1236
  %v1243 = vmax.f32 %v1230, %v1238
  %v1244 = vmax.f32 %v1232, %v1240
  %v1245 = vpack.c.bf16 %v1242, %v1241
  %v1246 = vpack.c.bf16 %v1244, %v1243
  %v1249 = vunpack.c.l.b16 %v1245
  %v1250 = vunpack.c.h.b16 %v1245
  %v1251 = vunpack.c.l.b16 %v1246
  %v1252 = vunpack.c.h.b16 %v1246
  %v1253 = vpack.c.b16 %v1249, %v1249
  %v1254 = vpack.c.b16 %v1250, %v1250
  %v1255 = vpack.c.b16 %v1251, %v1251
  %v1256 = vpack.c.b16 %v1252, %v1252
  %vm1261 = vcmask 125952
  %1262 = vst.msk [vmem:[%s4] sm:$0xf] %vm1261, %v1253
  %1263 = vst.msk [vmem:[%s4 + $0x4] sm:$0xf] %vm1261, %v1254
  %1264 = vst.msk [vmem:[%s4 + $0x8] sm:$0xf] %vm1261, %v1255
  %1265 = vst.msk [vmem:[%s4 + $0xc] sm:$0xf] %vm1261, %v1256
  // Predicated region
  $region18: #{cnn_forward.4} parent=0 // pred_check
    _
  $region19: #{cnn_forward.4} parent=0 // pred_check_branch
    %1267 = sbr.rel (0) target = $region21
  $region20: #{cnn_forward.4} parent=0 // pred_region
    _
  $region21: #{cnn_forward.4} parent=0 // pred_fallthru
    _
  // Predicated region
  $region22: #{cnn_forward.4} parent=0 // pred_check
    _
  $region23: #{cnn_forward.4} parent=0 // pred_check_branch
    %1269 = sbr.rel (0) target = $region25
  $region24: #{cnn_forward.4} parent=0 // pred_region
    _
  $region25: #{cnn_forward.4} parent=0 // pred_fallthru
    _

// kernel: cnn_forward.3
$region0: #{cnn_forward.3}
  #allocation0 [shape = 'u32[]', space=smem, size = 0x4, offset = 0x4, fixed_abs, tag = 'smem constant byte address 0x4 - core index']
  #allocation1 [shape = 'u32[144,128]{1,0:T(1,128)}', space=vmem, size = 0x12000, scoped, tag = 'internal scratch']
  #allocation2 [shape = 'bf16[512,128]{1,0:T(16,128)(2,1)}', space=vmem, size = 0x20000, scoped, tag = 'scratch operand']
  #allocation3 [shape = 'f32[256,8]{1,0:T(8,128)}', space=vmem, size = 0x20000, scoped, tag = 'scratch operand']
  %s0 = inlined_call_operand.vmem [shape: bf16[2,18,18,4], index: 0, kind: input, shape index: {}]
  %s1 = inlined_call_operand.vmem [shape: bf16[128,8], index: 1, kind: input, shape index: {}]
  %s2 = inlined_call_operand.vmem [shape: f32[1,8], index: 2, kind: input, shape index: {}]
  %s3 = inlined_call_operand.vmem [shape: f32[1,8], index: 3, kind: input, shape index: {}]
  %s4 = inlined_call_operand.vmem [shape: bf16[128,8], index: 4, kind: output, shape index: {}]
  %s5 = sld [smem:[#allocation0]]
  $region26: #{cnn_forward.3} parent=0
    _
  %s7 = ssub.s32 1, %s5
  %s8 = scalar_select 0, %s7, %s5
  // Predicated region
  $region2: #{cnn_forward.3} parent=0 // pred_check
    _
  $region3: #{cnn_forward.3} parent=0 // pred_check_branch
    %10 = sbr.rel (0) target = $region5
  $region4: #{cnn_forward.3} parent=0 // pred_region
    _
  $region5: #{cnn_forward.3} parent=0 // pred_fallthru
    _
  // Predicated region
  $region6: #{cnn_forward.3} parent=0 // pred_check
    _
  $region7: #{cnn_forward.3} parent=0 // pred_check_branch
    %12 = sbr.rel (0) target = $region9
  $region8: #{cnn_forward.3} parent=0 // pred_region
    _
  $region9: #{cnn_forward.3} parent=0 // pred_fallthru
    _
  // Predicated region
  $region10: #{cnn_forward.3} parent=0 // pred_check
    _
  $region11: #{cnn_forward.3} parent=0 // pred_check_branch
    %14 = sbr.rel (0) target = $region13
  $region12: #{cnn_forward.3} parent=0 // pred_region
    _
  $region13: #{cnn_forward.3} parent=0 // pred_fallthru
    _
  // Predicated region
  $region14: #{cnn_forward.3} parent=0 // pred_check
    _
  $region15: #{cnn_forward.3} parent=0 // pred_check_branch
    %16 = sbr.rel (0) target = $region17
  $region16: #{cnn_forward.3} parent=0 // pred_region
    _
  $region17: #{cnn_forward.3} parent=0 // pred_fallthru
    _
  %18 = vst [vmem:[#allocation2] sm:$0xff] 0
  %19 = vst [vmem:[#allocation2 + $0x8] sm:$0xff] 0
  %20 = vst [vmem:[#allocation2 + $0x10] sm:$0xff] 0
  %21 = vst [vmem:[#allocation2 + $0x18] sm:$0xff] 0
  %22 = vst [vmem:[#allocation2 + $0x20] sm:$0xff] 0
  %23 = vst [vmem:[#allocation2 + $0x28] sm:$0xff] 0
  %24 = vst [vmem:[#allocation2 + $0x30] sm:$0xff] 0
  %25 = vst [vmem:[#allocation2 + $0x38] sm:$0xff] 0
  %26 = vst [vmem:[#allocation2 + $0x40] sm:$0xff] 0
  %27 = vst [vmem:[#allocation2 + $0x48] sm:$0xff] 0
  %28 = vst [vmem:[#allocation2 + $0x50] sm:$0xff] 0
  %29 = vst [vmem:[#allocation2 + $0x58] sm:$0xff] 0
  %30 = vst [vmem:[#allocation2 + $0x60] sm:$0xff] 0
  %31 = vst [vmem:[#allocation2 + $0x68] sm:$0xff] 0
  %32 = vst [vmem:[#allocation2 + $0x70] sm:$0xff] 0
  %33 = vst [vmem:[#allocation2 + $0x78] sm:$0xff] 0
  %34 = vst [vmem:[#allocation2 + $0x80] sm:$0xff] 0
  %35 = vst [vmem:[#allocation2 + $0x88] sm:$0xff] 0
  %36 = vst [vmem:[#allocation2 + $0x90] sm:$0xff] 0
  %37 = vst [vmem:[#allocation2 + $0x98] sm:$0xff] 0
  %38 = vst [vmem:[#allocation2 + $0xa0] sm:$0xff] 0
  %39 = vst [vmem:[#allocation2 + $0xa8] sm:$0xff] 0
  %40 = vst [vmem:[#allocation2 + $0xb0] sm:$0xff] 0
  %41 = vst [vmem:[#allocation2 + $0xb8] sm:$0xff] 0
  %42 = vst [vmem:[#allocation2 + $0xc0] sm:$0xff] 0
  %43 = vst [vmem:[#allocation2 + $0xc8] sm:$0xff] 0
  %44 = vst [vmem:[#allocation2 + $0xd0] sm:$0xff] 0
  %45 = vst [vmem:[#allocation2 + $0xd8] sm:$0xff] 0
  %46 = vst [vmem:[#allocation2 + $0xe0] sm:$0xff] 0
  %47 = vst [vmem:[#allocation2 + $0xe8] sm:$0xff] 0
  %48 = vst [vmem:[#allocation2 + $0xf0] sm:$0xff] 0
  %49 = vst [vmem:[#allocation2 + $0xf8] sm:$0xff] 0
  %v50 = vld [vmem:[%s0] sm:$0xf]
  %v51 = vld [vmem:[%s0 + $0x4] sm:$0xf]
  %v52 = vld [vmem:[%s0 + $0x8] sm:$0x1]
  %v53 = vld [vmem:[%s0 + $0xc] sm:$0xf]
  %v54 = vld [vmem:[%s0 + $0x10] sm:$0xf]
  %v55 = vld [vmem:[%s0 + $0x14] sm:$0x1]
  %v56 = vld [vmem:[%s0 + $0x18] sm:$0xf]
  %v57 = vld [vmem:[%s0 + $0x1c] sm:$0xf]
  %v58 = vld [vmem:[%s0 + $0x20] sm:$0x1]
  %v59 = vld [vmem:[%s0 + $0x24] sm:$0xf]
  %v60 = vld [vmem:[%s0 + $0x28] sm:$0xf]
  %v61 = vld [vmem:[%s0 + $0x2c] sm:$0x1]
  %v62 = vld [vmem:[%s0 + $0x30] sm:$0xf]
  %v63 = vld [vmem:[%s0 + $0x34] sm:$0xf]
  %v64 = vld [vmem:[%s0 + $0x38] sm:$0x1]
  %v65 = vld [vmem:[%s0 + $0x3c] sm:$0xf]
  %v66 = vld [vmem:[%s0 + $0x40] sm:$0xf]
  %v67 = vld [vmem:[%s0 + $0x44] sm:$0x1]
  %v68 = vld [vmem:[%s0 + $0x48] sm:$0xf]
  %v69 = vld [vmem:[%s0 + $0x4c] sm:$0xf]
  %v70 = vld [vmem:[%s0 + $0x50] sm:$0x1]
  %v71 = vld [vmem:[%s0 + $0x54] sm:$0xf]
  %v72 = vld [vmem:[%s0 + $0x58] sm:$0xf]
  %v73 = vld [vmem:[%s0 + $0x5c] sm:$0x1]
  %v74 = vld [vmem:[%s0 + $0x60] sm:$0xf]
  %v75 = vld [vmem:[%s0 + $0x64] sm:$0xf]
  %v76 = vld [vmem:[%s0 + $0x68] sm:$0x1]
  %v77 = vld [vmem:[%s0 + $0x6c] sm:$0xf]
  %v78 = vld [vmem:[%s0 + $0x70] sm:$0xf]
  %v79 = vld [vmem:[%s0 + $0x74] sm:$0x1]
  %v80 = vld [vmem:[%s0 + $0x78] sm:$0xf]
  %v81 = vld [vmem:[%s0 + $0x7c] sm:$0xf]
  %v82 = vld [vmem:[%s0 + $0x80] sm:$0x1]
  %v83 = vld [vmem:[%s0 + $0x84] sm:$0xf]
  %v84 = vld [vmem:[%s0 + $0x88] sm:$0xf]
  %v85 = vld [vmem:[%s0 + $0x8c] sm:$0x1]
  %v86 = vld [vmem:[%s0 + $0x90] sm:$0xf]
  %v87 = vld [vmem:[%s0 + $0x94] sm:$0xf]
  %v88 = vld [vmem:[%s0 + $0x98] sm:$0x1]
  %v89 = vld [vmem:[%s0 + $0x9c] sm:$0xf]
  %v90 = vld [vmem:[%s0 + $0xa0] sm:$0xf]
  %v91 = vld [vmem:[%s0 + $0xa4] sm:$0x1]
  %v92 = vld [vmem:[%s0 + $0xa8] sm:$0xf]
  %v93 = vld [vmem:[%s0 + $0xac] sm:$0xf]
  %v94 = vld [vmem:[%s0 + $0xb0] sm:$0x1]
  %v95 = vld [vmem:[%s0 + $0xb4] sm:$0xf]
  %v96 = vld [vmem:[%s0 + $0xb8] sm:$0xf]
  %v97 = vld [vmem:[%s0 + $0xbc] sm:$0x1]
  %v98 = vld [vmem:[%s0 + $0xc0] sm:$0xf]
  %v99 = vld [vmem:[%s0 + $0xc4] sm:$0xf]
  %v100 = vld [vmem:[%s0 + $0xc8] sm:$0x1]
  %v101 = vld [vmem:[%s0 + $0xcc] sm:$0xf]
  %v102 = vld [vmem:[%s0 + $0xd0] sm:$0xf]
  %v103 = vld [vmem:[%s0 + $0xd4] sm:$0x1]
  %v104 = vld [vmem:[%s0 + $0xd8] sm:$0xf]
  %v105 = vld [vmem:[%s0 + $0xdc] sm:$0xf]
  %v106 = vld [vmem:[%s0 + $0xe0] sm:$0x1]
  %v107 = vld [vmem:[%s0 + $0xe4] sm:$0xf]
  %v108 = vld [vmem:[%s0 + $0xe8] sm:$0xf]
  %v109 = vld [vmem:[%s0 + $0xec] sm:$0x1]
  %v110 = vld [vmem:[%s0 + $0xf0] sm:$0xf]
  %v111 = vld [vmem:[%s0 + $0xf4] sm:$0xf]
  %v112 = vld [vmem:[%s0 + $0xf8] sm:$0x1]
  %v113 = vld [vmem:[%s0 + $0xfc] sm:$0xf]
  %v114 = vld [vmem:[%s0 + $0x100] sm:$0xf]
  %v115 = vld [vmem:[%s0 + $0x104] sm:$0x1]
  %v116 = vld [vmem:[%s0 + $0x108] sm:$0xf]
  %v117 = vld [vmem:[%s0 + $0x10c] sm:$0xf]
  %v118 = vld [vmem:[%s0 + $0x110] sm:$0x1]
  %v119 = vld [vmem:[%s0 + $0x114] sm:$0xf]
  %v120 = vld [vmem:[%s0 + $0x118] sm:$0xf]
  %v121 = vld [vmem:[%s0 + $0x11c] sm:$0x1]
  %v122 = vld [vmem:[%s0 + $0x120] sm:$0xf]
  %v123 = vld [vmem:[%s0 + $0x124] sm:$0xf]
  %v124 = vld [vmem:[%s0 + $0x128] sm:$0x1]
  %v125 = vld [vmem:[%s0 + $0x12c] sm:$0xf]
  %v126 = vld [vmem:[%s0 + $0x130] sm:$0xf]
  %v127 = vld [vmem:[%s0 + $0x134] sm:$0x1]
  %v128 = vld [vmem:[%s0 + $0x138] sm:$0xf]
  %v129 = vld [vmem:[%s0 + $0x13c] sm:$0xf]
  %v130 = vld [vmem:[%s0 + $0x140] sm:$0x1]
  %v131 = vld [vmem:[%s0 + $0x144] sm:$0xf]
  %v132 = vld [vmem:[%s0 + $0x148] sm:$0xf]
  %v133 = vld [vmem:[%s0 + $0x14c] sm:$0x1]
  %v134 = vld [vmem:[%s0 + $0x150] sm:$0xf]
  %v135 = vld [vmem:[%s0 + $0x154] sm:$0xf]
  %v136 = vld [vmem:[%s0 + $0x158] sm:$0x1]
  %v137 = vld [vmem:[%s0 + $0x15c] sm:$0xf]
  %v138 = vld [vmem:[%s0 + $0x160] sm:$0xf]
  %v139 = vld [vmem:[%s0 + $0x164] sm:$0x1]
  %v140 = vld [vmem:[%s0 + $0x168] sm:$0xf]
  %v141 = vld [vmem:[%s0 + $0x16c] sm:$0xf]
  %v142 = vld [vmem:[%s0 + $0x170] sm:$0x1]
  %v143 = vld [vmem:[%s0 + $0x174] sm:$0xf]
  %v144 = vld [vmem:[%s0 + $0x178] sm:$0xf]
  %v145 = vld [vmem:[%s0 + $0x17c] sm:$0x1]
  %v146 = vld [vmem:[%s0 + $0x180] sm:$0xf]
  %v147 = vld [vmem:[%s0 + $0x184] sm:$0xf]
  %v148 = vld [vmem:[%s0 + $0x188] sm:$0x1]
  %v149 = vld [vmem:[%s0 + $0x18c] sm:$0xf]
  %v150 = vld [vmem:[%s0 + $0x190] sm:$0xf]
  %v151 = vld [vmem:[%s0 + $0x194] sm:$0x1]
  %v152 = vld [vmem:[%s0 + $0x198] sm:$0xf]
  %v153 = vld [vmem:[%s0 + $0x19c] sm:$0xf]
  %v154 = vld [vmem:[%s0 + $0x1a0] sm:$0x1]
  %v155 = vld [vmem:[%s0 + $0x1a4] sm:$0xf]
  %v156 = vld [vmem:[%s0 + $0x1a8] sm:$0xf]
  %v157 = vld [vmem:[%s0 + $0x1ac] sm:$0x1]
  %v222 = vunpack.c.l.b16 %v50
  %v223 = vunpack.c.l.b16 %v51
  %v224 = vunpack.c.l.b16 %v53
  %v225 = vunpack.c.l.b16 %v54
  %v226 = vunpack.c.l.b16 %v56
  %v227 = vunpack.c.l.b16 %v57
  %v228 = vunpack.c.l.b16 %v59
  %v229 = vunpack.c.l.b16 %v60
  %v230 = vunpack.c.l.b16 %v62
  %v231 = vunpack.c.l.b16 %v63
  %v232 = vunpack.c.l.b16 %v65
  %v233 = vunpack.c.l.b16 %v66
  %v234 = vunpack.c.l.b16 %v68
  %v235 = vunpack.c.l.b16 %v69
  %v236 = vunpack.c.l.b16 %v71
  %v237 = vunpack.c.l.b16 %v72
  %v238 = vunpack.c.l.b16 %v74
  %v239 = vunpack.c.l.b16 %v75
  %v240 = vunpack.c.l.b16 %v77
  %v241 = vunpack.c.l.b16 %v78
  %v242 = vunpack.c.l.b16 %v80
  %v243 = vunpack.c.l.b16 %v81
  %v244 = vunpack.c.l.b16 %v83
  %v245 = vunpack.c.l.b16 %v84
  %v246 = vunpack.c.l.b16 %v86
  %v247 = vunpack.c.l.b16 %v87
  %v248 = vunpack.c.l.b16 %v89
  %v249 = vunpack.c.l.b16 %v90
  %v250 = vunpack.c.l.b16 %v92
  %v251 = vunpack.c.l.b16 %v93
  %v252 = vunpack.c.l.b16 %v95
  %v253 = vunpack.c.l.b16 %v96
  %v254 = vunpack.c.l.b16 %v104
  %v255 = vunpack.c.l.b16 %v105
  %v256 = vunpack.c.l.b16 %v107
  %v257 = vunpack.c.l.b16 %v108
  %v258 = vunpack.c.l.b16 %v110
  %v259 = vunpack.c.l.b16 %v111
  %v260 = vunpack.c.l.b16 %v113
  %v261 = vunpack.c.l.b16 %v114
  %v262 = vunpack.c.l.b16 %v116
  %v263 = vunpack.c.l.b16 %v117
  %v264 = vunpack.c.l.b16 %v119
  %v265 = vunpack.c.l.b16 %v120
  %v266 = vunpack.c.l.b16 %v122
  %v267 = vunpack.c.l.b16 %v123
  %v268 = vunpack.c.l.b16 %v125
  %v269 = vunpack.c.l.b16 %v126
  %v270 = vunpack.c.l.b16 %v128
  %v271 = vunpack.c.l.b16 %v129
  %v272 = vunpack.c.l.b16 %v131
  %v273 = vunpack.c.l.b16 %v132
  %v274 = vunpack.c.l.b16 %v134
  %v275 = vunpack.c.l.b16 %v135
  %v276 = vunpack.c.l.b16 %v137
  %v277 = vunpack.c.l.b16 %v138
  %v278 = vunpack.c.l.b16 %v140
  %v279 = vunpack.c.l.b16 %v141
  %v280 = vunpack.c.l.b16 %v143
  %v281 = vunpack.c.l.b16 %v144
  %v282 = vunpack.c.l.b16 %v146
  %v283 = vunpack.c.l.b16 %v147
  %v284 = vunpack.c.l.b16 %v149
  %v285 = vunpack.c.l.b16 %v150
  %v286 = vpack.c.b16 %v223, %v222
  %v287 = vpack.c.b16 %v225, %v224
  %v288 = vpack.c.b16 %v227, %v226
  %v289 = vpack.c.b16 %v229, %v228
  %v290 = vpack.c.b16 %v231, %v230
  %v291 = vpack.c.b16 %v233, %v232
  %v292 = vpack.c.b16 %v235, %v234
  %v293 = vpack.c.b16 %v237, %v236
  %v294 = vpack.c.b16 %v239, %v238
  %v295 = vpack.c.b16 %v241, %v240
  %v296 = vpack.c.b16 %v243, %v242
  %v297 = vpack.c.b16 %v245, %v244
  %v298 = vpack.c.b16 %v247, %v246
  %v299 = vpack.c.b16 %v249, %v248
  %v300 = vpack.c.b16 %v251, %v250
  %v301 = vpack.c.b16 %v253, %v252
  %v302 = vpack.c.b16 %v255, %v254
  %v303 = vpack.c.b16 %v257, %v256
  %v304 = vpack.c.b16 %v259, %v258
  %v305 = vpack.c.b16 %v261, %v260
  %v306 = vpack.c.b16 %v263, %v262
  %v307 = vpack.c.b16 %v265, %v264
  %v308 = vpack.c.b16 %v267, %v266
  %v309 = vpack.c.b16 %v269, %v268
  %v310 = vpack.c.b16 %v271, %v270
  %v311 = vpack.c.b16 %v273, %v272
  %v312 = vpack.c.b16 %v275, %v274
  %v313 = vpack.c.b16 %v277, %v276
  %v314 = vpack.c.b16 %v279, %v278
  %v315 = vpack.c.b16 %v281, %v280
  %v316 = vpack.c.b16 %v283, %v282
  %v317 = vpack.c.b16 %v285, %v284
  %vm350 = vcmask 31744
  %351 = vst.msk [vmem:[#allocation2] sm:$0xff] %vm350, %v286
  %352 = vst.msk [vmem:[#allocation2 + $0x8] sm:$0xff] %vm350, %v287
  %353 = vst.msk [vmem:[#allocation2 + $0x10] sm:$0xff] %vm350, %v288
  %354 = vst.msk [vmem:[#allocation2 + $0x18] sm:$0xff] %vm350, %v289
  %355 = vst.msk [vmem:[#allocation2 + $0x20] sm:$0xff] %vm350, %v290
  %356 = vst.msk [vmem:[#allocation2 + $0x28] sm:$0xff] %vm350, %v291
  %357 = vst.msk [vmem:[#allocation2 + $0x30] sm:$0xff] %vm350, %v292
  %358 = vst.msk [vmem:[#allocation2 + $0x38] sm:$0xff] %vm350, %v293
  %359 = vst.msk [vmem:[#allocation2 + $0x40] sm:$0xff] %vm350, %v294
  %360 = vst.msk [vmem:[#allocation2 + $0x48] sm:$0xff] %vm350, %v295
  %361 = vst.msk [vmem:[#allocation2 + $0x50] sm:$0xff] %vm350, %v296
  %362 = vst.msk [vmem:[#allocation2 + $0x58] sm:$0xff] %vm350, %v297
  %363 = vst.msk [vmem:[#allocation2 + $0x60] sm:$0xff] %vm350, %v298
  %364 = vst.msk [vmem:[#allocation2 + $0x68] sm:$0xff] %vm350, %v299
  %365 = vst.msk [vmem:[#allocation2 + $0x70] sm:$0xff] %vm350, %v300
  %366 = vst.msk [vmem:[#allocation2 + $0x78] sm:$0xff] %vm350, %v301
  %367 = vst.msk [vmem:[#allocation2 + $0x80] sm:$0xff] %vm350, %v302
  %368 = vst.msk [vmem:[#allocation2 + $0x88] sm:$0xff] %vm350, %v303
  %369 = vst.msk [vmem:[#allocation2 + $0x90] sm:$0xff] %vm350, %v304
  %370 = vst.msk [vmem:[#allocation2 + $0x98] sm:$0xff] %vm350, %v305
  %371 = vst.msk [vmem:[#allocation2 + $0xa0] sm:$0xff] %vm350, %v306
  %372 = vst.msk [vmem:[#allocation2 + $0xa8] sm:$0xff] %vm350, %v307
  %373 = vst.msk [vmem:[#allocation2 + $0xb0] sm:$0xff] %vm350, %v308
  %374 = vst.msk [vmem:[#allocation2 + $0xb8] sm:$0xff] %vm350, %v309
  %375 = vst.msk [vmem:[#allocation2 + $0xc0] sm:$0xff] %vm350, %v310
  %376 = vst.msk [vmem:[#allocation2 + $0xc8] sm:$0xff] %vm350, %v311
  %377 = vst.msk [vmem:[#allocation2 + $0xd0] sm:$0xff] %vm350, %v312
  %378 = vst.msk [vmem:[#allocation2 + $0xd8] sm:$0xff] %vm350, %v313
  %379 = vst.msk [vmem:[#allocation2 + $0xe0] sm:$0xff] %vm350, %v314
  %380 = vst.msk [vmem:[#allocation2 + $0xe8] sm:$0xff] %vm350, %v315
  %381 = vst.msk [vmem:[#allocation2 + $0xf0] sm:$0xff] %vm350, %v316
  %382 = vst.msk [vmem:[#allocation2 + $0xf8] sm:$0xff] %vm350, %v317
  %vm383 = vsmask.f32 3328
  %vm384 = vsmask.f32 7440
  %vm385 = vmor %vm383, %vm384
  %v387 = vshrl.u32 %v50, 16
  %v389 = vrot.slane %v387, 4
  %v390 = vshll.u32 %v50, 16
  %v392 = vrot.slane %v390, 5
  %v393 = vor.u32 %v389, %v392
  %v394 = vrot.slane %v393, 4
  %v396 = vshll.u32 %v51, 16
  %v398 = vrot.slane %v396, 5
  %v399 = vsel %vm385, %v394, %v398
  %v400 = vshrl.u32 %v51, 16
  %v402 = vrot.slane %v400, 4
  %v403 = vor.u32 %v402, %v398
  %v404 = vrot.slane %v403, 4
  %v406 = vshll.u32 %v52, 16
  %v408 = vrot.slane %v406, 5
  %v409 = vsel %vm385, %v404, %v408
  %v411 = vshrl.u32 %v53, 16
  %v413 = vrot.slane %v411, 4
  %v414 = vshll.u32 %v53, 16
  %v416 = vrot.slane %v414, 5
  %v417 = vor.u32 %v413, %v416
  %v418 = vrot.slane %v417, 4
  %v420 = vshll.u32 %v54, 16
  %v422 = vrot.slane %v420, 5
  %v423 = vsel %vm385, %v418, %v422
  %v424 = vshrl.u32 %v54, 16
  %v426 = vrot.slane %v424, 4
  %v427 = vor.u32 %v426, %v422
  %v428 = vrot.slane %v427, 4
  %v430 = vshll.u32 %v55, 16
  %v432 = vrot.slane %v430, 5
  %v433 = vsel %vm385, %v428, %v432
  %v435 = vshrl.u32 %v56, 16
  %v437 = vrot.slane %v435, 4
  %v438 = vshll.u32 %v56, 16
  %v440 = vrot.slane %v438, 5
  %v441 = vor.u32 %v437, %v440
  %v442 = vrot.slane %v441, 4
  %v444 = vshll.u32 %v57, 16
  %v446 = vrot.slane %v444, 5
  %v447 = vsel %vm385, %v442, %v446
  %v448 = vshrl.u32 %v57, 16
  %v450 = vrot.slane %v448, 4
  %v451 = vor.u32 %v450, %v446
  %v452 = vrot.slane %v451, 4
  %v454 = vshll.u32 %v58, 16
  %v456 = vrot.slane %v454, 5
  %v457 = vsel %vm385, %v452, %v456
  %v459 = vshrl.u32 %v59, 16
  %v461 = vrot.slane %v459, 4
  %v462 = vshll.u32 %v59, 16
  %v464 = vrot.slane %v462, 5
  %v465 = vor.u32 %v461, %v464
  %v466 = vrot.slane %v465, 4
  %v468 = vshll.u32 %v60, 16
  %v470 = vrot.slane %v468, 5
  %v471 = vsel %vm385, %v466, %v470
  %v472 = vshrl.u32 %v60, 16
  %v474 = vrot.slane %v472, 4
  %v475 = vor.u32 %v474, %v470
  %v476 = vrot.slane %v475, 4
  %v478 = vshll.u32 %v61, 16
  %v480 = vrot.slane %v478, 5
  %v481 = vsel %vm385, %v476, %v480
  %v483 = vshrl.u32 %v62, 16
  %v485 = vrot.slane %v483, 4
  %v486 = vshll.u32 %v62, 16
  %v488 = vrot.slane %v486, 5
  %v489 = vor.u32 %v485, %v488
  %v490 = vrot.slane %v489, 4
  %v492 = vshll.u32 %v63, 16
  %v494 = vrot.slane %v492, 5
  %v495 = vsel %vm385, %v490, %v494
  %v496 = vshrl.u32 %v63, 16
  %v498 = vrot.slane %v496, 4
  %v499 = vor.u32 %v498, %v494
  %v500 = vrot.slane %v499, 4
  %v502 = vshll.u32 %v64, 16
  %v504 = vrot.slane %v502, 5
  %v505 = vsel %vm385, %v500, %v504
  %v507 = vshrl.u32 %v65, 16
  %v509 = vrot.slane %v507, 4
  %v510 = vshll.u32 %v65, 16
  %v512 = vrot.slane %v510, 5
  %v513 = vor.u32 %v509, %v512
  %v514 = vrot.slane %v513, 4
  %v516 = vshll.u32 %v66, 16
  %v518 = vrot.slane %v516, 5
  %v519 = vsel %vm385, %v514, %v518
  %v520 = vshrl.u32 %v66, 16
  %v522 = vrot.slane %v520, 4
  %v523 = vor.u32 %v522, %v518
  %v524 = vrot.slane %v523, 4
  %v526 = vshll.u32 %v67, 16
  %v528 = vrot.slane %v526, 5
  %v529 = vsel %vm385, %v524, %v528
  %v531 = vshrl.u32 %v68, 16
  %v533 = vrot.slane %v531, 4
  %v534 = vshll.u32 %v68, 16
  %v536 = vrot.slane %v534, 5
  %v537 = vor.u32 %v533, %v536
  %v538 = vrot.slane %v537, 4
  %v540 = vshll.u32 %v69, 16
  %v542 = vrot.slane %v540, 5
  %v543 = vsel %vm385, %v538, %v542
  %v544 = vshrl.u32 %v69, 16
  %v546 = vrot.slane %v544, 4
  %v547 = vor.u32 %v546, %v542
  %v548 = vrot.slane %v547, 4
  %v550 = vshll.u32 %v70, 16
  %v552 = vrot.slane %v550, 5
  %v553 = vsel %vm385, %v548, %v552
  %v555 = vshrl.u32 %v71, 16
  %v557 = vrot.slane %v555, 4
  %v558 = vshll.u32 %v71, 16
  %v560 = vrot.slane %v558, 5
  %v561 = vor.u32 %v557, %v560
  %v562 = vrot.slane %v561, 4
  %v564 = vshll.u32 %v72, 16
  %v566 = vrot.slane %v564, 5
  %v567 = vsel %vm385, %v562, %v566
  %v568 = vshrl.u32 %v72, 16
  %v570 = vrot.slane %v568, 4
  %v571 = vor.u32 %v570, %v566
  %v572 = vrot.slane %v571, 4
  %v574 = vshll.u32 %v73, 16
  %v576 = vrot.slane %v574, 5
  %v577 = vsel %vm385, %v572, %v576
  %v579 = vshrl.u32 %v74, 16
  %v581 = vrot.slane %v579, 4
  %v582 = vshll.u32 %v74, 16
  %v584 = vrot.slane %v582, 5
  %v585 = vor.u32 %v581, %v584
  %v586 = vrot.slane %v585, 4
  %v588 = vshll.u32 %v75, 16
  %v590 = vrot.slane %v588, 5
  %v591 = vsel %vm385, %v586, %v590
  %v592 = vshrl.u32 %v75, 16
  %v594 = vrot.slane %v592, 4
  %v595 = vor.u32 %v594, %v590
  %v596 = vrot.slane %v595, 4
  %v598 = vshll.u32 %v76, 16
  %v600 = vrot.slane %v598, 5
  %v601 = vsel %vm385, %v596, %v600
  %v603 = vshrl.u32 %v77, 16
  %v605 = vrot.slane %v603, 4
  %v606 = vshll.u32 %v77, 16
  %v608 = vrot.slane %v606, 5
  %v609 = vor.u32 %v605, %v608
  %v610 = vrot.slane %v609, 4
  %v612 = vshll.u32 %v78, 16
  %v614 = vrot.slane %v612, 5
  %v615 = vsel %vm385, %v610, %v614
  %v616 = vshrl.u32 %v78, 16
  %v618 = vrot.slane %v616, 4
  %v619 = vor.u32 %v618, %v614
  %v620 = vrot.slane %v619, 4
  %v622 = vshll.u32 %v79, 16
  %v624 = vrot.slane %v622, 5
  %v625 = vsel %vm385, %v620, %v624
  %v627 = vshrl.u32 %v80, 16
  %v629 = vrot.slane %v627, 4
  %v630 = vshll.u32 %v80, 16
  %v632 = vrot.slane %v630, 5
  %v633 = vor.u32 %v629, %v632
  %v634 = vrot.slane %v633, 4
  %v636 = vshll.u32 %v81, 16
  %v638 = vrot.slane %v636, 5
  %v639 = vsel %vm385, %v634, %v638
  %v640 = vshrl.u32 %v81, 16
  %v642 = vrot.slane %v640, 4
  %v643 = vor.u32 %v642, %v638
  %v644 = vrot.slane %v643, 4
  %v646 = vshll.u32 %v82, 16
  %v648 = vrot.slane %v646, 5
  %v649 = vsel %vm385, %v644, %v648
  %v651 = vshrl.u32 %v83, 16
  %v653 = vrot.slane %v651, 4
  %v654 = vshll.u32 %v83, 16
  %v656 = vrot.slane %v654, 5
  %v657 = vor.u32 %v653, %v656
  %v658 = vrot.slane %v657, 4
  %v660 = vshll.u32 %v84, 16
  %v662 = vrot.slane %v660, 5
  %v663 = vsel %vm385, %v658, %v662
  %v664 = vshrl.u32 %v84, 16
  %v666 = vrot.slane %v664, 4
  %v667 = vor.u32 %v666, %v662
  %v668 = vrot.slane %v667, 4
  %v670 = vshll.u32 %v85, 16
  %v672 = vrot.slane %v670, 5
  %v673 = vsel %vm385, %v668, %v672
  %v675 = vshrl.u32 %v86, 16
  %v677 = vrot.slane %v675, 4
  %v678 = vshll.u32 %v86, 16
  %v680 = vrot.slane %v678, 5
  %v681 = vor.u32 %v677, %v680
  %v682 = vrot.slane %v681, 4
  %v684 = vshll.u32 %v87, 16
  %v686 = vrot.slane %v684, 5
  %v687 = vsel %vm385, %v682, %v686
  %v688 = vshrl.u32 %v87, 16
  %v690 = vrot.slane %v688, 4
  %v691 = vor.u32 %v690, %v686
  %v692 = vrot.slane %v691, 4
  %v694 = vshll.u32 %v88, 16
  %v696 = vrot.slane %v694, 5
  %v697 = vsel %vm385, %v692, %v696
  %v699 = vshrl.u32 %v89, 16
  %v701 = vrot.slane %v699, 4
  %v702 = vshll.u32 %v89, 16
  %v704 = vrot.slane %v702, 5
  %v705 = vor.u32 %v701, %v704
  %v706 = vrot.slane %v705, 4
  %v708 = vshll.u32 %v90, 16
  %v710 = vrot.slane %v708, 5
  %v711 = vsel %vm385, %v706, %v710
  %v712 = vshrl.u32 %v90, 16
  %v714 = vrot.slane %v712, 4
  %v715 = vor.u32 %v714, %v710
  %v716 = vrot.slane %v715, 4
  %v718 = vshll.u32 %v91, 16
  %v720 = vrot.slane %v718, 5
  %v721 = vsel %vm385, %v716, %v720
  %v723 = vshrl.u32 %v92, 16
  %v725 = vrot.slane %v723, 4
  %v726 = vshll.u32 %v92, 16
  %v728 = vrot.slane %v726, 5
  %v729 = vor.u32 %v725, %v728
  %v730 = vrot.slane %v729, 4
  %v732 = vshll.u32 %v93, 16
  %v734 = vrot.slane %v732, 5
  %v735 = vsel %vm385, %v730, %v734
  %v736 = vshrl.u32 %v93, 16
  %v738 = vrot.slane %v736, 4
  %v739 = vor.u32 %v738, %v734
  %v740 = vrot.slane %v739, 4
  %v742 = vshll.u32 %v94, 16
  %v744 = vrot.slane %v742, 5
  %v745 = vsel %vm385, %v740, %v744
  %v747 = vshrl.u32 %v95, 16
  %v749 = vrot.slane %v747, 4
  %v750 = vshll.u32 %v95, 16
  %v752 = vrot.slane %v750, 5
  %v753 = vor.u32 %v749, %v752
  %v754 = vrot.slane %v753, 4
  %v756 = vshll.u32 %v96, 16
  %v758 = vrot.slane %v756, 5
  %v759 = vsel %vm385, %v754, %v758
  %v760 = vshrl.u32 %v96, 16
  %v762 = vrot.slane %v760, 4
  %v763 = vor.u32 %v762, %v758
  %v764 = vrot.slane %v763, 4
  %v766 = vshll.u32 %v97, 16
  %v768 = vrot.slane %v766, 5
  %v769 = vsel %vm385, %v764, %v768
  %v771 = vshrl.u32 %v104, 16
  %v773 = vrot.slane %v771, 4
  %v774 = vshll.u32 %v104, 16
  %v776 = vrot.slane %v774, 5
  %v777 = vor.u32 %v773, %v776
  %v778 = vrot.slane %v777, 4
  %v780 = vshll.u32 %v105, 16
  %v782 = vrot.slane %v780, 5
  %v783 = vsel %vm385, %v778, %v782
  %v784 = vshrl.u32 %v105, 16
  %v786 = vrot.slane %v784, 4
  %v787 = vor.u32 %v786, %v782
  %v788 = vrot.slane %v787, 4
  %v790 = vshll.u32 %v106, 16
  %v792 = vrot.slane %v790, 5
  %v793 = vsel %vm385, %v788, %v792
  %v795 = vshrl.u32 %v107, 16
  %v797 = vrot.slane %v795, 4
  %v798 = vshll.u32 %v107, 16
  %v800 = vrot.slane %v798, 5
  %v801 = vor.u32 %v797, %v800
  %v802 = vrot.slane %v801, 4
  %v804 = vshll.u32 %v108, 16
  %v806 = vrot.slane %v804, 5
  %v807 = vsel %vm385, %v802, %v806
  %v808 = vshrl.u32 %v108, 16
  %v810 = vrot.slane %v808, 4
  %v811 = vor.u32 %v810, %v806
  %v812 = vrot.slane %v811, 4
  %v814 = vshll.u32 %v109, 16
  %v816 = vrot.slane %v814, 5
  %v817 = vsel %vm385, %v812, %v816
  %v819 = vshrl.u32 %v110, 16
  %v821 = vrot.slane %v819, 4
  %v822 = vshll.u32 %v110, 16
  %v824 = vrot.slane %v822, 5
  %v825 = vor.u32 %v821, %v824
  %v826 = vrot.slane %v825, 4
  %v828 = vshll.u32 %v111, 16
  %v830 = vrot.slane %v828, 5
  %v831 = vsel %vm385, %v826, %v830
  %v832 = vshrl.u32 %v111, 16
  %v834 = vrot.slane %v832, 4
  %v835 = vor.u32 %v834, %v830
  %v836 = vrot.slane %v835, 4
  %v838 = vshll.u32 %v112, 16
  %v840 = vrot.slane %v838, 5
  %v841 = vsel %vm385, %v836, %v840
  %v843 = vshrl.u32 %v113, 16
  %v845 = vrot.slane %v843, 4
  %v846 = vshll.u32 %v113, 16
  %v848 = vrot.slane %v846, 5
  %v849 = vor.u32 %v845, %v848
  %v850 = vrot.slane %v849, 4
  %v852 = vshll.u32 %v114, 16
  %v854 = vrot.slane %v852, 5
  %v855 = vsel %vm385, %v850, %v854
  %v856 = vshrl.u32 %v114, 16
  %v858 = vrot.slane %v856, 4
  %v859 = vor.u32 %v858, %v854
  %v860 = vrot.slane %v859, 4
  %v862 = vshll.u32 %v115, 16
  %v864 = vrot.slane %v862, 5
  %v865 = vsel %vm385, %v860, %v864
  %v867 = vshrl.u32 %v116, 16
  %v869 = vrot.slane %v867, 4
  %v870 = vshll.u32 %v116, 16
  %v872 = vrot.slane %v870, 5
  %v873 = vor.u32 %v869, %v872
  %v874 = vrot.slane %v873, 4
  %v876 = vshll.u32 %v117, 16
  %v878 = vrot.slane %v876, 5
  %v879 = vsel %vm385, %v874, %v878
  %v880 = vshrl.u32 %v117, 16
  %v882 = vrot.slane %v880, 4
  %v883 = vor.u32 %v882, %v878
  %v884 = vrot.slane %v883, 4
  %v886 = vshll.u32 %v118, 16
  %v888 = vrot.slane %v886, 5
  %v889 = vsel %vm385, %v884, %v888
  %v891 = vshrl.u32 %v119, 16
  %v893 = vrot.slane %v891, 4
  %v894 = vshll.u32 %v119, 16
  %v896 = vrot.slane %v894, 5
  %v897 = vor.u32 %v893, %v896
  %v898 = vrot.slane %v897, 4
  %v900 = vshll.u32 %v120, 16
  %v902 = vrot.slane %v900, 5
  %v903 = vsel %vm385, %v898, %v902
  %v904 = vshrl.u32 %v120, 16
  %v906 = vrot.slane %v904, 4
  %v907 = vor.u32 %v906, %v902
  %v908 = vrot.slane %v907, 4
  %v910 = vshll.u32 %v121, 16
  %v912 = vrot.slane %v910, 5
  %v913 = vsel %vm385, %v908, %v912
  %v915 = vshrl.u32 %v122, 16
  %v917 = vrot.slane %v915, 4
  %v918 = vshll.u32 %v122, 16
  %v920 = vrot.slane %v918, 5
  %v921 = vor.u32 %v917, %v920
  %v922 = vrot.slane %v921, 4
  %v924 = vshll.u32 %v123, 16
  %v926 = vrot.slane %v924, 5
  %v927 = vsel %vm385, %v922, %v926
  %v928 = vshrl.u32 %v123, 16
  %v930 = vrot.slane %v928, 4
  %v931 = vor.u32 %v930, %v926
  %v932 = vrot.slane %v931, 4
  %v934 = vshll.u32 %v124, 16
  %v936 = vrot.slane %v934, 5
  %v937 = vsel %vm385, %v932, %v936
  %v939 = vshrl.u32 %v125, 16
  %v941 = vrot.slane %v939, 4
  %v942 = vshll.u32 %v125, 16
  %v944 = vrot.slane %v942, 5
  %v945 = vor.u32 %v941, %v944
  %v946 = vrot.slane %v945, 4
  %v948 = vshll.u32 %v126, 16
  %v950 = vrot.slane %v948, 5
  %v951 = vsel %vm385, %v946, %v950
  %v952 = vshrl.u32 %v126, 16
  %v954 = vrot.slane %v952, 4
  %v955 = vor.u32 %v954, %v950
  %v956 = vrot.slane %v955, 4
  %v958 = vshll.u32 %v127, 16
  %v960 = vrot.slane %v958, 5
  %v961 = vsel %vm385, %v956, %v960
  %v963 = vshrl.u32 %v128, 16
  %v965 = vrot.slane %v963, 4
  %v966 = vshll.u32 %v128, 16
  %v968 = vrot.slane %v966, 5
  %v969 = vor.u32 %v965, %v968
  %v970 = vrot.slane %v969, 4
  %v972 = vshll.u32 %v129, 16
  %v974 = vrot.slane %v972, 5
  %v975 = vsel %vm385, %v970, %v974
  %v976 = vshrl.u32 %v129, 16
  %v978 = vrot.slane %v976, 4
  %v979 = vor.u32 %v978, %v974
  %v980 = vrot.slane %v979, 4
  %v982 = vshll.u32 %v130, 16
  %v984 = vrot.slane %v982, 5
  %v985 = vsel %vm385, %v980, %v984
  %v987 = vshrl.u32 %v131, 16
  %v989 = vrot.slane %v987, 4
  %v990 = vshll.u32 %v131, 16
  %v992 = vrot.slane %v990, 5
  %v993 = vor.u32 %v989, %v992
  %v994 = vrot.slane %v993, 4
  %v996 = vshll.u32 %v132, 16
  %v998 = vrot.slane %v996, 5
  %v999 = vsel %vm385, %v994, %v998
  %v1000 = vshrl.u32 %v132, 16
  %v1002 = vrot.slane %v1000, 4
  %v1003 = vor.u32 %v1002, %v998
  %v1004 = vrot.slane %v1003, 4
  %v1006 = vshll.u32 %v133, 16
  %v1008 = vrot.slane %v1006, 5
  %v1009 = vsel %vm385, %v1004, %v1008
  %v1011 = vshrl.u32 %v134, 16
  %v1013 = vrot.slane %v1011, 4
  %v1014 = vshll.u32 %v134, 16
  %v1016 = vrot.slane %v1014, 5
  %v1017 = vor.u32 %v1013, %v1016
  %v1018 = vrot.slane %v1017, 4
  %v1020 = vshll.u32 %v135, 16
  %v1022 = vrot.slane %v1020, 5
  %v1023 = vsel %vm385, %v1018, %v1022
  %v1024 = vshrl.u32 %v135, 16
  %v1026 = vrot.slane %v1024, 4
  %v1027 = vor.u32 %v1026, %v1022
  %v1028 = vrot.slane %v1027, 4
  %v1030 = vshll.u32 %v136, 16
  %v1032 = vrot.slane %v1030, 5
  %v1033 = vsel %vm385, %v1028, %v1032
  %v1035 = vshrl.u32 %v137, 16
  %v1037 = vrot.slane %v1035, 4
  %v1038 = vshll.u32 %v137, 16
  %v1040 = vrot.slane %v1038, 5
  %v1041 = vor.u32 %v1037, %v1040
  %v1042 = vrot.slane %v1041, 4
  %v1044 = vshll.u32 %v138, 16
  %v1046 = vrot.slane %v1044, 5
  %v1047 = vsel %vm385, %v1042, %v1046
  %v1048 = vshrl.u32 %v138, 16
  %v1050 = vrot.slane %v1048, 4
  %v1051 = vor.u32 %v1050, %v1046
  %v1052 = vrot.slane %v1051, 4
  %v1054 = vshll.u32 %v139, 16
  %v1056 = vrot.slane %v1054, 5
  %v1057 = vsel %vm385, %v1052, %v1056
  %v1059 = vshrl.u32 %v140, 16
  %v1061 = vrot.slane %v1059, 4
  %v1062 = vshll.u32 %v140, 16
  %v1064 = vrot.slane %v1062, 5
  %v1065 = vor.u32 %v1061, %v1064
  %v1066 = vrot.slane %v1065, 4
  %v1068 = vshll.u32 %v141, 16
  %v1070 = vrot.slane %v1068, 5
  %v1071 = vsel %vm385, %v1066, %v1070
  %v1072 = vshrl.u32 %v141, 16
  %v1074 = vrot.slane %v1072, 4
  %v1075 = vor.u32 %v1074, %v1070
  %v1076 = vrot.slane %v1075, 4
  %v1078 = vshll.u32 %v142, 16
  %v1080 = vrot.slane %v1078, 5
  %v1081 = vsel %vm385, %v1076, %v1080
  %v1083 = vshrl.u32 %v143, 16
  %v1085 = vrot.slane %v1083, 4
  %v1086 = vshll.u32 %v143, 16
  %v1088 = vrot.slane %v1086, 5
  %v1089 = vor.u32 %v1085, %v1088
  %v1090 = vrot.slane %v1089, 4
  %v1092 = vshll.u32 %v144, 16
  %v1094 = vrot.slane %v1092, 5
  %v1095 = vsel %vm385, %v1090, %v1094
  %v1096 = vshrl.u32 %v144, 16
  %v1098 = vrot.slane %v1096, 4
  %v1099 = vor.u32 %v1098, %v1094
  %v1100 = vrot.slane %v1099, 4
  %v1102 = vshll.u32 %v145, 16
  %v1104 = vrot.slane %v1102, 5
  %v1105 = vsel %vm385, %v1100, %v1104
  %v1107 = vshrl.u32 %v146, 16
  %v1109 = vrot.slane %v1107, 4
  %v1110 = vshll.u32 %v146, 16
  %v1112 = vrot.slane %v1110, 5
  %v1113 = vor.u32 %v1109, %v1112
  %v1114 = vrot.slane %v1113, 4
  %v1116 = vshll.u32 %v147, 16
  %v1118 = vrot.slane %v1116, 5
  %v1119 = vsel %vm385, %v1114, %v1118
  %v1120 = vshrl.u32 %v147, 16
  %v1122 = vrot.slane %v1120, 4
  %v1123 = vor.u32 %v1122, %v1118
  %v1124 = vrot.slane %v1123, 4
  %v1126 = vshll.u32 %v148, 16
  %v1128 = vrot.slane %v1126, 5
  %v1129 = vsel %vm385, %v1124, %v1128
  %v1131 = vshrl.u32 %v149, 16
  %v1133 = vrot.slane %v1131, 4
  %v1134 = vshll.u32 %v149, 16
  %v1136 = vrot.slane %v1134, 5
  %v1137 = vor.u32 %v1133, %v1136
  %v1138 = vrot.slane %v1137, 4
  %v1140 = vshll.u32 %v150, 16
  %v1142 = vrot.slane %v1140, 5
  %v1143 = vsel %vm385, %v1138, %v1142
  %v1144 = vshrl.u32 %v150, 16
  %v1146 = vrot.slane %v1144, 4
  %v1147 = vor.u32 %v1146, %v1142
  %v1148 = vrot.slane %v1147, 4
  %v1150 = vshll.u32 %v151, 16
  %v1152 = vrot.slane %v1150, 5
  %v1153 = vsel %vm385, %v1148, %v1152
  %v1154 = vunpack.c.l.b16 %v399
  %v1155 = vunpack.c.l.b16 %v409
  %v1156 = vunpack.c.l.b16 %v423
  %v1157 = vunpack.c.l.b16 %v433
  %v1158 = vunpack.c.l.b16 %v447
  %v1159 = vunpack.c.l.b16 %v457
  %v1160 = vunpack.c.l.b16 %v471
  %v1161 = vunpack.c.l.b16 %v481
  %v1162 = vunpack.c.l.b16 %v495
  %v1163 = vunpack.c.l.b16 %v505
  %v1164 = vunpack.c.l.b16 %v519
  %v1165 = vunpack.c.l.b16 %v529
  %v1166 = vunpack.c.l.b16 %v543
  %v1167 = vunpack.c.l.b16 %v553
  %v1168 = vunpack.c.l.b16 %v567
  %v1169 = vunpack.c.l.b16 %v577
  %v1170 = vunpack.c.l.b16 %v591
  %v1171 = vunpack.c.l.b16 %v601
  %v1172 = vunpack.c.l.b16 %v615
  %v1173 = vunpack.c.l.b16 %v625
  %v1174 = vunpack.c.l.b16 %v639
  %v1175 = vunpack.c.l.b16 %v649
  %v1176 = vunpack.c.l.b16 %v663
  %v1177 = vunpack.c.l.b16 %v673
  %v1178 = vunpack.c.l.b16 %v687
  %v1179 = vunpack.c.l.b16 %v697
  %v1180 = vunpack.c.l.b16 %v711
  %v1181 = vunpack.c.l.b16 %v721
  %v1182 = vunpack.c.l.b16 %v735
  %v1183 = vunpack.c.l.b16 %v745
  %v1184 = vunpack.c.l.b16 %v759
  %v1185 = vunpack.c.l.b16 %v769
  %v1186 = vunpack.c.l.b16 %v783
  %v1187 = vunpack.c.l.b16 %v793
  %v1188 = vunpack.c.l.b16 %v807
  %v1189 = vunpack.c.l.b16 %v817
  %v1190 = vunpack.c.l.b16 %v831
  %v1191 = vunpack.c.l.b16 %v841
  %v1192 = vunpack.c.l.b16 %v855
  %v1193 = vunpack.c.l.b16 %v865
  %v1194 = vunpack.c.l.b16 %v879
  %v1195 = vunpack.c.l.b16 %v889
  %v1196 = vunpack.c.l.b16 %v903
  %v1197 = vunpack.c.l.b16 %v913
  %v1198 = vunpack.c.l.b16 %v927
  %v1199 = vunpack.c.l.b16 %v937
  %v1200 = vunpack.c.l.b16 %v951
  %v1201 = vunpack.c.l.b16 %v961
  %v1202 = vunpack.c.l.b16 %v975
  %v1203 = vunpack.c.l.b16 %v985
  %v1204 = vunpack.c.l.b16 %v999
  %v1205 = vunpack.c.l.b16 %v1009
  %v1206 = vunpack.c.l.b16 %v1023
  %v1207 = vunpack.c.l.b16 %v1033
  %v1208 = vunpack.c.l.b16 %v1047
  %v1209 = vunpack.c.l.b16 %v1057
  %v1210 = vunpack.c.l.b16 %v1071
  %v1211 = vunpack.c.l.b16 %v1081
  %v1212 = vunpack.c.l.b16 %v1095
  %v1213 = vunpack.c.l.b16 %v1105
  %v1214 = vunpack.c.l.b16 %v1119
  %v1215 = vunpack.c.l.b16 %v1129
  %v1216 = vunpack.c.l.b16 %v1143
  %v1217 = vunpack.c.l.b16 %v1153
  %v1218 = vpack.c.b16 %v1155, %v1154
  %v1219 = vpack.c.b16 %v1157, %v1156
  %v1220 = vpack.c.b16 %v1159, %v1158
  %v1221 = vpack.c.b16 %v1161, %v1160
  %v1222 = vpack.c.b16 %v1163, %v1162
  %v1223 = vpack.c.b16 %v1165, %v1164
  %v1224 = vpack.c.b16 %v1167, %v1166
  %v1225 = vpack.c.b16 %v1169, %v1168
  %v1226 = vpack.c.b16 %v1171, %v1170
  %v1227 = vpack.c.b16 %v1173, %v1172
  %v1228 = vpack.c.b16 %v1175, %v1174
  %v1229 = vpack.c.b16 %v1177, %v1176
  %v1230 = vpack.c.b16 %v1179, %v1178
  %v1231 = vpack.c.b16 %v1181, %v1180
  %v1232 = vpack.c.b16 %v1183, %v1182
  %v1233 = vpack.c.b16 %v1185, %v1184
  %v1234 = vpack.c.b16 %v1187, %v1186
  %v1235 = vpack.c.b16 %v1189, %v1188
  %v1236 = vpack.c.b16 %v1191, %v1190
  %v1237 = vpack.c.b16 %v1193, %v1192
  %v1238 = vpack.c.b16 %v1195, %v1194
  %v1239 = vpack.c.b16 %v1197, %v1196
  %v1240 = vpack.c.b16 %v1199, %v1198
  %v1241 = vpack.c.b16 %v1201, %v1200
  %v1242 = vpack.c.b16 %v1203, %v1202
  %v1243 = vpack.c.b16 %v1205, %v1204
  %v1244 = vpack.c.b16 %v1207, %v1206
  %v1245 = vpack.c.b16 %v1209, %v1208
  %v1246 = vpack.c.b16 %v1211, %v1210
  %v1247 = vpack.c.b16 %v1213, %v1212
  %v1248 = vpack.c.b16 %v1215, %v1214
  %v1249 = vpack.c.b16 %v1217, %v1216
  %1250 = vrot.lane.b32.xlu0 %v1218, 4
  %v1251 = vpop.permute.xlu0 %1250
  %1252 = vrot.lane.b32.xlu0 %v1219, 4
  %v1253 = vpop.permute.xlu0 %1252
  %1254 = vrot.lane.b32.xlu0 %v1220, 4
  %v1255 = vpop.permute.xlu0 %1254
  %1256 = vrot.lane.b32.xlu0 %v1221, 4
  %v1257 = vpop.permute.xlu0 %1256
  %1258 = vrot.lane.b32.xlu0 %v1222, 4
  %v1259 = vpop.permute.xlu0 %1258
  %1260 = vrot.lane.b32.xlu0 %v1223, 4
  %v1261 = vpop.permute.xlu0 %1260
  %1262 = vrot.lane.b32.xlu0 %v1224, 4
  %v1263 = vpop.permute.xlu0 %1262
  %1264 = vrot.lane.b32.xlu0 %v1225, 4
  %v1265 = vpop.permute.xlu0 %1264
  %1266 = vrot.lane.b32.xlu0 %v1226, 4
  %v1267 = vpop.permute.xlu0 %1266
  %1268 = vrot.lane.b32.xlu0 %v1227, 4
  %v1269 = vpop.permute.xlu0 %1268
  %1270 = vrot.lane.b32.xlu0 %v1228, 4
  %v1271 = vpop.permute.xlu0 %1270
  %1272 = vrot.lane.b32.xlu0 %v1229, 4
  %v1273 = vpop.permute.xlu0 %1272
  %1274 = vrot.lane.b32.xlu0 %v1230, 4
  %v1275 = vpop.permute.xlu0 %1274
  %1276 = vrot.lane.b32.xlu0 %v1231, 4
  %v1277 = vpop.permute.xlu0 %1276
  %1278 = vrot.lane.b32.xlu0 %v1232, 4
  %v1279 = vpop.permute.xlu0 %1278
  %1280 = vrot.lane.b32.xlu0 %v1233, 4
  %v1281 = vpop.permute.xlu0 %1280
  %1282 = vrot.lane.b32.xlu0 %v1234, 4
  %v1283 = vpop.permute.xlu0 %1282
  %1284 = vrot.lane.b32.xlu0 %v1235, 4
  %v1285 = vpop.permute.xlu0 %1284
  %1286 = vrot.lane.b32.xlu0 %v1236, 4
  %v1287 = vpop.permute.xlu0 %1286
  %1288 = vrot.lane.b32.xlu0 %v1237, 4
  %v1289 = vpop.permute.xlu0 %1288
  %1290 = vrot.lane.b32.xlu0 %v1238, 4
  %v1291 = vpop.permute.xlu0 %1290
  %1292 = vrot.lane.b32.xlu0 %v1239, 4
  %v1293 = vpop.permute.xlu0 %1292
  %1294 = vrot.lane.b32.xlu0 %v1240, 4
  %v1295 = vpop.permute.xlu0 %1294
  %1296 = vrot.lane.b32.xlu0 %v1241, 4
  %v1297 = vpop.permute.xlu0 %1296
  %1298 = vrot.lane.b32.xlu0 %v1242, 4
  %v1299 = vpop.permute.xlu0 %1298
  %1300 = vrot.lane.b32.xlu0 %v1243, 4
  %v1301 = vpop.permute.xlu0 %1300
  %1302 = vrot.lane.b32.xlu0 %v1244, 4
  %v1303 = vpop.permute.xlu0 %1302
  %1304 = vrot.lane.b32.xlu0 %v1245, 4
  %v1305 = vpop.permute.xlu0 %1304
  %1306 = vrot.lane.b32.xlu0 %v1246, 4
  %v1307 = vpop.permute.xlu0 %1306
  %1308 = vrot.lane.b32.xlu0 %v1247, 4
  %v1309 = vpop.permute.xlu0 %1308
  %1310 = vrot.lane.b32.xlu0 %v1248, 4
  %v1311 = vpop.permute.xlu0 %1310
  %1312 = vrot.lane.b32.xlu0 %v1249, 4
  %v1313 = vpop.permute.xlu0 %1312
  %vm1346 = vcmask 64544
  %1347 = vst.msk [vmem:[#allocation2] sm:$0xff] %vm1346, %v1251
  %1348 = vst.msk [vmem:[#allocation2 + $0x8] sm:$0xff] %vm1346, %v1253
  %1349 = vst.msk [vmem:[#allocation2 + $0x10] sm:$0xff] %vm1346, %v1255
  %1350 = vst.msk [vmem:[#allocation2 + $0x18] sm:$0xff] %vm1346, %v1257
  %1351 = vst.msk [vmem:[#allocation2 + $0x20] sm:$0xff] %vm1346, %v1259
  %1352 = vst.msk [vmem:[#allocation2 + $0x28] sm:$0xff] %vm1346, %v1261
  %1353 = vst.msk [vmem:[#allocation2 + $0x30] sm:$0xff] %vm1346, %v1263
  %1354 = vst.msk [vmem:[#allocation2 + $0x38] sm:$0xff] %vm1346, %v1265
  %1355 = vst.msk [vmem:[#allocation2 + $0x40] sm:$0xff] %vm1346, %v1267
  %1356 = vst.msk [vmem:[#allocation2 + $0x48] sm:$0xff] %vm1346, %v1269
  %1357 = vst.msk [vmem:[#allocation2 + $0x50] sm:$0xff] %vm1346, %v1271
  %1358 = vst.msk [vmem:[#allocation2 + $0x58] sm:$0xff] %vm1346, %v1273
  %1359 = vst.msk [vmem:[#allocation2 + $0x60] sm:$0xff] %vm1346, %v1275
  %1360 = vst.msk [vmem:[#allocation2 + $0x68] sm:$0xff] %vm1346, %v1277
  %1361 = vst.msk [vmem:[#allocation2 + $0x70] sm:$0xff] %vm1346, %v1279
  %1362 = vst.msk [vmem:[#allocation2 + $0x78] sm:$0xff] %vm1346, %v1281
  %1363 = vst.msk [vmem:[#allocation2 + $0x80] sm:$0xff] %vm1346, %v1283
  %1364 = vst.msk [vmem:[#allocation2 + $0x88] sm:$0xff] %vm1346, %v1285
  %1365 = vst.msk [vmem:[#allocation2 + $0x90] sm:$0xff] %vm1346, %v1287
  %1366 = vst.msk [vmem:[#allocation2 + $0x98] sm:$0xff] %vm1346, %v1289
  %1367 = vst.msk [vmem:[#allocation2 + $0xa0] sm:$0xff] %vm1346, %v1291
  %1368 = vst.msk [vmem:[#allocation2 + $0xa8] sm:$0xff] %vm1346, %v1293
  %1369 = vst.msk [vmem:[#allocation2 + $0xb0] sm:$0xff] %vm1346, %v1295
  %1370 = vst.msk [vmem:[#allocation2 + $0xb8] sm:$0xff] %vm1346, %v1297
  %1371 = vst.msk [vmem:[#allocation2 + $0xc0] sm:$0xff] %vm1346, %v1299
  %1372 = vst.msk [vmem:[#allocation2 + $0xc8] sm:$0xff] %vm1346, %v1301
  %1373 = vst.msk [vmem:[#allocation2 + $0xd0] sm:$0xff] %vm1346, %v1303
  %1374 = vst.msk [vmem:[#allocation2 + $0xd8] sm:$0xff] %vm1346, %v1305
  %1375 = vst.msk [vmem:[#allocation2 + $0xe0] sm:$0xff] %vm1346, %v1307
  %1376 = vst.msk [vmem:[#allocation2 + $0xe8] sm:$0xff] %vm1346, %v1309
  %1377 = vst.msk [vmem:[#allocation2 + $0xf0] sm:$0xff] %vm1346, %v1311
  %1378 = vst.msk [vmem:[#allocation2 + $0xf8] sm:$0xff] %vm1346, %v1313
  %vm1411 = vcmask 1042432
  %vm1412 = vcmask 1046532
  %vm1413 = vmor %vm1411, %vm1412
  %v1414 = vrot.slane %v50, 5
  %v1415 = vrot.slane %v1414, 4
  %v1416 = vrot.slane %v51, 5
  %v1417 = vsel %vm1413, %v1415, %v1416
  %v1418 = vrot.slane %v1416, 4
  %v1419 = vrot.slane %v52, 5
  %v1420 = vsel %vm1413, %v1418, %v1419
  %v1421 = vrot.slane %v53, 5
  %v1422 = vrot.slane %v1421, 4
  %v1423 = vrot.slane %v54, 5
  %v1424 = vsel %vm1413, %v1422, %v1423
  %v1425 = vrot.slane %v1423, 4
  %v1426 = vrot.slane %v55, 5
  %v1427 = vsel %vm1413, %v1425, %v1426
  %v1428 = vrot.slane %v56, 5
  %v1429 = vrot.slane %v1428, 4
  %v1430 = vrot.slane %v57, 5
  %v1431 = vsel %vm1413, %v1429, %v1430
  %v1432 = vrot.slane %v1430, 4
  %v1433 = vrot.slane %v58, 5
  %v1434 = vsel %vm1413, %v1432, %v1433
  %v1435 = vrot.slane %v59, 5
  %v1436 = vrot.slane %v1435, 4
  %v1437 = vrot.slane %v60, 5
  %v1438 = vsel %vm1413, %v1436, %v1437
  %v1439 = vrot.slane %v1437, 4
  %v1440 = vrot.slane %v61, 5
  %v1441 = vsel %vm1413, %v1439, %v1440
  %v1442 = vrot.slane %v62, 5
  %v1443 = vrot.slane %v1442, 4
  %v1444 = vrot.slane %v63, 5
  %v1445 = vsel %vm1413, %v1443, %v1444
  %v1446 = vrot.slane %v1444, 4
  %v1447 = vrot.slane %v64, 5
  %v1448 = vsel %vm1413, %v1446, %v1447
  %v1449 = vrot.slane %v65, 5
  %v1450 = vrot.slane %v1449, 4
  %v1451 = vrot.slane %v66, 5
  %v1452 = vsel %vm1413, %v1450, %v1451
  %v1453 = vrot.slane %v1451, 4
  %v1454 = vrot.slane %v67, 5
  %v1455 = vsel %vm1413, %v1453, %v1454
  %v1456 = vrot.slane %v68, 5
  %v1457 = vrot.slane %v1456, 4
  %v1458 = vrot.slane %v69, 5
  %v1459 = vsel %vm1413, %v1457, %v1458
  %v1460 = vrot.slane %v1458, 4
  %v1461 = vrot.slane %v70, 5
  %v1462 = vsel %vm1413, %v1460, %v1461
  %v1463 = vrot.slane %v71, 5
  %v1464 = vrot.slane %v1463, 4
  %v1465 = vrot.slane %v72, 5
  %v1466 = vsel %vm1413, %v1464, %v1465
  %v1467 = vrot.slane %v1465, 4
  %v1468 = vrot.slane %v73, 5
  %v1469 = vsel %vm1413, %v1467, %v1468
  %v1470 = vrot.slane %v74, 5
  %v1471 = vrot.slane %v1470, 4
  %v1472 = vrot.slane %v75, 5
  %v1473 = vsel %vm1413, %v1471, %v1472
  %v1474 = vrot.slane %v1472, 4
  %v1475 = vrot.slane %v76, 5
  %v1476 = vsel %vm1413, %v1474, %v1475
  %v1477 = vrot.slane %v77, 5
  %v1478 = vrot.slane %v1477, 4
  %v1479 = vrot.slane %v78, 5
  %v1480 = vsel %vm1413, %v1478, %v1479
  %v1481 = vrot.slane %v1479, 4
  %v1482 = vrot.slane %v79, 5
  %v1483 = vsel %vm1413, %v1481, %v1482
  %v1484 = vrot.slane %v80, 5
  %v1485 = vrot.slane %v1484, 4
  %v1486 = vrot.slane %v81, 5
  %v1487 = vsel %vm1413, %v1485, %v1486
  %v1488 = vrot.slane %v1486, 4
  %v1489 = vrot.slane %v82, 5
  %v1490 = vsel %vm1413, %v1488, %v1489
  %v1491 = vrot.slane %v83, 5
  %v1492 = vrot.slane %v1491, 4
  %v1493 = vrot.slane %v84, 5
  %v1494 = vsel %vm1413, %v1492, %v1493
  %v1495 = vrot.slane %v1493, 4
  %v1496 = vrot.slane %v85, 5
  %v1497 = vsel %vm1413, %v1495, %v1496
  %v1498 = vrot.slane %v86, 5
  %v1499 = vrot.slane %v1498, 4
  %v1500 = vrot.slane %v87, 5
  %v1501 = vsel %vm1413, %v1499, %v1500
  %v1502 = vrot.slane %v1500, 4
  %v1503 = vrot.slane %v88, 5
  %v1504 = vsel %vm1413, %v1502, %v1503
  %v1505 = vrot.slane %v89, 5
  %v1506 = vrot.slane %v1505, 4
  %v1507 = vrot.slane %v90, 5
  %v1508 = vsel %vm1413, %v1506, %v1507
  %v1509 = vrot.slane %v1507, 4
  %v1510 = vrot.slane %v91, 5
  %v1511 = vsel %vm1413, %v1509, %v1510
  %v1512 = vrot.slane %v92, 5
  %v1513 = vrot.slane %v1512, 4
  %v1514 = vrot.slane %v93, 5
  %v1515 = vsel %vm1413, %v1513, %v1514
  %v1516 = vrot.slane %v1514, 4
  %v1517 = vrot.slane %v94, 5
  %v1518 = vsel %vm1413, %v1516, %v1517
  %v1519 = vrot.slane %v95, 5
  %v1520 = vrot.slane %v1519, 4
  %v1521 = vrot.slane %v96, 5
  %v1522 = vsel %vm1413, %v1520, %v1521
  %v1523 = vrot.slane %v1521, 4
  %v1524 = vrot.slane %v97, 5
  %v1525 = vsel %vm1413, %v1523, %v1524
  %v1526 = vrot.slane %v104, 5
  %v1527 = vrot.slane %v1526, 4
  %v1528 = vrot.slane %v105, 5
  %v1529 = vsel %vm1413, %v1527, %v1528
  %v1530 = vrot.slane %v1528, 4
  %v1531 = vrot.slane %v106, 5
  %v1532 = vsel %vm1413, %v1530, %v1531
  %v1533 = vrot.slane %v107, 5
  %v1534 = vrot.slane %v1533, 4
  %v1535 = vrot.slane %v108, 5
  %v1536 = vsel %vm1413, %v1534, %v1535
  %v1537 = vrot.slane %v1535, 4
  %v1538 = vrot.slane %v109, 5
  %v1539 = vsel %vm1413, %v1537, %v1538
  %v1540 = vrot.slane %v110, 5
  %v1541 = vrot.slane %v1540, 4
  %v1542 = vrot.slane %v111, 5
  %v1543 = vsel %vm1413, %v1541, %v1542
  %v1544 = vrot.slane %v1542, 4
  %v1545 = vrot.slane %v112, 5
  %v1546 = vsel %vm1413, %v1544, %v1545
  %v1547 = vrot.slane %v113, 5
  %v1548 = vrot.slane %v1547, 4
  %v1549 = vrot.slane %v114, 5
  %v1550 = vsel %vm1413, %v1548, %v1549
  %v1551 = vrot.slane %v1549, 4
  %v1552 = vrot.slane %v115, 5
  %v1553 = vsel %vm1413, %v1551, %v1552
  %v1554 = vrot.slane %v116, 5
  %v1555 = vrot.slane %v1554, 4
  %v1556 = vrot.slane %v117, 5
  %v1557 = vsel %vm1413, %v1555, %v1556
  %v1558 = vrot.slane %v1556, 4
  %v1559 = vrot.slane %v118, 5
  %v1560 = vsel %vm1413, %v1558, %v1559
  %v1561 = vrot.slane %v119, 5
  %v1562 = vrot.slane %v1561, 4
  %v1563 = vrot.slane %v120, 5
  %v1564 = vsel %vm1413, %v1562, %v1563
  %v1565 = vrot.slane %v1563, 4
  %v1566 = vrot.slane %v121, 5
  %v1567 = vsel %vm1413, %v1565, %v1566
  %v1568 = vrot.slane %v122, 5
  %v1569 = vrot.slane %v1568, 4
  %v1570 = vrot.slane %v123, 5
  %v1571 = vsel %vm1413, %v1569, %v1570
  %v1572 = vrot.slane %v1570, 4
  %v1573 = vrot.slane %v124, 5
  %v1574 = vsel %vm1413, %v1572, %v1573
  %v1575 = vrot.slane %v125, 5
  %v1576 = vrot.slane %v1575, 4
  %v1577 = vrot.slane %v126, 5
  %v1578 = vsel %vm1413, %v1576, %v1577
  %v1579 = vrot.slane %v1577, 4
  %v1580 = vrot.slane %v127, 5
  %v1581 = vsel %vm1413, %v1579, %v1580
  %v1582 = vrot.slane %v128, 5
  %v1583 = vrot.slane %v1582, 4
  %v1584 = vrot.slane %v129, 5
  %v1585 = vsel %vm1413, %v1583, %v1584
  %v1586 = vrot.slane %v1584, 4
  %v1587 = vrot.slane %v130, 5
  %v1588 = vsel %vm1413, %v1586, %v1587
  %v1589 = vrot.slane %v131, 5
  %v1590 = vrot.slane %v1589, 4
  %v1591 = vrot.slane %v132, 5
  %v1592 = vsel %vm1413, %v1590, %v1591
  %v1593 = vrot.slane %v1591, 4
  %v1594 = vrot.slane %v133, 5
  %v1595 = vsel %vm1413, %v1593, %v1594
  %v1596 = vrot.slane %v134, 5
  %v1597 = vrot.slane %v1596, 4
  %v1598 = vrot.slane %v135, 5
  %v1599 = vsel %vm1413, %v1597, %v1598
  %v1600 = vrot.slane %v1598, 4
  %v1601 = vrot.slane %v136, 5
  %v1602 = vsel %vm1413, %v1600, %v1601
  %v1603 = vrot.slane %v137, 5
  %v1604 = vrot.slane %v1603, 4
  %v1605 = vrot.slane %v138, 5
  %v1606 = vsel %vm1413, %v1604, %v1605
  %v1607 = vrot.slane %v1605, 4
  %v1608 = vrot.slane %v139, 5
  %v1609 = vsel %vm1413, %v1607, %v1608
  %v1610 = vrot.slane %v140, 5
  %v1611 = vrot.slane %v1610, 4
  %v1612 = vrot.slane %v141, 5
  %v1613 = vsel %vm1413, %v1611, %v1612
  %v1614 = vrot.slane %v1612, 4
  %v1615 = vrot.slane %v142, 5
  %v1616 = vsel %vm1413, %v1614, %v1615
  %v1617 = vrot.slane %v143, 5
  %v1618 = vrot.slane %v1617, 4
  %v1619 = vrot.slane %v144, 5
  %v1620 = vsel %vm1413, %v1618, %v1619
  %v1621 = vrot.slane %v1619, 4
  %v1622 = vrot.slane %v145, 5
  %v1623 = vsel %vm1413, %v1621, %v1622
  %v1624 = vrot.slane %v146, 5
  %v1625 = vrot.slane %v1624, 4
  %v1626 = vrot.slane %v147, 5
  %v1627 = vsel %vm1413, %v1625, %v1626
  %v1628 = vrot.slane %v1626, 4
  %v1629 = vrot.slane %v148, 5
  %v1630 = vsel %vm1413, %v1628, %v1629
  %v1631 = vrot.slane %v149, 5
  %v1632 = vrot.slane %v1631, 4
  %v1633 = vrot.slane %v150, 5
  %v1634 = vsel %vm1413, %v1632, %v1633
  %v1635 = vrot.slane %v1633, 4
  %v1636 = vrot.slane %v151, 5
  %v1637 = vsel %vm1413, %v1635, %v1636
  %v1638 = vunpack.c.l.b16 %v1417
  %v1639 = vunpack.c.l.b16 %v1420
  %v1640 = vunpack.c.l.b16 %v1424
  %v1641 = vunpack.c.l.b16 %v1427
  %v1642 = vunpack.c.l.b16 %v1431
  %v1643 = vunpack.c.l.b16 %v1434
  %v1644 = vunpack.c.l.b16 %v1438
  %v1645 = vunpack.c.l.b16 %v1441
  %v1646 = vunpack.c.l.b16 %v1445
  %v1647 = vunpack.c.l.b16 %v1448
  %v1648 = vunpack.c.l.b16 %v1452
  %v1649 = vunpack.c.l.b16 %v1455
  %v1650 = vunpack.c.l.b16 %v1459
  %v1651 = vunpack.c.l.b16 %v1462
  %v1652 = vunpack.c.l.b16 %v1466
  %v1653 = vunpack.c.l.b16 %v1469
  %v1654 = vunpack.c.l.b16 %v1473
  %v1655 = vunpack.c.l.b16 %v1476
  %v1656 = vunpack.c.l.b16 %v1480
  %v1657 = vunpack.c.l.b16 %v1483
  %v1658 = vunpack.c.l.b16 %v1487
  %v1659 = vunpack.c.l.b16 %v1490
  %v1660 = vunpack.c.l.b16 %v1494
  %v1661 = vunpack.c.l.b16 %v1497
  %v1662 = vunpack.c.l.b16 %v1501
  %v1663 = vunpack.c.l.b16 %v1504
  %v1664 = vunpack.c.l.b16 %v1508
  %v1665 = vunpack.c.l.b16 %v1511
  %v1666 = vunpack.c.l.b16 %v1515
  %v1667 = vunpack.c.l.b16 %v1518
  %v1668 = vunpack.c.l.b16 %v1522
  %v1669 = vunpack.c.l.b16 %v1525
  %v1670 = vunpack.c.l.b16 %v1529
  %v1671 = vunpack.c.l.b16 %v1532
  %v1672 = vunpack.c.l.b16 %v1536
  %v1673 = vunpack.c.l.b16 %v1539
  %v1674 = vunpack.c.l.b16 %v1543
  %v1675 = vunpack.c.l.b16 %v1546
  %v1676 = vunpack.c.l.b16 %v1550
  %v1677 = vunpack.c.l.b16 %v1553
  %v1678 = vunpack.c.l.b16 %v1557
  %v1679 = vunpack.c.l.b16 %v1560
  %v1680 = vunpack.c.l.b16 %v1564
  %v1681 = vunpack.c.l.b16 %v1567
  %v1682 = vunpack.c.l.b16 %v1571
  %v1683 = vunpack.c.l.b16 %v1574
  %v1684 = vunpack.c.l.b16 %v1578
  %v1685 = vunpack.c.l.b16 %v1581
  %v1686 = vunpack.c.l.b16 %v1585
  %v1687 = vunpack.c.l.b16 %v1588
  %v1688 = vunpack.c.l.b16 %v1592
  %v1689 = vunpack.c.l.b16 %v1595
  %v1690 = vunpack.c.l.b16 %v1599
  %v1691 = vunpack.c.l.b16 %v1602
  %v1692 = vunpack.c.l.b16 %v1606
  %v1693 = vunpack.c.l.b16 %v1609
  %v1694 = vunpack.c.l.b16 %v1613
  %v1695 = vunpack.c.l.b16 %v1616
  %v1696 = vunpack.c.l.b16 %v1620
  %v1697 = vunpack.c.l.b16 %v1623
  %v1698 = vunpack.c.l.b16 %v1627
  %v1699 = vunpack.c.l.b16 %v1630
  %v1700 = vunpack.c.l.b16 %v1634
  %v1701 = vunpack.c.l.b16 %v1637
  %v1702 = vpack.c.b16 %v1639, %v1638
  %v1703 = vpack.c.b16 %v1641, %v1640
  %v1704 = vpack.c.b16 %v1643, %v1642
  %v1705 = vpack.c.b16 %v1645, %v1644
  %v1706 = vpack.c.b16 %v1647, %v1646
  %v1707 = vpack.c.b16 %v1649, %v1648
  %v1708 = vpack.c.b16 %v1651, %v1650
  %v1709 = vpack.c.b16 %v1653, %v1652
  %v1710 = vpack.c.b16 %v1655, %v1654
  %v1711 = vpack.c.b16 %v1657, %v1656
  %v1712 = vpack.c.b16 %v1659, %v1658
  %v1713 = vpack.c.b16 %v1661, %v1660
  %v1714 = vpack.c.b16 %v1663, %v1662
  %v1715 = vpack.c.b16 %v1665, %v1664
  %v1716 = vpack.c.b16 %v1667, %v1666
  %v1717 = vpack.c.b16 %v1669, %v1668
  %v1718 = vpack.c.b16 %v1671, %v1670
  %v1719 = vpack.c.b16 %v1673, %v1672
  %v1720 = vpack.c.b16 %v1675, %v1674
  %v1721 = vpack.c.b16 %v1677, %v1676
  %v1722 = vpack.c.b16 %v1679, %v1678
  %v1723 = vpack.c.b16 %v1681, %v1680
  %v1724 = vpack.c.b16 %v1683, %v1682
  %v1725 = vpack.c.b16 %v1685, %v1684
  %v1726 = vpack.c.b16 %v1687, %v1686
  %v1727 = vpack.c.b16 %v1689, %v1688
  %v1728 = vpack.c.b16 %v1691, %v1690
  %v1729 = vpack.c.b16 %v1693, %v1692
  %v1730 = vpack.c.b16 %v1695, %v1694
  %v1731 = vpack.c.b16 %v1697, %v1696
  %v1732 = vpack.c.b16 %v1699, %v1698
  %v1733 = vpack.c.b16 %v1701, %v1700
  %1734 = vrot.lane.b32.xlu0 %v1702, 8
  %v1735 = vpop.permute.xlu0 %1734
  %1736 = vrot.lane.b32.xlu0 %v1703, 8
  %v1737 = vpop.permute.xlu0 %1736
  %1738 = vrot.lane.b32.xlu0 %v1704, 8
  %v1739 = vpop.permute.xlu0 %1738
  %1740 = vrot.lane.b32.xlu0 %v1705, 8
  %v1741 = vpop.permute.xlu0 %1740
  %1742 = vrot.lane.b32.xlu0 %v1706, 8
  %v1743 = vpop.permute.xlu0 %1742
  %1744 = vrot.lane.b32.xlu0 %v1707, 8
  %v1745 = vpop.permute.xlu0 %1744
  %1746 = vrot.lane.b32.xlu0 %v1708, 8
  %v1747 = vpop.permute.xlu0 %1746
  %1748 = vrot.lane.b32.xlu0 %v1709, 8
  %v1749 = vpop.permute.xlu0 %1748
  %1750 = vrot.lane.b32.xlu0 %v1710, 8
  %v1751 = vpop.permute.xlu0 %1750
  %1752 = vrot.lane.b32.xlu0 %v1711, 8
  %v1753 = vpop.permute.xlu0 %1752
  %1754 = vrot.lane.b32.xlu0 %v1712, 8
  %v1755 = vpop.permute.xlu0 %1754
  %1756 = vrot.lane.b32.xlu0 %v1713, 8
  %v1757 = vpop.permute.xlu0 %1756
  %1758 = vrot.lane.b32.xlu0 %v1714, 8
  %v1759 = vpop.permute.xlu0 %1758
  %1760 = vrot.lane.b32.xlu0 %v1715, 8
  %v1761 = vpop.permute.xlu0 %1760
  %1762 = vrot.lane.b32.xlu0 %v1716, 8
  %v1763 = vpop.permute.xlu0 %1762
  %1764 = vrot.lane.b32.xlu0 %v1717, 8
  %v1765 = vpop.permute.xlu0 %1764
  %1766 = vrot.lane.b32.xlu0 %v1718, 8
  %v1767 = vpop.permute.xlu0 %1766
  %1768 = vrot.lane.b32.xlu0 %v1719, 8
  %v1769 = vpop.permute.xlu0 %1768
  %1770 = vrot.lane.b32.xlu0 %v1720, 8
  %v1771 = vpop.permute.xlu0 %1770
  %1772 = vrot.lane.b32.xlu0 %v1721, 8
  %v1773 = vpop.permute.xlu0 %1772
  %1774 = vrot.lane.b32.xlu0 %v1722, 8
  %v1775 = vpop.permute.xlu0 %1774
  %1776 = vrot.lane.b32.xlu0 %v1723, 8
  %v1777 = vpop.permute.xlu0 %1776
  %1778 = vrot.lane.b32.xlu0 %v1724, 8
  %v1779 = vpop.permute.xlu0 %1778
  %1780 = vrot.lane.b32.xlu0 %v1725, 8
  %v1781 = vpop.permute.xlu0 %1780
  %1782 = vrot.lane.b32.xlu0 %v1726, 8
  %v1783 = vpop.permute.xlu0 %1782
  %1784 = vrot.lane.b32.xlu0 %v1727, 8
  %v1785 = vpop.permute.xlu0 %1784
  %1786 = vrot.lane.b32.xlu0 %v1728, 8
  %v1787 = vpop.permute.xlu0 %1786
  %1788 = vrot.lane.b32.xlu0 %v1729, 8
  %v1789 = vpop.permute.xlu0 %1788
  %1790 = vrot.lane.b32.xlu0 %v1730, 8
  %v1791 = vpop.permute.xlu0 %1790
  %1792 = vrot.lane.b32.xlu0 %v1731, 8
  %v1793 = vpop.permute.xlu0 %1792
  %1794 = vrot.lane.b32.xlu0 %v1732, 8
  %v1795 = vpop.permute.xlu0 %1794
  %1796 = vrot.lane.b32.xlu0 %v1733, 8
  %v1797 = vpop.permute.xlu0 %1796
  %vm1830 = vcmask 97344
  %1831 = vst.msk [vmem:[#allocation2] sm:$0xff] %vm1830, %v1735
  %1832 = vst.msk [vmem:[#allocation2 + $0x8] sm:$0xff] %vm1830, %v1737
  %1833 = vst.msk [vmem:[#allocation2 + $0x10] sm:$0xff] %vm1830, %v1739
  %1834 = vst.msk [vmem:[#allocation2 + $0x18] sm:$0xff] %vm1830, %v1741
  %1835 = vst.msk [vmem:[#allocation2 + $0x20] sm:$0xff] %vm1830, %v1743
  %1836 = vst.msk [vmem:[#allocation2 + $0x28] sm:$0xff] %vm1830, %v1745
  %1837 = vst.msk [vmem:[#allocation2 + $0x30] sm:$0xff] %vm1830, %v1747
  %1838 = vst.msk [vmem:[#allocation2 + $0x38] sm:$0xff] %vm1830, %v1749
  %1839 = vst.msk [vmem:[#allocation2 + $0x40] sm:$0xff] %vm1830, %v1751
  %1840 = vst.msk [vmem:[#allocation2 + $0x48] sm:$0xff] %vm1830, %v1753
  %1841 = vst.msk [vmem:[#allocation2 + $0x50] sm:$0xff] %vm1830, %v1755
  %1842 = vst.msk [vmem:[#allocation2 + $0x58] sm:$0xff] %vm1830, %v1757
  %1843 = vst.msk [vmem:[#allocation2 + $0x60] sm:$0xff] %vm1830, %v1759
  %1844 = vst.msk [vmem:[#allocation2 + $0x68] sm:$0xff] %vm1830, %v1761
  %1845 = vst.msk [vmem:[#allocation2 + $0x70] sm:$0xff] %vm1830, %v1763
  %1846 = vst.msk [vmem:[#allocation2 + $0x78] sm:$0xff] %vm1830, %v1765
  %1847 = vst.msk [vmem:[#allocation2 + $0x80] sm:$0xff] %vm1830, %v1767
  %1848 = vst.msk [vmem:[#allocation2 + $0x88] sm:$0xff] %vm1830, %v1769
  %1849 = vst.msk [vmem:[#allocation2 + $0x90] sm:$0xff] %vm1830, %v1771
  %1850 = vst.msk [vmem:[#allocation2 + $0x98] sm:$0xff] %vm1830, %v1773
  %1851 = vst.msk [vmem:[#allocation2 + $0xa0] sm:$0xff] %vm1830, %v1775
  %1852 = vst.msk [vmem:[#allocation2 + $0xa8] sm:$0xff] %vm1830, %v1777
  %1853 = vst.msk [vmem:[#allocation2 + $0xb0] sm:$0xff] %vm1830, %v1779
  %1854 = vst.msk [vmem:[#allocation2 + $0xb8] sm:$0xff] %vm1830, %v1781
  %1855 = vst.msk [vmem:[#allocation2 + $0xc0] sm:$0xff] %vm1830, %v1783
  %1856 = vst.msk [vmem:[#allocation2 + $0xc8] sm:$0xff] %vm1830, %v1785
  %1857 = vst.msk [vmem:[#allocation2 + $0xd0] sm:$0xff] %vm1830, %v1787
  %1858 = vst.msk [vmem:[#allocation2 + $0xd8] sm:$0xff] %vm1830, %v1789
  %1859 = vst.msk [vmem:[#allocation2 + $0xe0] sm:$0xff] %vm1830, %v1791
  %1860 = vst.msk [vmem:[#allocation2 + $0xe8] sm:$0xff] %vm1830, %v1793
  %1861 = vst.msk [vmem:[#allocation2 + $0xf0] sm:$0xff] %vm1830, %v1795
  %1862 = vst.msk [vmem:[#allocation2 + $0xf8] sm:$0xff] %vm1830, %v1797
  %v1867 = vunpack.c.l.b16 %v98
  %v1868 = vunpack.c.l.b16 %v99
  %v1869 = vunpack.c.l.b16 %v152
  %v1870 = vunpack.c.l.b16 %v153
  %v1871 = vpack.c.b16 %v1868, %v1867
  %v1872 = vpack.c.b16 %v1870, %v1869
  %1873 = vrot.lane.b32.xlu0 %v287, 12
  %v1874 = vpop.permute.xlu0 %1873
  %1875 = vrot.lane.b32.xlu0 %v288, 12
  %v1876 = vpop.permute.xlu0 %1875
  %1877 = vrot.lane.b32.xlu0 %v289, 12
  %v1878 = vpop.permute.xlu0 %1877
  %1879 = vrot.lane.b32.xlu0 %v290, 12
  %v1880 = vpop.permute.xlu0 %1879
  %1881 = vrot.lane.b32.xlu0 %v291, 12
  %v1882 = vpop.permute.xlu0 %1881
  %1883 = vrot.lane.b32.xlu0 %v292, 12
  %v1884 = vpop.permute.xlu0 %1883
  %1885 = vrot.lane.b32.xlu0 %v293, 12
  %v1886 = vpop.permute.xlu0 %1885
  %1887 = vrot.lane.b32.xlu0 %v294, 12
  %v1888 = vpop.permute.xlu0 %1887
  %1889 = vrot.lane.b32.xlu0 %v295, 12
  %v1890 = vpop.permute.xlu0 %1889
  %1891 = vrot.lane.b32.xlu0 %v296, 12
  %v1892 = vpop.permute.xlu0 %1891
  %1893 = vrot.lane.b32.xlu0 %v297, 12
  %v1894 = vpop.permute.xlu0 %1893
  %1895 = vrot.lane.b32.xlu0 %v298, 12
  %v1896 = vpop.permute.xlu0 %1895
  %1897 = vrot.lane.b32.xlu0 %v299, 12
  %v1898 = vpop.permute.xlu0 %1897
  %1899 = vrot.lane.b32.xlu0 %v300, 12
  %v1900 = vpop.permute.xlu0 %1899
  %1901 = vrot.lane.b32.xlu0 %v301, 12
  %v1902 = vpop.permute.xlu0 %1901
  %1903 = vrot.lane.b32.xlu0 %v1871, 12
  %v1904 = vpop.permute.xlu0 %1903
  %1905 = vrot.lane.b32.xlu0 %v303, 12
  %v1906 = vpop.permute.xlu0 %1905
  %1907 = vrot.lane.b32.xlu0 %v304, 12
  %v1908 = vpop.permute.xlu0 %1907
  %1909 = vrot.lane.b32.xlu0 %v305, 12
  %v1910 = vpop.permute.xlu0 %1909
  %1911 = vrot.lane.b32.xlu0 %v306, 12
  %v1912 = vpop.permute.xlu0 %1911
  %1913 = vrot.lane.b32.xlu0 %v307, 12
  %v1914 = vpop.permute.xlu0 %1913
  %1915 = vrot.lane.b32.xlu0 %v308, 12
  %v1916 = vpop.permute.xlu0 %1915
  %1917 = vrot.lane.b32.xlu0 %v309, 12
  %v1918 = vpop.permute.xlu0 %1917
  %1919 = vrot.lane.b32.xlu0 %v310, 12
  %v1920 = vpop.permute.xlu0 %1919
  %1921 = vrot.lane.b32.xlu0 %v311, 12
  %v1922 = vpop.permute.xlu0 %1921
  %1923 = vrot.lane.b32.xlu0 %v312, 12
  %v1924 = vpop.permute.xlu0 %1923
  %1925 = vrot.lane.b32.xlu0 %v313, 12
  %v1926 = vpop.permute.xlu0 %1925
  %1927 = vrot.lane.b32.xlu0 %v314, 12
  %v1928 = vpop.permute.xlu0 %1927
  %1929 = vrot.lane.b32.xlu0 %v315, 12
  %v1930 = vpop.permute.xlu0 %1929
  %1931 = vrot.lane.b32.xlu0 %v316, 12
  %v1932 = vpop.permute.xlu0 %1931
  %1933 = vrot.lane.b32.xlu0 %v317, 12
  %v1934 = vpop.permute.xlu0 %1933
  %1935 = vrot.lane.b32.xlu0 %v1872, 12
  %v1936 = vpop.permute.xlu0 %1935
  %vm1969 = vcmask 130144
  %1970 = vst.msk [vmem:[#allocation2] sm:$0xff] %vm1969, %v1874
  %1971 = vst.msk [vmem:[#allocation2 + $0x8] sm:$0xff] %vm1969, %v1876
  %1972 = vst.msk [vmem:[#allocation2 + $0x10] sm:$0xff] %vm1969, %v1878
  %1973 = vst.msk [vmem:[#allocation2 + $0x18] sm:$0xff] %vm1969, %v1880
  %1974 = vst.msk [vmem:[#allocation2 + $0x20] sm:$0xff] %vm1969, %v1882
  %1975 = vst.msk [vmem:[#allocation2 + $0x28] sm:$0xff] %vm1969, %v1884
  %1976 = vst.msk [vmem:[#allocation2 + $0x30] sm:$0xff] %vm1969, %v1886
  %1977 = vst.msk [vmem:[#allocation2 + $0x38] sm:$0xff] %vm1969, %v1888
  %1978 = vst.msk [vmem:[#allocation2 + $0x40] sm:$0xff] %vm1969, %v1890
  %1979 = vst.msk [vmem:[#allocation2 + $0x48] sm:$0xff] %vm1969, %v1892
  %1980 = vst.msk [vmem:[#allocation2 + $0x50] sm:$0xff] %vm1969, %v1894
  %1981 = vst.msk [vmem:[#allocation2 + $0x58] sm:$0xff] %vm1969, %v1896
  %1982 = vst.msk [vmem:[#allocation2 + $0x60] sm:$0xff] %vm1969, %v1898
  %1983 = vst.msk [vmem:[#allocation2 + $0x68] sm:$0xff] %vm1969, %v1900
  %1984 = vst.msk [vmem:[#allocation2 + $0x70] sm:$0xff] %vm1969, %v1902
  %1985 = vst.msk [vmem:[#allocation2 + $0x78] sm:$0xff] %vm1969, %v1904
  %1986 = vst.msk [vmem:[#allocation2 + $0x80] sm:$0xff] %vm1969, %v1906
  %1987 = vst.msk [vmem:[#allocation2 + $0x88] sm:$0xff] %vm1969, %v1908
  %1988 = vst.msk [vmem:[#allocation2 + $0x90] sm:$0xff] %vm1969, %v1910
  %1989 = vst.msk [vmem:[#allocation2 + $0x98] sm:$0xff] %vm1969, %v1912
  %1990 = vst.msk [vmem:[#allocation2 + $0xa0] sm:$0xff] %vm1969, %v1914
  %1991 = vst.msk [vmem:[#allocation2 + $0xa8] sm:$0xff] %vm1969, %v1916
  %1992 = vst.msk [vmem:[#allocation2 + $0xb0] sm:$0xff] %vm1969, %v1918
  %1993 = vst.msk [vmem:[#allocation2 + $0xb8] sm:$0xff] %vm1969, %v1920
  %1994 = vst.msk [vmem:[#allocation2 + $0xc0] sm:$0xff] %vm1969, %v1922
  %1995 = vst.msk [vmem:[#allocation2 + $0xc8] sm:$0xff] %vm1969, %v1924
  %1996 = vst.msk [vmem:[#allocation2 + $0xd0] sm:$0xff] %vm1969, %v1926
  %1997 = vst.msk [vmem:[#allocation2 + $0xd8] sm:$0xff] %vm1969, %v1928
  %1998 = vst.msk [vmem:[#allocation2 + $0xe0] sm:$0xff] %vm1969, %v1930
  %1999 = vst.msk [vmem:[#allocation2 + $0xe8] sm:$0xff] %vm1969, %v1932
  %2000 = vst.msk [vmem:[#allocation2 + $0xf0] sm:$0xff] %vm1969, %v1934
  %2001 = vst.msk [vmem:[#allocation2 + $0xf8] sm:$0xff] %vm1969, %v1936
  %v2003 = vshrl.u32 %v98, 16
  %v2005 = vrot.slane %v2003, 4
  %v2006 = vshll.u32 %v98, 16
  %v2008 = vrot.slane %v2006, 5
  %v2009 = vor.u32 %v2005, %v2008
  %v2010 = vrot.slane %v2009, 4
  %v2012 = vshll.u32 %v99, 16
  %v2014 = vrot.slane %v2012, 5
  %v2015 = vsel %vm385, %v2010, %v2014
  %v2016 = vshrl.u32 %v99, 16
  %v2018 = vrot.slane %v2016, 4
  %v2019 = vor.u32 %v2018, %v2014
  %v2020 = vrot.slane %v2019, 4
  %v2022 = vshll.u32 %v100, 16
  %v2024 = vrot.slane %v2022, 5
  %v2025 = vsel %vm385, %v2020, %v2024
  %v2027 = vshrl.u32 %v152, 16
  %v2029 = vrot.slane %v2027, 4
  %v2030 = vshll.u32 %v152, 16
  %v2032 = vrot.slane %v2030, 5
  %v2033 = vor.u32 %v2029, %v2032
  %v2034 = vrot.slane %v2033, 4
  %v2036 = vshll.u32 %v153, 16
  %v2038 = vrot.slane %v2036, 5
  %v2039 = vsel %vm385, %v2034, %v2038
  %v2040 = vshrl.u32 %v153, 16
  %v2042 = vrot.slane %v2040, 4
  %v2043 = vor.u32 %v2042, %v2038
  %v2044 = vrot.slane %v2043, 4
  %v2046 = vshll.u32 %v154, 16
  %v2048 = vrot.slane %v2046, 5
  %v2049 = vsel %vm385, %v2044, %v2048
  %v2050 = vunpack.c.l.b16 %v2015
  %v2051 = vunpack.c.l.b16 %v2025
  %v2052 = vunpack.c.l.b16 %v2039
  %v2053 = vunpack.c.l.b16 %v2049
  %v2054 = vpack.c.b16 %v2051, %v2050
  %v2055 = vpack.c.b16 %v2053, %v2052
  %2056 = vrot.lane.b32.xlu0 %v1219, 16
  %v2057 = vpop.permute.xlu0 %2056
  %2058 = vrot.lane.b32.xlu0 %v1220, 16
  %v2059 = vpop.permute.xlu0 %2058
  %2060 = vrot.lane.b32.xlu0 %v1221, 16
  %v2061 = vpop.permute.xlu0 %2060
  %2062 = vrot.lane.b32.xlu0 %v1222, 16
  %v2063 = vpop.permute.xlu0 %2062
  %2064 = vrot.lane.b32.xlu0 %v1223, 16
  %v2065 = vpop.permute.xlu0 %2064
  %2066 = vrot.lane.b32.xlu0 %v1224, 16
  %v2067 = vpop.permute.xlu0 %2066
  %2068 = vrot.lane.b32.xlu0 %v1225, 16
  %v2069 = vpop.permute.xlu0 %2068
  %2070 = vrot.lane.b32.xlu0 %v1226, 16
  %v2071 = vpop.permute.xlu0 %2070
  %2072 = vrot.lane.b32.xlu0 %v1227, 16
  %v2073 = vpop.permute.xlu0 %2072
  %2074 = vrot.lane.b32.xlu0 %v1228, 16
  %v2075 = vpop.permute.xlu0 %2074
  %2076 = vrot.lane.b32.xlu0 %v1229, 16
  %v2077 = vpop.permute.xlu0 %2076
  %2078 = vrot.lane.b32.xlu0 %v1230, 16
  %v2079 = vpop.permute.xlu0 %2078
  %2080 = vrot.lane.b32.xlu0 %v1231, 16
  %v2081 = vpop.permute.xlu0 %2080
  %2082 = vrot.lane.b32.xlu0 %v1232, 16
  %v2083 = vpop.permute.xlu0 %2082
  %2084 = vrot.lane.b32.xlu0 %v1233, 16
  %v2085 = vpop.permute.xlu0 %2084
  %2086 = vrot.lane.b32.xlu0 %v2054, 16
  %v2087 = vpop.permute.xlu0 %2086
  %2088 = vrot.lane.b32.xlu0 %v1235, 16
  %v2089 = vpop.permute.xlu0 %2088
  %2090 = vrot.lane.b32.xlu0 %v1236, 16
  %v2091 = vpop.permute.xlu0 %2090
  %2092 = vrot.lane.b32.xlu0 %v1237, 16
  %v2093 = vpop.permute.xlu0 %2092
  %2094 = vrot.lane.b32.xlu0 %v1238, 16
  %v2095 = vpop.permute.xlu0 %2094
  %2096 = vrot.lane.b32.xlu0 %v1239, 16
  %v2097 = vpop.permute.xlu0 %2096
  %2098 = vrot.lane.b32.xlu0 %v1240, 16
  %v2099 = vpop.permute.xlu0 %2098
  %2100 = vrot.lane.b32.xlu0 %v1241, 16
  %v2101 = vpop.permute.xlu0 %2100
  %2102 = vrot.lane.b32.xlu0 %v1242, 16
  %v2103 = vpop.permute.xlu0 %2102
  %2104 = vrot.lane.b32.xlu0 %v1243, 16
  %v2105 = vpop.permute.xlu0 %2104
  %2106 = vrot.lane.b32.xlu0 %v1244, 16
  %v2107 = vpop.permute.xlu0 %2106
  %2108 = vrot.lane.b32.xlu0 %v1245, 16
  %v2109 = vpop.permute.xlu0 %2108
  %2110 = vrot.lane.b32.xlu0 %v1246, 16
  %v2111 = vpop.permute.xlu0 %2110
  %2112 = vrot.lane.b32.xlu0 %v1247, 16
  %v2113 = vpop.permute.xlu0 %2112
  %2114 = vrot.lane.b32.xlu0 %v1248, 16
  %v2115 = vpop.permute.xlu0 %2114
  %2116 = vrot.lane.b32.xlu0 %v1249, 16
  %v2117 = vpop.permute.xlu0 %2116
  %2118 = vrot.lane.b32.xlu0 %v2055, 16
  %v2119 = vpop.permute.xlu0 %2118
  %vm2152 = vcmask 162944
  %2153 = vst.msk [vmem:[#allocation2] sm:$0xff] %vm2152, %v2057
  %2154 = vst.msk [vmem:[#allocation2 + $0x8] sm:$0xff] %vm2152, %v2059
  %2155 = vst.msk [vmem:[#allocation2 + $0x10] sm:$0xff] %vm2152, %v2061
  %2156 = vst.msk [vmem:[#allocation2 + $0x18] sm:$0xff] %vm2152, %v2063
  %2157 = vst.msk [vmem:[#allocation2 + $0x20] sm:$0xff] %vm2152, %v2065
  %2158 = vst.msk [vmem:[#allocation2 + $0x28] sm:$0xff] %vm2152, %v2067
  %2159 = vst.msk [vmem:[#allocation2 + $0x30] sm:$0xff] %vm2152, %v2069
  %2160 = vst.msk [vmem:[#allocation2 + $0x38] sm:$0xff] %vm2152, %v2071
  %2161 = vst.msk [vmem:[#allocation2 + $0x40] sm:$0xff] %vm2152, %v2073
  %2162 = vst.msk [vmem:[#allocation2 + $0x48] sm:$0xff] %vm2152, %v2075
  %2163 = vst.msk [vmem:[#allocation2 + $0x50] sm:$0xff] %vm2152, %v2077
  %2164 = vst.msk [vmem:[#allocation2 + $0x58] sm:$0xff] %vm2152, %v2079
  %2165 = vst.msk [vmem:[#allocation2 + $0x60] sm:$0xff] %vm2152, %v2081
  %2166 = vst.msk [vmem:[#allocation2 + $0x68] sm:$0xff] %vm2152, %v2083
  %2167 = vst.msk [vmem:[#allocation2 + $0x70] sm:$0xff] %vm2152, %v2085
  %2168 = vst.msk [vmem:[#allocation2 + $0x78] sm:$0xff] %vm2152, %v2087
  %2169 = vst.msk [vmem:[#allocation2 + $0x80] sm:$0xff] %vm2152, %v2089
  %2170 = vst.msk [vmem:[#allocation2 + $0x88] sm:$0xff] %vm2152, %v2091
  %2171 = vst.msk [vmem:[#allocation2 + $0x90] sm:$0xff] %vm2152, %v2093
  %2172 = vst.msk [vmem:[#allocation2 + $0x98] sm:$0xff] %vm2152, %v2095
  %2173 = vst.msk [vmem:[#allocation2 + $0xa0] sm:$0xff] %vm2152, %v2097
  %2174 = vst.msk [vmem:[#allocation2 + $0xa8] sm:$0xff] %vm2152, %v2099
  %2175 = vst.msk [vmem:[#allocation2 + $0xb0] sm:$0xff] %vm2152, %v2101
  %2176 = vst.msk [vmem:[#allocation2 + $0xb8] sm:$0xff] %vm2152, %v2103
  %2177 = vst.msk [vmem:[#allocation2 + $0xc0] sm:$0xff] %vm2152, %v2105
  %2178 = vst.msk [vmem:[#allocation2 + $0xc8] sm:$0xff] %vm2152, %v2107
  %2179 = vst.msk [vmem:[#allocation2 + $0xd0] sm:$0xff] %vm2152, %v2109
  %2180 = vst.msk [vmem:[#allocation2 + $0xd8] sm:$0xff] %vm2152, %v2111
  %2181 = vst.msk [vmem:[#allocation2 + $0xe0] sm:$0xff] %vm2152, %v2113
  %2182 = vst.msk [vmem:[#allocation2 + $0xe8] sm:$0xff] %vm2152, %v2115
  %2183 = vst.msk [vmem:[#allocation2 + $0xf0] sm:$0xff] %vm2152, %v2117
  %2184 = vst.msk [vmem:[#allocation2 + $0xf8] sm:$0xff] %vm2152, %v2119
  %v2187 = vrot.slane %v98, 5
  %v2188 = vrot.slane %v2187, 4
  %v2189 = vrot.slane %v99, 5
  %v2190 = vsel %vm1413, %v2188, %v2189
  %v2191 = vrot.slane %v2189, 4
  %v2192 = vrot.slane %v100, 5
  %v2193 = vsel %vm1413, %v2191, %v2192
  %v2194 = vrot.slane %v152, 5
  %v2195 = vrot.slane %v2194, 4
  %v2196 = vrot.slane %v153, 5
  %v2197 = vsel %vm1413, %v2195, %v2196
  %v2198 = vrot.slane %v2196, 4
  %v2199 = vrot.slane %v154, 5
  %v2200 = vsel %vm1413, %v2198, %v2199
  %v2201 = vunpack.c.l.b16 %v2190
  %v2202 = vunpack.c.l.b16 %v2193
  %v2203 = vunpack.c.l.b16 %v2197
  %v2204 = vunpack.c.l.b16 %v2200
  %v2205 = vpack.c.b16 %v2202, %v2201
  %v2206 = vpack.c.b16 %v2204, %v2203
  %2207 = vrot.lane.b32.xlu0 %v1703, 20
  %v2208 = vpop.permute.xlu0 %2207
  %2209 = vrot.lane.b32.xlu0 %v1704, 20
  %v2210 = vpop.permute.xlu0 %2209
  %2211 = vrot.lane.b32.xlu0 %v1705, 20
  %v2212 = vpop.permute.xlu0 %2211
  %2213 = vrot.lane.b32.xlu0 %v1706, 20
  %v2214 = vpop.permute.xlu0 %2213
  %2215 = vrot.lane.b32.xlu0 %v1707, 20
  %v2216 = vpop.permute.xlu0 %2215
  %2217 = vrot.lane.b32.xlu0 %v1708, 20
  %v2218 = vpop.permute.xlu0 %2217
  %2219 = vrot.lane.b32.xlu0 %v1709, 20
  %v2220 = vpop.permute.xlu0 %2219
  %2221 = vrot.lane.b32.xlu0 %v1710, 20
  %v2222 = vpop.permute.xlu0 %2221
  %2223 = vrot.lane.b32.xlu0 %v1711, 20
  %v2224 = vpop.permute.xlu0 %2223
  %2225 = vrot.lane.b32.xlu0 %v1712, 20
  %v2226 = vpop.permute.xlu0 %2225
  %2227 = vrot.lane.b32.xlu0 %v1713, 20
  %v2228 = vpop.permute.xlu0 %2227
  %2229 = vrot.lane.b32.xlu0 %v1714, 20
  %v2230 = vpop.permute.xlu0 %2229
  %2231 = vrot.lane.b32.xlu0 %v1715, 20
  %v2232 = vpop.permute.xlu0 %2231
  %2233 = vrot.lane.b32.xlu0 %v1716, 20
  %v2234 = vpop.permute.xlu0 %2233
  %2235 = vrot.lane.b32.xlu0 %v1717, 20
  %v2236 = vpop.permute.xlu0 %2235
  %2237 = vrot.lane.b32.xlu0 %v2205, 20
  %v2238 = vpop.permute.xlu0 %2237
  %2239 = vrot.lane.b32.xlu0 %v1719, 20
  %v2240 = vpop.permute.xlu0 %2239
  %2241 = vrot.lane.b32.xlu0 %v1720, 20
  %v2242 = vpop.permute.xlu0 %2241
  %2243 = vrot.lane.b32.xlu0 %v1721, 20
  %v2244 = vpop.permute.xlu0 %2243
  %2245 = vrot.lane.b32.xlu0 %v1722, 20
  %v2246 = vpop.permute.xlu0 %2245
  %2247 = vrot.lane.b32.xlu0 %v1723, 20
  %v2248 = vpop.permute.xlu0 %2247
  %2249 = vrot.lane.b32.xlu0 %v1724, 20
  %v2250 = vpop.permute.xlu0 %2249
  %2251 = vrot.lane.b32.xlu0 %v1725, 20
  %v2252 = vpop.permute.xlu0 %2251
  %2253 = vrot.lane.b32.xlu0 %v1726, 20
  %v2254 = vpop.permute.xlu0 %2253
  %2255 = vrot.lane.b32.xlu0 %v1727, 20
  %v2256 = vpop.permute.xlu0 %2255
  %2257 = vrot.lane.b32.xlu0 %v1728, 20
  %v2258 = vpop.permute.xlu0 %2257
  %2259 = vrot.lane.b32.xlu0 %v1729, 20
  %v2260 = vpop.permute.xlu0 %2259
  %2261 = vrot.lane.b32.xlu0 %v1730, 20
  %v2262 = vpop.permute.xlu0 %2261
  %2263 = vrot.lane.b32.xlu0 %v1731, 20
  %v2264 = vpop.permute.xlu0 %2263
  %2265 = vrot.lane.b32.xlu0 %v1732, 20
  %v2266 = vpop.permute.xlu0 %2265
  %2267 = vrot.lane.b32.xlu0 %v1733, 20
  %v2268 = vpop.permute.xlu0 %2267
  %2269 = vrot.lane.b32.xlu0 %v2206, 20
  %v2270 = vpop.permute.xlu0 %2269
  %vm2303 = vcmask 195744
  %2304 = vst.msk [vmem:[#allocation2] sm:$0xff] %vm2303, %v2208
  %2305 = vst.msk [vmem:[#allocation2 + $0x8] sm:$0xff] %vm2303, %v2210
  %2306 = vst.msk [vmem:[#allocation2 + $0x10] sm:$0xff] %vm2303, %v2212
  %2307 = vst.msk [vmem:[#allocation2 + $0x18] sm:$0xff] %vm2303, %v2214
  %2308 = vst.msk [vmem:[#allocation2 + $0x20] sm:$0xff] %vm2303, %v2216
  %2309 = vst.msk [vmem:[#allocation2 + $0x28] sm:$0xff] %vm2303, %v2218
  %2310 = vst.msk [vmem:[#allocation2 + $0x30] sm:$0xff] %vm2303, %v2220
  %2311 = vst.msk [vmem:[#allocation2 + $0x38] sm:$0xff] %vm2303, %v2222
  %2312 = vst.msk [vmem:[#allocation2 + $0x40] sm:$0xff] %vm2303, %v2224
  %2313 = vst.msk [vmem:[#allocation2 + $0x48] sm:$0xff] %vm2303, %v2226
  %2314 = vst.msk [vmem:[#allocation2 + $0x50] sm:$0xff] %vm2303, %v2228
  %2315 = vst.msk [vmem:[#allocation2 + $0x58] sm:$0xff] %vm2303, %v2230
  %2316 = vst.msk [vmem:[#allocation2 + $0x60] sm:$0xff] %vm2303, %v2232
  %2317 = vst.msk [vmem:[#allocation2 + $0x68] sm:$0xff] %vm2303, %v2234
  %2318 = vst.msk [vmem:[#allocation2 + $0x70] sm:$0xff] %vm2303, %v2236
  %2319 = vst.msk [vmem:[#allocation2 + $0x78] sm:$0xff] %vm2303, %v2238
  %2320 = vst.msk [vmem:[#allocation2 + $0x80] sm:$0xff] %vm2303, %v2240
  %2321 = vst.msk [vmem:[#allocation2 + $0x88] sm:$0xff] %vm2303, %v2242
  %2322 = vst.msk [vmem:[#allocation2 + $0x90] sm:$0xff] %vm2303, %v2244
  %2323 = vst.msk [vmem:[#allocation2 + $0x98] sm:$0xff] %vm2303, %v2246
  %2324 = vst.msk [vmem:[#allocation2 + $0xa0] sm:$0xff] %vm2303, %v2248
  %2325 = vst.msk [vmem:[#allocation2 + $0xa8] sm:$0xff] %vm2303, %v2250
  %2326 = vst.msk [vmem:[#allocation2 + $0xb0] sm:$0xff] %vm2303, %v2252
  %2327 = vst.msk [vmem:[#allocation2 + $0xb8] sm:$0xff] %vm2303, %v2254
  %2328 = vst.msk [vmem:[#allocation2 + $0xc0] sm:$0xff] %vm2303, %v2256
  %2329 = vst.msk [vmem:[#allocation2 + $0xc8] sm:$0xff] %vm2303, %v2258
  %2330 = vst.msk [vmem:[#allocation2 + $0xd0] sm:$0xff] %vm2303, %v2260
  %2331 = vst.msk [vmem:[#allocation2 + $0xd8] sm:$0xff] %vm2303, %v2262
  %2332 = vst.msk [vmem:[#allocation2 + $0xe0] sm:$0xff] %vm2303, %v2264
  %2333 = vst.msk [vmem:[#allocation2 + $0xe8] sm:$0xff] %vm2303, %v2266
  %2334 = vst.msk [vmem:[#allocation2 + $0xf0] sm:$0xff] %vm2303, %v2268
  %2335 = vst.msk [vmem:[#allocation2 + $0xf8] sm:$0xff] %vm2303, %v2270
  %v2340 = vunpack.c.l.b16 %v101
  %v2341 = vunpack.c.l.b16 %v102
  %v2342 = vunpack.c.l.b16 %v155
  %v2343 = vunpack.c.l.b16 %v156
  %v2344 = vpack.c.b16 %v2341, %v2340
  %v2345 = vpack.c.b16 %v2343, %v2342
  %2346 = vrot.lane.b32.xlu0 %v288, 24
  %v2347 = vpop.permute.xlu0 %2346
  %2348 = vrot.lane.b32.xlu0 %v289, 24
  %v2349 = vpop.permute.xlu0 %2348
  %2350 = vrot.lane.b32.xlu0 %v290, 24
  %v2351 = vpop.permute.xlu0 %2350
  %2352 = vrot.lane.b32.xlu0 %v291, 24
  %v2353 = vpop.permute.xlu0 %2352
  %2354 = vrot.lane.b32.xlu0 %v292, 24
  %v2355 = vpop.permute.xlu0 %2354
  %2356 = vrot.lane.b32.xlu0 %v293, 24
  %v2357 = vpop.permute.xlu0 %2356
  %2358 = vrot.lane.b32.xlu0 %v294, 24
  %v2359 = vpop.permute.xlu0 %2358
  %2360 = vrot.lane.b32.xlu0 %v295, 24
  %v2361 = vpop.permute.xlu0 %2360
  %2362 = vrot.lane.b32.xlu0 %v296, 24
  %v2363 = vpop.permute.xlu0 %2362
  %2364 = vrot.lane.b32.xlu0 %v297, 24
  %v2365 = vpop.permute.xlu0 %2364
  %2366 = vrot.lane.b32.xlu0 %v298, 24
  %v2367 = vpop.permute.xlu0 %2366
  %2368 = vrot.lane.b32.xlu0 %v299, 24
  %v2369 = vpop.permute.xlu0 %2368
  %2370 = vrot.lane.b32.xlu0 %v300, 24
  %v2371 = vpop.permute.xlu0 %2370
  %2372 = vrot.lane.b32.xlu0 %v301, 24
  %v2373 = vpop.permute.xlu0 %2372
  %2374 = vrot.lane.b32.xlu0 %v1871, 24
  %v2375 = vpop.permute.xlu0 %2374
  %2376 = vrot.lane.b32.xlu0 %v2344, 24
  %v2377 = vpop.permute.xlu0 %2376
  %2378 = vrot.lane.b32.xlu0 %v304, 24
  %v2379 = vpop.permute.xlu0 %2378
  %2380 = vrot.lane.b32.xlu0 %v305, 24
  %v2381 = vpop.permute.xlu0 %2380
  %2382 = vrot.lane.b32.xlu0 %v306, 24
  %v2383 = vpop.permute.xlu0 %2382
  %2384 = vrot.lane.b32.xlu0 %v307, 24
  %v2385 = vpop.permute.xlu0 %2384
  %2386 = vrot.lane.b32.xlu0 %v308, 24
  %v2387 = vpop.permute.xlu0 %2386
  %2388 = vrot.lane.b32.xlu0 %v309, 24
  %v2389 = vpop.permute.xlu0 %2388
  %2390 = vrot.lane.b32.xlu0 %v310, 24
  %v2391 = vpop.permute.xlu0 %2390
  %2392 = vrot.lane.b32.xlu0 %v311, 24
  %v2393 = vpop.permute.xlu0 %2392
  %2394 = vrot.lane.b32.xlu0 %v312, 24
  %v2395 = vpop.permute.xlu0 %2394
  %2396 = vrot.lane.b32.xlu0 %v313, 24
  %v2397 = vpop.permute.xlu0 %2396
  %2398 = vrot.lane.b32.xlu0 %v314, 24
  %v2399 = vpop.permute.xlu0 %2398
  %2400 = vrot.lane.b32.xlu0 %v315, 24
  %v2401 = vpop.permute.xlu0 %2400
  %2402 = vrot.lane.b32.xlu0 %v316, 24
  %v2403 = vpop.permute.xlu0 %2402
  %2404 = vrot.lane.b32.xlu0 %v317, 24
  %v2405 = vpop.permute.xlu0 %2404
  %2406 = vrot.lane.b32.xlu0 %v1872, 24
  %v2407 = vpop.permute.xlu0 %2406
  %2408 = vrot.lane.b32.xlu0 %v2345, 24
  %v2409 = vpop.permute.xlu0 %2408
  %vm2442 = vcmask 228544
  %2443 = vst.msk [vmem:[#allocation2] sm:$0xff] %vm2442, %v2347
  %2444 = vst.msk [vmem:[#allocation2 + $0x8] sm:$0xff] %vm2442, %v2349
  %2445 = vst.msk [vmem:[#allocation2 + $0x10] sm:$0xff] %vm2442, %v2351
  %2446 = vst.msk [vmem:[#allocation2 + $0x18] sm:$0xff] %vm2442, %v2353
  %2447 = vst.msk [vmem:[#allocation2 + $0x20] sm:$0xff] %vm2442, %v2355
  %2448 = vst.msk [vmem:[#allocation2 + $0x28] sm:$0xff] %vm2442, %v2357
  %2449 = vst.msk [vmem:[#allocation2 + $0x30] sm:$0xff] %vm2442, %v2359
  %2450 = vst.msk [vmem:[#allocation2 + $0x38] sm:$0xff] %vm2442, %v2361
  %2451 = vst.msk [vmem:[#allocation2 + $0x40] sm:$0xff] %vm2442, %v2363
  %2452 = vst.msk [vmem:[#allocation2 + $0x48] sm:$0xff] %vm2442, %v2365
  %2453 = vst.msk [vmem:[#allocation2 + $0x50] sm:$0xff] %vm2442, %v2367
  %2454 = vst.msk [vmem:[#allocation2 + $0x58] sm:$0xff] %vm2442, %v2369
  %2455 = vst.msk [vmem:[#allocation2 + $0x60] sm:$0xff] %vm2442, %v2371
  %2456 = vst.msk [vmem:[#allocation2 + $0x68] sm:$0xff] %vm2442, %v2373
  %2457 = vst.msk [vmem:[#allocation2 + $0x70] sm:$0xff] %vm2442, %v2375
  %2458 = vst.msk [vmem:[#allocation2 + $0x78] sm:$0xff] %vm2442, %v2377
  %2459 = vst.msk [vmem:[#allocation2 + $0x80] sm:$0xff] %vm2442, %v2379
  %2460 = vst.msk [vmem:[#allocation2 + $0x88] sm:$0xff] %vm2442, %v2381
  %2461 = vst.msk [vmem:[#allocation2 + $0x90] sm:$0xff] %vm2442, %v2383
  %2462 = vst.msk [vmem:[#allocation2 + $0x98] sm:$0xff] %vm2442, %v2385
  %2463 = vst.msk [vmem:[#allocation2 + $0xa0] sm:$0xff] %vm2442, %v2387
  %2464 = vst.msk [vmem:[#allocation2 + $0xa8] sm:$0xff] %vm2442, %v2389
  %2465 = vst.msk [vmem:[#allocation2 + $0xb0] sm:$0xff] %vm2442, %v2391
  %2466 = vst.msk [vmem:[#allocation2 + $0xb8] sm:$0xff] %vm2442, %v2393
  %2467 = vst.msk [vmem:[#allocation2 + $0xc0] sm:$0xff] %vm2442, %v2395
  %2468 = vst.msk [vmem:[#allocation2 + $0xc8] sm:$0xff] %vm2442, %v2397
  %2469 = vst.msk [vmem:[#allocation2 + $0xd0] sm:$0xff] %vm2442, %v2399
  %2470 = vst.msk [vmem:[#allocation2 + $0xd8] sm:$0xff] %vm2442, %v2401
  %2471 = vst.msk [vmem:[#allocation2 + $0xe0] sm:$0xff] %vm2442, %v2403
  %2472 = vst.msk [vmem:[#allocation2 + $0xe8] sm:$0xff] %vm2442, %v2405
  %2473 = vst.msk [vmem:[#allocation2 + $0xf0] sm:$0xff] %vm2442, %v2407
  %2474 = vst.msk [vmem:[#allocation2 + $0xf8] sm:$0xff] %vm2442, %v2409
  %v2476 = vshrl.u32 %v101, 16
  %v2478 = vrot.slane %v2476, 4
  %v2479 = vshll.u32 %v101, 16
  %v2481 = vrot.slane %v2479, 5
  %v2482 = vor.u32 %v2478, %v2481
  %v2483 = vrot.slane %v2482, 4
  %v2485 = vshll.u32 %v102, 16
  %v2487 = vrot.slane %v2485, 5
  %v2488 = vsel %vm385, %v2483, %v2487
  %v2489 = vshrl.u32 %v102, 16
  %v2491 = vrot.slane %v2489, 4
  %v2492 = vor.u32 %v2491, %v2487
  %v2493 = vrot.slane %v2492, 4
  %v2495 = vshll.u32 %v103, 16
  %v2497 = vrot.slane %v2495, 5
  %v2498 = vsel %vm385, %v2493, %v2497
  %v2500 = vshrl.u32 %v155, 16
  %v2502 = vrot.slane %v2500, 4
  %v2503 = vshll.u32 %v155, 16
  %v2505 = vrot.slane %v2503, 5
  %v2506 = vor.u32 %v2502, %v2505
  %v2507 = vrot.slane %v2506, 4
  %v2509 = vshll.u32 %v156, 16
  %v2511 = vrot.slane %v2509, 5
  %v2512 = vsel %vm385, %v2507, %v2511
  %v2513 = vshrl.u32 %v156, 16
  %v2515 = vrot.slane %v2513, 4
  %v2516 = vor.u32 %v2515, %v2511
  %v2517 = vrot.slane %v2516, 4
  %v2519 = vshll.u32 %v157, 16
  %v2521 = vrot.slane %v2519, 5
  %v2522 = vsel %vm385, %v2517, %v2521
  %v2523 = vunpack.c.l.b16 %v2488
  %v2524 = vunpack.c.l.b16 %v2498
  %v2525 = vunpack.c.l.b16 %v2512
  %v2526 = vunpack.c.l.b16 %v2522
  %v2527 = vpack.c.b16 %v2524, %v2523
  %v2528 = vpack.c.b16 %v2526, %v2525
  %2529 = vrot.lane.b32.xlu0 %v1220, 28
  %v2530 = vpop.permute.xlu0 %2529
  %2531 = vrot.lane.b32.xlu0 %v1221, 28
  %v2532 = vpop.permute.xlu0 %2531
  %2533 = vrot.lane.b32.xlu0 %v1222, 28
  %v2534 = vpop.permute.xlu0 %2533
  %2535 = vrot.lane.b32.xlu0 %v1223, 28
  %v2536 = vpop.permute.xlu0 %2535
  %2537 = vrot.lane.b32.xlu0 %v1224, 28
  %v2538 = vpop.permute.xlu0 %2537
  %2539 = vrot.lane.b32.xlu0 %v1225, 28
  %v2540 = vpop.permute.xlu0 %2539
  %2541 = vrot.lane.b32.xlu0 %v1226, 28
  %v2542 = vpop.permute.xlu0 %2541
  %2543 = vrot.lane.b32.xlu0 %v1227, 28
  %v2544 = vpop.permute.xlu0 %2543
  %2545 = vrot.lane.b32.xlu0 %v1228, 28
  %v2546 = vpop.permute.xlu0 %2545
  %2547 = vrot.lane.b32.xlu0 %v1229, 28
  %v2548 = vpop.permute.xlu0 %2547
  %2549 = vrot.lane.b32.xlu0 %v1230, 28
  %v2550 = vpop.permute.xlu0 %2549
  %2551 = vrot.lane.b32.xlu0 %v1231, 28
  %v2552 = vpop.permute.xlu0 %2551
  %2553 = vrot.lane.b32.xlu0 %v1232, 28
  %v2554 = vpop.permute.xlu0 %2553
  %2555 = vrot.lane.b32.xlu0 %v1233, 28
  %v2556 = vpop.permute.xlu0 %2555
  %2557 = vrot.lane.b32.xlu0 %v2054, 28
  %v2558 = vpop.permute.xlu0 %2557
  %2559 = vrot.lane.b32.xlu0 %v2527, 28
  %v2560 = vpop.permute.xlu0 %2559
  %2561 = vrot.lane.b32.xlu0 %v1236, 28
  %v2562 = vpop.permute.xlu0 %2561
  %2563 = vrot.lane.b32.xlu0 %v1237, 28
  %v2564 = vpop.permute.xlu0 %2563
  %2565 = vrot.lane.b32.xlu0 %v1238, 28
  %v2566 = vpop.permute.xlu0 %2565
  %2567 = vrot.lane.b32.xlu0 %v1239, 28
  %v2568 = vpop.permute.xlu0 %2567
  %2569 = vrot.lane.b32.xlu0 %v1240, 28
  %v2570 = vpop.permute.xlu0 %2569
  %2571 = vrot.lane.b32.xlu0 %v1241, 28
  %v2572 = vpop.permute.xlu0 %2571
  %2573 = vrot.lane.b32.xlu0 %v1242, 28
  %v2574 = vpop.permute.xlu0 %2573
  %2575 = vrot.lane.b32.xlu0 %v1243, 28
  %v2576 = vpop.permute.xlu0 %2575
  %2577 = vrot.lane.b32.xlu0 %v1244, 28
  %v2578 = vpop.permute.xlu0 %2577
  %2579 = vrot.lane.b32.xlu0 %v1245, 28
  %v2580 = vpop.permute.xlu0 %2579
  %2581 = vrot.lane.b32.xlu0 %v1246, 28
  %v2582 = vpop.permute.xlu0 %2581
  %2583 = vrot.lane.b32.xlu0 %v1247, 28
  %v2584 = vpop.permute.xlu0 %2583
  %2585 = vrot.lane.b32.xlu0 %v1248, 28
  %v2586 = vpop.permute.xlu0 %2585
  %2587 = vrot.lane.b32.xlu0 %v1249, 28
  %v2588 = vpop.permute.xlu0 %2587
  %2589 = vrot.lane.b32.xlu0 %v2055, 28
  %v2590 = vpop.permute.xlu0 %2589
  %2591 = vrot.lane.b32.xlu0 %v2528, 28
  %v2592 = vpop.permute.xlu0 %2591
  %vm2625 = vcmask 261344
  %2626 = vst.msk [vmem:[#allocation2] sm:$0xff] %vm2625, %v2530
  %2627 = vst.msk [vmem:[#allocation2 + $0x8] sm:$0xff] %vm2625, %v2532
  %2628 = vst.msk [vmem:[#allocation2 + $0x10] sm:$0xff] %vm2625, %v2534
  %2629 = vst.msk [vmem:[#allocation2 + $0x18] sm:$0xff] %vm2625, %v2536
  %2630 = vst.msk [vmem:[#allocation2 + $0x20] sm:$0xff] %vm2625, %v2538
  %2631 = vst.msk [vmem:[#allocation2 + $0x28] sm:$0xff] %vm2625, %v2540
  %2632 = vst.msk [vmem:[#allocation2 + $0x30] sm:$0xff] %vm2625, %v2542
  %2633 = vst.msk [vmem:[#allocation2 + $0x38] sm:$0xff] %vm2625, %v2544
  %2634 = vst.msk [vmem:[#allocation2 + $0x40] sm:$0xff] %vm2625, %v2546
  %2635 = vst.msk [vmem:[#allocation2 + $0x48] sm:$0xff] %vm2625, %v2548
  %2636 = vst.msk [vmem:[#allocation2 + $0x50] sm:$0xff] %vm2625, %v2550
  %2637 = vst.msk [vmem:[#allocation2 + $0x58] sm:$0xff] %vm2625, %v2552
  %2638 = vst.msk [vmem:[#allocation2 + $0x60] sm:$0xff] %vm2625, %v2554
  %2639 = vst.msk [vmem:[#allocation2 + $0x68] sm:$0xff] %vm2625, %v2556
  %2640 = vst.msk [vmem:[#allocation2 + $0x70] sm:$0xff] %vm2625, %v2558
  %2641 = vst.msk [vmem:[#allocation2 + $0x78] sm:$0xff] %vm2625, %v2560
  %2642 = vst.msk [vmem:[#allocation2 + $0x80] sm:$0xff] %vm2625, %v2562
  %2643 = vst.msk [vmem:[#allocation2 + $0x88] sm:$0xff] %vm2625, %v2564
  %2644 = vst.msk [vmem:[#allocation2 + $0x90] sm:$0xff] %vm2625, %v2566
  %2645 = vst.msk [vmem:[#allocation2 + $0x98] sm:$0xff] %vm2625, %v2568
  %2646 = vst.msk [vmem:[#allocation2 + $0xa0] sm:$0xff] %vm2625, %v2570
  %2647 = vst.msk [vmem:[#allocation2 + $0xa8] sm:$0xff] %vm2625, %v2572
  %2648 = vst.msk [vmem:[#allocation2 + $0xb0] sm:$0xff] %vm2625, %v2574
  %2649 = vst.msk [vmem:[#allocation2 + $0xb8] sm:$0xff] %vm2625, %v2576
  %2650 = vst.msk [vmem:[#allocation2 + $0xc0] sm:$0xff] %vm2625, %v2578
  %2651 = vst.msk [vmem:[#allocation2 + $0xc8] sm:$0xff] %vm2625, %v2580
  %2652 = vst.msk [vmem:[#allocation2 + $0xd0] sm:$0xff] %vm2625, %v2582
  %2653 = vst.msk [vmem:[#allocation2 + $0xd8] sm:$0xff] %vm2625, %v2584
  %2654 = vst.msk [vmem:[#allocation2 + $0xe0] sm:$0xff] %vm2625, %v2586
  %2655 = vst.msk [vmem:[#allocation2 + $0xe8] sm:$0xff] %vm2625, %v2588
  %2656 = vst.msk [vmem:[#allocation2 + $0xf0] sm:$0xff] %vm2625, %v2590
  %2657 = vst.msk [vmem:[#allocation2 + $0xf8] sm:$0xff] %vm2625, %v2592
  %v2660 = vrot.slane %v101, 5
  %v2661 = vrot.slane %v2660, 4
  %v2662 = vrot.slane %v102, 5
  %v2663 = vsel %vm1413, %v2661, %v2662
  %v2664 = vrot.slane %v2662, 4
  %v2665 = vrot.slane %v103, 5
  %v2666 = vsel %vm1413, %v2664, %v2665
  %v2667 = vrot.slane %v155, 5
  %v2668 = vrot.slane %v2667, 4
  %v2669 = vrot.slane %v156, 5
  %v2670 = vsel %vm1413, %v2668, %v2669
  %v2671 = vrot.slane %v2669, 4
  %v2672 = vrot.slane %v157, 5
  %v2673 = vsel %vm1413, %v2671, %v2672
  %v2674 = vunpack.c.l.b16 %v2663
  %v2675 = vunpack.c.l.b16 %v2666
  %v2676 = vunpack.c.l.b16 %v2670
  %v2677 = vunpack.c.l.b16 %v2673
  %v2678 = vpack.c.b16 %v2675, %v2674
  %v2679 = vpack.c.b16 %v2677, %v2676
  %2680 = vrot.lane.b32.xlu0 %v1704, 32
  %v2681 = vpop.permute.xlu0 %2680
  %2682 = vrot.lane.b32.xlu0 %v1705, 32
  %v2683 = vpop.permute.xlu0 %2682
  %2684 = vrot.lane.b32.xlu0 %v1706, 32
  %v2685 = vpop.permute.xlu0 %2684
  %2686 = vrot.lane.b32.xlu0 %v1707, 32
  %v2687 = vpop.permute.xlu0 %2686
  %2688 = vrot.lane.b32.xlu0 %v1708, 32
  %v2689 = vpop.permute.xlu0 %2688
  %2690 = vrot.lane.b32.xlu0 %v1709, 32
  %v2691 = vpop.permute.xlu0 %2690
  %2692 = vrot.lane.b32.xlu0 %v1710, 32
  %v2693 = vpop.permute.xlu0 %2692
  %2694 = vrot.lane.b32.xlu0 %v1711, 32
  %v2695 = vpop.permute.xlu0 %2694
  %2696 = vrot.lane.b32.xlu0 %v1712, 32
  %v2697 = vpop.permute.xlu0 %2696
  %2698 = vrot.lane.b32.xlu0 %v1713, 32
  %v2699 = vpop.permute.xlu0 %2698
  %2700 = vrot.lane.b32.xlu0 %v1714, 32
  %v2701 = vpop.permute.xlu0 %2700
  %2702 = vrot.lane.b32.xlu0 %v1715, 32
  %v2703 = vpop.permute.xlu0 %2702
  %2704 = vrot.lane.b32.xlu0 %v1716, 32
  %v2705 = vpop.permute.xlu0 %2704
  %2706 = vrot.lane.b32.xlu0 %v1717, 32
  %v2707 = vpop.permute.xlu0 %2706
  %2708 = vrot.lane.b32.xlu0 %v2205, 32
  %v2709 = vpop.permute.xlu0 %2708
  %2710 = vrot.lane.b32.xlu0 %v2678, 32
  %v2711 = vpop.permute.xlu0 %2710
  %2712 = vrot.lane.b32.xlu0 %v1720, 32
  %v2713 = vpop.permute.xlu0 %2712
  %2714 = vrot.lane.b32.xlu0 %v1721, 32
  %v2715 = vpop.permute.xlu0 %2714
  %2716 = vrot.lane.b32.xlu0 %v1722, 32
  %v2717 = vpop.permute.xlu0 %2716
  %2718 = vrot.lane.b32.xlu0 %v1723, 32
  %v2719 = vpop.permute.xlu0 %2718
  %2720 = vrot.lane.b32.xlu0 %v1724, 32
  %v2721 = vpop.permute.xlu0 %2720
  %2722 = vrot.lane.b32.xlu0 %v1725, 32
  %v2723 = vpop.permute.xlu0 %2722
  %2724 = vrot.lane.b32.xlu0 %v1726, 32
  %v2725 = vpop.permute.xlu0 %2724
  %2726 = vrot.lane.b32.xlu0 %v1727, 32
  %v2727 = vpop.permute.xlu0 %2726
  %2728 = vrot.lane.b32.xlu0 %v1728, 32
  %v2729 = vpop.permute.xlu0 %2728
  %2730 = vrot.lane.b32.xlu0 %v1729, 32
  %v2731 = vpop.permute.xlu0 %2730
  %2732 = vrot.lane.b32.xlu0 %v1730, 32
  %v2733 = vpop.permute.xlu0 %2732
  %2734 = vrot.lane.b32.xlu0 %v1731, 32
  %v2735 = vpop.permute.xlu0 %2734
  %2736 = vrot.lane.b32.xlu0 %v1732, 32
  %v2737 = vpop.permute.xlu0 %2736
  %2738 = vrot.lane.b32.xlu0 %v1733, 32
  %v2739 = vpop.permute.xlu0 %2738
  %2740 = vrot.lane.b32.xlu0 %v2206, 32
  %v2741 = vpop.permute.xlu0 %2740
  %2742 = vrot.lane.b32.xlu0 %v2679, 32
  %v2743 = vpop.permute.xlu0 %2742
  %vm2776 = vcmask 294144
  %2777 = vst.msk [vmem:[#allocation2] sm:$0xff] %vm2776, %v2681
  %2778 = vst.msk [vmem:[#allocation2 + $0x8] sm:$0xff] %vm2776, %v2683
  %2779 = vst.msk [vmem:[#allocation2 + $0x10] sm:$0xff] %vm2776, %v2685
  %2780 = vst.msk [vmem:[#allocation2 + $0x18] sm:$0xff] %vm2776, %v2687
  %2781 = vst.msk [vmem:[#allocation2 + $0x20] sm:$0xff] %vm2776, %v2689
  %2782 = vst.msk [vmem:[#allocation2 + $0x28] sm:$0xff] %vm2776, %v2691
  %2783 = vst.msk [vmem:[#allocation2 + $0x30] sm:$0xff] %vm2776, %v2693
  %2784 = vst.msk [vmem:[#allocation2 + $0x38] sm:$0xff] %vm2776, %v2695
  %2785 = vst.msk [vmem:[#allocation2 + $0x40] sm:$0xff] %vm2776, %v2697
  %2786 = vst.msk [vmem:[#allocation2 + $0x48] sm:$0xff] %vm2776, %v2699
  %2787 = vst.msk [vmem:[#allocation2 + $0x50] sm:$0xff] %vm2776, %v2701
  %2788 = vst.msk [vmem:[#allocation2 + $0x58] sm:$0xff] %vm2776, %v2703
  %2789 = vst.msk [vmem:[#allocation2 + $0x60] sm:$0xff] %vm2776, %v2705
  %2790 = vst.msk [vmem:[#allocation2 + $0x68] sm:$0xff] %vm2776, %v2707
  %2791 = vst.msk [vmem:[#allocation2 + $0x70] sm:$0xff] %vm2776, %v2709
  %2792 = vst.msk [vmem:[#allocation2 + $0x78] sm:$0xff] %vm2776, %v2711
  %2793 = vst.msk [vmem:[#allocation2 + $0x80] sm:$0xff] %vm2776, %v2713
  %2794 = vst.msk [vmem:[#allocation2 + $0x88] sm:$0xff] %vm2776, %v2715
  %2795 = vst.msk [vmem:[#allocation2 + $0x90] sm:$0xff] %vm2776, %v2717
  %2796 = vst.msk [vmem:[#allocation2 + $0x98] sm:$0xff] %vm2776, %v2719
  %2797 = vst.msk [vmem:[#allocation2 + $0xa0] sm:$0xff] %vm2776, %v2721
  %2798 = vst.msk [vmem:[#allocation2 + $0xa8] sm:$0xff] %vm2776, %v2723
  %2799 = vst.msk [vmem:[#allocation2 + $0xb0] sm:$0xff] %vm2776, %v2725
  %2800 = vst.msk [vmem:[#allocation2 + $0xb8] sm:$0xff] %vm2776, %v2727
  %2801 = vst.msk [vmem:[#allocation2 + $0xc0] sm:$0xff] %vm2776, %v2729
  %2802 = vst.msk [vmem:[#allocation2 + $0xc8] sm:$0xff] %vm2776, %v2731
  %2803 = vst.msk [vmem:[#allocation2 + $0xd0] sm:$0xff] %vm2776, %v2733
  %2804 = vst.msk [vmem:[#allocation2 + $0xd8] sm:$0xff] %vm2776, %v2735
  %2805 = vst.msk [vmem:[#allocation2 + $0xe0] sm:$0xff] %vm2776, %v2737
  %2806 = vst.msk [vmem:[#allocation2 + $0xe8] sm:$0xff] %vm2776, %v2739
  %2807 = vst.msk [vmem:[#allocation2 + $0xf0] sm:$0xff] %vm2776, %v2741
  %2808 = vst.msk [vmem:[#allocation2 + $0xf8] sm:$0xff] %vm2776, %v2743
  %v2809 = vld [vmem:[#allocation2] sm:$0xff]
  %v2810 = vld [vmem:[#allocation2 + $0x8] sm:$0xff]
  %v2811 = vld [vmem:[#allocation2 + $0x10] sm:$0xff]
  %v2812 = vld [vmem:[#allocation2 + $0x18] sm:$0xff]
  %v2813 = vld [vmem:[#allocation2 + $0x20] sm:$0xff]
  %v2814 = vld [vmem:[#allocation2 + $0x28] sm:$0xff]
  %v2815 = vld [vmem:[#allocation2 + $0x30] sm:$0xff]
  %v2816 = vld [vmem:[#allocation2 + $0x38] sm:$0xff]
  %v2817 = vld [vmem:[#allocation2 + $0x40] sm:$0xff]
  %v2818 = vld [vmem:[#allocation2 + $0x48] sm:$0xff]
  %v2819 = vld [vmem:[#allocation2 + $0x50] sm:$0xff]
  %v2820 = vld [vmem:[#allocation2 + $0x58] sm:$0xff]
  %v2821 = vld [vmem:[#allocation2 + $0x60] sm:$0xff]
  %v2822 = vld [vmem:[#allocation2 + $0x68] sm:$0xff]
  %v2823 = vld [vmem:[#allocation2 + $0x70] sm:$0xff]
  %v2824 = vld [vmem:[#allocation2 + $0x78] sm:$0xff]
  %v2825 = vld [vmem:[#allocation2 + $0x80] sm:$0xff]
  %v2826 = vld [vmem:[#allocation2 + $0x88] sm:$0xff]
  %v2827 = vld [vmem:[#allocation2 + $0x90] sm:$0xff]
  %v2828 = vld [vmem:[#allocation2 + $0x98] sm:$0xff]
  %v2829 = vld [vmem:[#allocation2 + $0xa0] sm:$0xff]
  %v2830 = vld [vmem:[#allocation2 + $0xa8] sm:$0xff]
  %v2831 = vld [vmem:[#allocation2 + $0xb0] sm:$0xff]
  %v2832 = vld [vmem:[#allocation2 + $0xb8] sm:$0xff]
  %v2833 = vld [vmem:[#allocation2 + $0xc0] sm:$0xff]
  %v2834 = vld [vmem:[#allocation2 + $0xc8] sm:$0xff]
  %v2835 = vld [vmem:[#allocation2 + $0xd0] sm:$0xff]
  %v2836 = vld [vmem:[#allocation2 + $0xd8] sm:$0xff]
  %v2837 = vld [vmem:[#allocation2 + $0xe0] sm:$0xff]
  %v2838 = vld [vmem:[#allocation2 + $0xe8] sm:$0xff]
  %v2839 = vld [vmem:[#allocation2 + $0xf0] sm:$0xff]
  %v2840 = vld [vmem:[#allocation2 + $0xf8] sm:$0xff]
  %v2841 = vld [vmem:[%s1] sm:$0xf]
  %v2842 = vld [vmem:[%s1 + $0x4] sm:$0xf]
  %v2843 = vld [vmem:[%s1 + $0x8] sm:$0xf]
  %v2844 = vld [vmem:[%s1 + $0xc] sm:$0xf]
  %v2845 = vld [vmem:[%s1 + $0x10] sm:$0xf]
  %v2846 = vld [vmem:[%s1 + $0x14] sm:$0xf]
  %v2847 = vld [vmem:[%s1 + $0x18] sm:$0xf]
  %v2848 = vld [vmem:[%s1 + $0x1c] sm:$0xf]
  %v2849 = vld [vmem:[%s1 + $0x20] sm:$0xf]
  %v2850 = vld [vmem:[%s1 + $0x24] sm:$0xf]
  %v2851 = vld [vmem:[%s1 + $0x28] sm:$0xf]
  %v2852 = vld [vmem:[%s1 + $0x2c] sm:$0xf]
  %v2853 = vld [vmem:[%s1 + $0x30] sm:$0xf]
  %v2854 = vld [vmem:[%s1 + $0x34] sm:$0xf]
  %v2855 = vld [vmem:[%s1 + $0x38] sm:$0xf]
  %v2856 = vld [vmem:[%s1 + $0x3c] sm:$0xf]
  %v2873 = vunpack.c.l.b16 %v2841
  %v2874 = vunpack.c.l.b16 %v2842
  %v2875 = vunpack.c.l.b16 %v2843
  %v2876 = vunpack.c.l.b16 %v2844
  %v2877 = vunpack.c.l.b16 %v2845
  %v2878 = vunpack.c.l.b16 %v2846
  %v2879 = vunpack.c.l.b16 %v2847
  %v2880 = vunpack.c.l.b16 %v2848
  %v2881 = vunpack.c.l.b16 %v2849
  %v2882 = vunpack.c.l.b16 %v2850
  %v2883 = vunpack.c.l.b16 %v2851
  %v2884 = vunpack.c.l.b16 %v2852
  %v2885 = vunpack.c.l.b16 %v2853
  %v2886 = vunpack.c.l.b16 %v2854
  %v2887 = vunpack.c.l.b16 %v2855
  %v2888 = vunpack.c.l.b16 %v2856
  %v2889 = vpack.c.b16 %v2874, %v2873
  %v2890 = vpack.c.b16 %v2876, %v2875
  %v2891 = vpack.c.b16 %v2878, %v2877
  %v2892 = vpack.c.b16 %v2880, %v2879
  %v2893 = vpack.c.b16 %v2882, %v2881
  %v2894 = vpack.c.b16 %v2884, %v2883
  %v2895 = vpack.c.b16 %v2886, %v2885
  %v2896 = vpack.c.b16 %v2888, %v2887
  %2905 = vmatprep.subr.bf16.mxu0 0
  %2906 = vmatpush1.bf16.msra.mxu0 %v2889
  %2907 = vmatprep.subr.bf16.mxu0 0
  %2908 = vmatpush1.bf16.msra.mxu0 %v2890
  %2909 = vmatprep.subr.bf16.mxu0 0
  %2910 = vmatpush1.bf16.msra.mxu0 %v2891
  %2911 = vmatprep.subr.bf16.mxu0 0
  %2912 = vmatpush1.bf16.msra.mxu0 %v2892
  %2913 = vmatprep.subr.bf16.mxu0 0
  %2914 = vmatpush1.bf16.msra.mxu0 %v2893
  %2915 = vmatprep.subr.bf16.mxu0 0
  %2916 = vmatpush1.bf16.msra.mxu0 %v2894
  %2917 = vmatprep.subr.bf16.mxu0 0
  %2918 = vmatpush1.bf16.msra.mxu0 %v2895
  %2919 = vmatprep.subr.bf16.mxu0 0
  %2920 = vmatpush1.bf16.msra.mxu0 %v2896
  %2921 = vmatprep.subr.bf16.mxu0 0
  %2922 = vmatpush1.bf16.msra.mxu0 0
  %2923 = vmatprep.subr.bf16.mxu0 0
  %2924 = vmatpush1.bf16.msra.mxu0 0
  %2925 = vmatprep.subr.bf16.mxu0 0
  %2926 = vmatpush1.bf16.msra.mxu0 0
  %2927 = vmatprep.subr.bf16.mxu0 0
  %2928 = vmatpush1.bf16.msra.mxu0 0
  %2929 = vmatprep.subr.bf16.mxu0 0
  %2930 = vmatpush1.bf16.msra.mxu0 0
  %2931 = vmatprep.subr.bf16.mxu0 0
  %2932 = vmatpush1.bf16.msra.mxu0 0
  %2933 = vmatprep.subr.bf16.mxu0 0
  %2934 = vmatpush1.bf16.msra.mxu0 0
  %2935 = vmatprep.subr.bf16.mxu0 0
  %2936 = vmatpush1.bf16.msra.mxu0 0
  %2937 = vmatprep.mubr.bf16.mxu0 0
  %2938 = vmatmul.mubr.bf16.gmra.mrb[0].mxu0 %v2809
  %v2939 = vpop.f32.mrb[0].mxu0
  %v2940 = vadd.f32 0.0, %v2939
  %v2941 = vpop.f32.mrb[0].mxu0
  %v2942 = vpop.f32.mrb[0].mxu0
  %v2943 = vadd.f32 0.0, %v2942
  %v2944 = vpop.f32.mrb[0].mxu0
  %2945 = vmatprep.mubr.bf16.mxu0 0
  %2946 = vmatmul.mubr.bf16.gmra.mrb[0].mxu0 %v2810
  %v2947 = vpop.f32.mrb[0].mxu0
  %v2948 = vadd.f32 0.0, %v2947
  %v2949 = vpop.f32.mrb[0].mxu0
  %v2950 = vpop.f32.mrb[0].mxu0
  %v2951 = vadd.f32 0.0, %v2950
  %v2952 = vpop.f32.mrb[0].mxu0
  %2953 = vmatprep.mubr.bf16.mxu0 0
  %2954 = vmatmul.mubr.bf16.gmra.mrb[0].mxu0 %v2811
  %v2955 = vpop.f32.mrb[0].mxu0
  %v2956 = vadd.f32 0.0, %v2955
  %v2957 = vpop.f32.mrb[0].mxu0
  %v2958 = vpop.f32.mrb[0].mxu0
  %v2959 = vadd.f32 0.0, %v2958
  %v2960 = vpop.f32.mrb[0].mxu0
  %2961 = vmatprep.mubr.bf16.mxu0 0
  %2962 = vmatmul.mubr.bf16.gmra.mrb[0].mxu0 %v2812
  %v2963 = vpop.f32.mrb[0].mxu0
  %v2964 = vadd.f32 0.0, %v2963
  %v2965 = vpop.f32.mrb[0].mxu0
  %v2966 = vpop.f32.mrb[0].mxu0
  %v2967 = vadd.f32 0.0, %v2966
  %v2968 = vpop.f32.mrb[0].mxu0
  %2969 = vmatprep.mubr.bf16.mxu0 0
  %2970 = vmatmul.mubr.bf16.gmra.mrb[0].mxu0 %v2813
  %v2971 = vpop.f32.mrb[0].mxu0
  %v2972 = vadd.f32 0.0, %v2971
  %v2973 = vpop.f32.mrb[0].mxu0
  %v2974 = vpop.f32.mrb[0].mxu0
  %v2975 = vadd.f32 0.0, %v2974
  %v2976 = vpop.f32.mrb[0].mxu0
  %2977 = vmatprep.mubr.bf16.mxu0 0
  %2978 = vmatmul.mubr.bf16.gmra.mrb[0].mxu0 %v2814
  %v2979 = vpop.f32.mrb[0].mxu0
  %v2980 = vadd.f32 0.0, %v2979
  %v2981 = vpop.f32.mrb[0].mxu0
  %v2982 = vpop.f32.mrb[0].mxu0
  %v2983 = vadd.f32 0.0, %v2982
  %v2984 = vpop.f32.mrb[0].mxu0
  %2985 = vmatprep.mubr.bf16.mxu0 0
  %2986 = vmatmul.mubr.bf16.gmra.mrb[0].mxu0 %v2815
  %v2987 = vpop.f32.mrb[0].mxu0
  %v2988 = vadd.f32 0.0, %v2987
  %v2989 = vpop.f32.mrb[0].mxu0
  %v2990 = vpop.f32.mrb[0].mxu0
  %v2991 = vadd.f32 0.0, %v2990
  %v2992 = vpop.f32.mrb[0].mxu0
  %2993 = vmatprep.mubr.bf16.mxu0 0
  %2994 = vmatmul.mubr.bf16.gmra.mrb[0].mxu0 %v2816
  %v2995 = vpop.f32.mrb[0].mxu0
  %v2996 = vadd.f32 0.0, %v2995
  %v2997 = vpop.f32.mrb[0].mxu0
  %v2998 = vpop.f32.mrb[0].mxu0
  %v2999 = vadd.f32 0.0, %v2998
  %v3000 = vpop.f32.mrb[0].mxu0
  %3001 = vmatprep.mubr.bf16.mxu0 0
  %3002 = vmatmul.mubr.bf16.gmra.mrb[0].mxu0 %v2817
  %v3003 = vpop.f32.mrb[0].mxu0
  %v3004 = vadd.f32 0.0, %v3003
  %v3005 = vpop.f32.mrb[0].mxu0
  %v3006 = vpop.f32.mrb[0].mxu0
  %v3007 = vadd.f32 0.0, %v3006
  %v3008 = vpop.f32.mrb[0].mxu0
  %3009 = vmatprep.mubr.bf16.mxu0 0
  %3010 = vmatmul.mubr.bf16.gmra.mrb[0].mxu0 %v2818
  %v3011 = vpop.f32.mrb[0].mxu0
  %v3012 = vadd.f32 0.0, %v3011
  %v3013 = vpop.f32.mrb[0].mxu0
  %v3014 = vpop.f32.mrb[0].mxu0
  %v3015 = vadd.f32 0.0, %v3014
  %v3016 = vpop.f32.mrb[0].mxu0
  %3017 = vmatprep.mubr.bf16.mxu0 0
  %3018 = vmatmul.mubr.bf16.gmra.mrb[0].mxu0 %v2819
  %v3019 = vpop.f32.mrb[0].mxu0
  %v3020 = vadd.f32 0.0, %v3019
  %v3021 = vpop.f32.mrb[0].mxu0
  %v3022 = vpop.f32.mrb[0].mxu0
  %v3023 = vadd.f32 0.0, %v3022
  %v3024 = vpop.f32.mrb[0].mxu0
  %3025 = vmatprep.mubr.bf16.mxu0 0
  %3026 = vmatmul.mubr.bf16.gmra.mrb[0].mxu0 %v2820
  %v3027 = vpop.f32.mrb[0].mxu0
  %v3028 = vadd.f32 0.0, %v3027
  %v3029 = vpop.f32.mrb[0].mxu0
  %v3030 = vpop.f32.mrb[0].mxu0
  %v3031 = vadd.f32 0.0, %v3030
  %v3032 = vpop.f32.mrb[0].mxu0
  %3033 = vmatprep.mubr.bf16.mxu0 0
  %3034 = vmatmul.mubr.bf16.gmra.mrb[0].mxu0 %v2821
  %v3035 = vpop.f32.mrb[0].mxu0
  %v3036 = vadd.f32 0.0, %v3035
  %v3037 = vpop.f32.mrb[0].mxu0
  %v3038 = vpop.f32.mrb[0].mxu0
  %v3039 = vadd.f32 0.0, %v3038
  %v3040 = vpop.f32.mrb[0].mxu0
  %3041 = vmatprep.mubr.bf16.mxu0 0
  %3042 = vmatmul.mubr.bf16.gmra.mrb[0].mxu0 %v2822
  %v3043 = vpop.f32.mrb[0].mxu0
  %v3044 = vadd.f32 0.0, %v3043
  %v3045 = vpop.f32.mrb[0].mxu0
  %v3046 = vpop.f32.mrb[0].mxu0
  %v3047 = vadd.f32 0.0, %v3046
  %v3048 = vpop.f32.mrb[0].mxu0
  %3049 = vmatprep.mubr.bf16.mxu0 0
  %3050 = vmatmul.mubr.bf16.gmra.mrb[0].mxu0 %v2823
  %v3051 = vpop.f32.mrb[0].mxu0
  %v3052 = vadd.f32 0.0, %v3051
  %v3053 = vpop.f32.mrb[0].mxu0
  %v3054 = vpop.f32.mrb[0].mxu0
  %v3055 = vadd.f32 0.0, %v3054
  %v3056 = vpop.f32.mrb[0].mxu0
  %3057 = vmatprep.mubr.bf16.mxu0 0
  %3058 = vmatmul.mubr.bf16.gmra.mrb[0].mxu0 %v2824
  %v3059 = vpop.f32.mrb[0].mxu0
  %v3060 = vadd.f32 0.0, %v3059
  %v3061 = vpop.f32.mrb[0].mxu0
  %v3062 = vpop.f32.mrb[0].mxu0
  %v3063 = vadd.f32 0.0, %v3062
  %v3064 = vpop.f32.mrb[0].mxu0
  %3065 = vmatprep.mubr.bf16.mxu0 0
  %3066 = vmatmul.mubr.bf16.gmra.mrb[0].mxu0 %v2825
  %v3067 = vpop.f32.mrb[0].mxu0
  %v3068 = vadd.f32 0.0, %v3067
  %v3069 = vpop.f32.mrb[0].mxu0
  %v3070 = vpop.f32.mrb[0].mxu0
  %v3071 = vadd.f32 0.0, %v3070
  %v3072 = vpop.f32.mrb[0].mxu0
  %3073 = vmatprep.mubr.bf16.mxu0 0
  %3074 = vmatmul.mubr.bf16.gmra.mrb[0].mxu0 %v2826
  %v3075 = vpop.f32.mrb[0].mxu0
  %v3076 = vadd.f32 0.0, %v3075
  %v3077 = vpop.f32.mrb[0].mxu0
  %v3078 = vpop.f32.mrb[0].mxu0
  %v3079 = vadd.f32 0.0, %v3078
  %v3080 = vpop.f32.mrb[0].mxu0
  %3081 = vmatprep.mubr.bf16.mxu0 0
  %3082 = vmatmul.mubr.bf16.gmra.mrb[0].mxu0 %v2827
  %v3083 = vpop.f32.mrb[0].mxu0
  %v3084 = vadd.f32 0.0, %v3083
  %v3085 = vpop.f32.mrb[0].mxu0
  %v3086 = vpop.f32.mrb[0].mxu0
  %v3087 = vadd.f32 0.0, %v3086
  %v3088 = vpop.f32.mrb[0].mxu0
  %3089 = vmatprep.mubr.bf16.mxu0 0
  %3090 = vmatmul.mubr.bf16.gmra.mrb[0].mxu0 %v2828
  %v3091 = vpop.f32.mrb[0].mxu0
  %v3092 = vadd.f32 0.0, %v3091
  %v3093 = vpop.f32.mrb[0].mxu0
  %v3094 = vpop.f32.mrb[0].mxu0
  %v3095 = vadd.f32 0.0, %v3094
  %v3096 = vpop.f32.mrb[0].mxu0
  %3097 = vmatprep.mubr.bf16.mxu0 0
  %3098 = vmatmul.mubr.bf16.gmra.mrb[0].mxu0 %v2829
  %v3099 = vpop.f32.mrb[0].mxu0
  %v3100 = vadd.f32 0.0, %v3099
  %v3101 = vpop.f32.mrb[0].mxu0
  %v3102 = vpop.f32.mrb[0].mxu0
  %v3103 = vadd.f32 0.0, %v3102
  %v3104 = vpop.f32.mrb[0].mxu0
  %3105 = vmatprep.mubr.bf16.mxu0 0
  %3106 = vmatmul.mubr.bf16.gmra.mrb[0].mxu0 %v2830
  %v3107 = vpop.f32.mrb[0].mxu0
  %v3108 = vadd.f32 0.0, %v3107
  %v3109 = vpop.f32.mrb[0].mxu0
  %v3110 = vpop.f32.mrb[0].mxu0
  %v3111 = vadd.f32 0.0, %v3110
  %v3112 = vpop.f32.mrb[0].mxu0
  %3113 = vmatprep.mubr.bf16.mxu0 0
  %3114 = vmatmul.mubr.bf16.gmra.mrb[0].mxu0 %v2831
  %v3115 = vpop.f32.mrb[0].mxu0
  %v3116 = vadd.f32 0.0, %v3115
  %v3117 = vpop.f32.mrb[0].mxu0
  %v3118 = vpop.f32.mrb[0].mxu0
  %v3119 = vadd.f32 0.0, %v3118
  %v3120 = vpop.f32.mrb[0].mxu0
  %3121 = vmatprep.mubr.bf16.mxu0 0
  %3122 = vmatmul.mubr.bf16.gmra.mrb[0].mxu0 %v2832
  %v3123 = vpop.f32.mrb[0].mxu0
  %v3124 = vadd.f32 0.0, %v3123
  %v3125 = vpop.f32.mrb[0].mxu0
  %v3126 = vpop.f32.mrb[0].mxu0
  %v3127 = vadd.f32 0.0, %v3126
  %v3128 = vpop.f32.mrb[0].mxu0
  %3129 = vmatprep.mubr.bf16.mxu0 0
  %3130 = vmatmul.mubr.bf16.gmra.mrb[0].mxu0 %v2833
  %v3131 = vpop.f32.mrb[0].mxu0
  %v3132 = vadd.f32 0.0, %v3131
  %v3133 = vpop.f32.mrb[0].mxu0
  %v3134 = vpop.f32.mrb[0].mxu0
  %v3135 = vadd.f32 0.0, %v3134
  %v3136 = vpop.f32.mrb[0].mxu0
  %3137 = vmatprep.mubr.bf16.mxu0 0
  %3138 = vmatmul.mubr.bf16.gmra.mrb[0].mxu0 %v2834
  %v3139 = vpop.f32.mrb[0].mxu0
  %v3140 = vadd.f32 0.0, %v3139
  %v3141 = vpop.f32.mrb[0].mxu0
  %v3142 = vpop.f32.mrb[0].mxu0
  %v3143 = vadd.f32 0.0, %v3142
  %v3144 = vpop.f32.mrb[0].mxu0
  %3145 = vmatprep.mubr.bf16.mxu0 0
  %3146 = vmatmul.mubr.bf16.gmra.mrb[0].mxu0 %v2835
  %v3147 = vpop.f32.mrb[0].mxu0
  %v3148 = vadd.f32 0.0, %v3147
  %v3149 = vpop.f32.mrb[0].mxu0
  %v3150 = vpop.f32.mrb[0].mxu0
  %v3151 = vadd.f32 0.0, %v3150
  %v3152 = vpop.f32.mrb[0].mxu0
  %3153 = vmatprep.mubr.bf16.mxu0 0
  %3154 = vmatmul.mubr.bf16.gmra.mrb[0].mxu0 %v2836
  %v3155 = vpop.f32.mrb[0].mxu0
  %v3156 = vadd.f32 0.0, %v3155
  %v3157 = vpop.f32.mrb[0].mxu0
  %v3158 = vpop.f32.mrb[0].mxu0
  %v3159 = vadd.f32 0.0, %v3158
  %v3160 = vpop.f32.mrb[0].mxu0
  %3161 = vmatprep.mubr.bf16.mxu0 0
  %3162 = vmatmul.mubr.bf16.gmra.mrb[0].mxu0 %v2837
  %v3163 = vpop.f32.mrb[0].mxu0
  %v3164 = vadd.f32 0.0, %v3163
  %v3165 = vpop.f32.mrb[0].mxu0
  %v3166 = vpop.f32.mrb[0].mxu0
  %v3167 = vadd.f32 0.0, %v3166
  %v3168 = vpop.f32.mrb[0].mxu0
  %3169 = vmatprep.mubr.bf16.mxu0 0
  %3170 = vmatmul.mubr.bf16.gmra.mrb[0].mxu0 %v2838
  %v3171 = vpop.f32.mrb[0].mxu0
  %v3172 = vadd.f32 0.0, %v3171
  %v3173 = vpop.f32.mrb[0].mxu0
  %v3174 = vpop.f32.mrb[0].mxu0
  %v3175 = vadd.f32 0.0, %v3174
  %v3176 = vpop.f32.mrb[0].mxu0
  %3177 = vmatprep.mubr.bf16.mxu0 0
  %3178 = vmatmul.mubr.bf16.gmra.mrb[0].mxu0 %v2839
  %v3179 = vpop.f32.mrb[0].mxu0
  %v3180 = vadd.f32 0.0, %v3179
  %v3181 = vpop.f32.mrb[0].mxu0
  %v3182 = vpop.f32.mrb[0].mxu0
  %v3183 = vadd.f32 0.0, %v3182
  %v3184 = vpop.f32.mrb[0].mxu0
  %3185 = vmatprep.mubr.bf16.mxu0 0
  %3186 = vmatmul.mubr.bf16.gmra.mrb[0].mxu0 %v2840
  %v3187 = vpop.f32.mrb[0].mxu0
  %v3188 = vadd.f32 0.0, %v3187
  %v3189 = vpop.f32.mrb[0].mxu0
  %v3190 = vpop.f32.mrb[0].mxu0
  %v3191 = vadd.f32 0.0, %v3190
  %v3192 = vpop.f32.mrb[0].mxu0
  %3193 = vdwg.mxu0
  %vm3194 = vcmask 64512
  %v3195 = vsel %vm3194, %v2940, 0.0
  %v3196 = vsel %vm3194, %v2943, 0.0
  %v3197 = vadd.f32 %v3195, %v3196
  %v3198 = vsel %vm3194, %v2948, 0.0
  %v3199 = vadd.f32 %v3197, %v3198
  %v3200 = vsel %vm3194, %v2951, 0.0
  %v3201 = vadd.f32 %v3199, %v3200
  %v3202 = vsel %vm3194, %v2956, 0.0
  %v3203 = vadd.f32 %v3201, %v3202
  %v3204 = vsel %vm3194, %v2959, 0.0
  %v3205 = vadd.f32 %v3203, %v3204
  %v3206 = vsel %vm3194, %v2964, 0.0
  %v3207 = vadd.f32 %v3205, %v3206
  %v3208 = vsel %vm3194, %v2967, 0.0
  %v3209 = vadd.f32 %v3207, %v3208
  %v3210 = vsel %vm3194, %v2972, 0.0
  %v3211 = vadd.f32 %v3209, %v3210
  %v3212 = vsel %vm3194, %v2975, 0.0
  %v3213 = vadd.f32 %v3211, %v3212
  %v3214 = vsel %vm3194, %v2980, 0.0
  %v3215 = vadd.f32 %v3213, %v3214
  %v3216 = vsel %vm3194, %v2983, 0.0
  %v3217 = vadd.f32 %v3215, %v3216
  %v3218 = vsel %vm3194, %v2988, 0.0
  %v3219 = vadd.f32 %v3217, %v3218
  %v3220 = vsel %vm3194, %v2991, 0.0
  %v3221 = vadd.f32 %v3219, %v3220
  %v3222 = vsel %vm3194, %v2996, 0.0
  %v3223 = vadd.f32 %v3221, %v3222
  %v3224 = vsel %vm3194, %v2999, 0.0
  %v3225 = vadd.f32 %v3223, %v3224
  %v3226 = vsel %vm3194, %v3004, 0.0
  %v3227 = vadd.f32 %v3225, %v3226
  %v3228 = vsel %vm3194, %v3007, 0.0
  %v3229 = vadd.f32 %v3227, %v3228
  %v3230 = vsel %vm3194, %v3012, 0.0
  %v3231 = vadd.f32 %v3229, %v3230
  %v3232 = vsel %vm3194, %v3015, 0.0
  %v3233 = vadd.f32 %v3231, %v3232
  %v3234 = vsel %vm3194, %v3020, 0.0
  %v3235 = vadd.f32 %v3233, %v3234
  %v3236 = vsel %vm3194, %v3023, 0.0
  %v3237 = vadd.f32 %v3235, %v3236
  %v3238 = vsel %vm3194, %v3028, 0.0
  %v3239 = vadd.f32 %v3237, %v3238
  %v3240 = vsel %vm3194, %v3031, 0.0
  %v3241 = vadd.f32 %v3239, %v3240
  %v3242 = vsel %vm3194, %v3036, 0.0
  %v3243 = vadd.f32 %v3241, %v3242
  %v3244 = vsel %vm3194, %v3039, 0.0
  %v3245 = vadd.f32 %v3243, %v3244
  %v3246 = vsel %vm3194, %v3044, 0.0
  %v3247 = vadd.f32 %v3245, %v3246
  %v3248 = vsel %vm3194, %v3047, 0.0
  %v3249 = vadd.f32 %v3247, %v3248
  %v3250 = vsel %vm3194, %v3052, 0.0
  %v3251 = vadd.f32 %v3249, %v3250
  %v3252 = vsel %vm3194, %v3055, 0.0
  %v3253 = vadd.f32 %v3251, %v3252
  %v3254 = vsel %vm3194, %v3060, 0.0
  %v3255 = vadd.f32 %v3253, %v3254
  %v3256 = vsel %vm3194, %v3063, 0.0
  %v3257 = vadd.f32 %v3255, %v3256
  %v3258 = vsel %vm3194, %v3068, 0.0
  %v3259 = vadd.f32 %v3257, %v3258
  %v3260 = vsel %vm3194, %v3071, 0.0
  %v3261 = vadd.f32 %v3259, %v3260
  %v3262 = vsel %vm3194, %v3076, 0.0
  %v3263 = vadd.f32 %v3261, %v3262
  %v3264 = vsel %vm3194, %v3079, 0.0
  %v3265 = vadd.f32 %v3263, %v3264
  %v3266 = vsel %vm3194, %v3084, 0.0
  %v3267 = vadd.f32 %v3265, %v3266
  %v3268 = vsel %vm3194, %v3087, 0.0
  %v3269 = vadd.f32 %v3267, %v3268
  %v3270 = vsel %vm3194, %v3092, 0.0
  %v3271 = vadd.f32 %v3269, %v3270
  %v3272 = vsel %vm3194, %v3095, 0.0
  %v3273 = vadd.f32 %v3271, %v3272
  %v3274 = vsel %vm3194, %v3100, 0.0
  %v3275 = vadd.f32 %v3273, %v3274
  %v3276 = vsel %vm3194, %v3103, 0.0
  %v3277 = vadd.f32 %v3275, %v3276
  %v3278 = vsel %vm3194, %v3108, 0.0
  %v3279 = vadd.f32 %v3277, %v3278
  %v3280 = vsel %vm3194, %v3111, 0.0
  %v3281 = vadd.f32 %v3279, %v3280
  %v3282 = vsel %vm3194, %v3116, 0.0
  %v3283 = vadd.f32 %v3281, %v3282
  %v3284 = vsel %vm3194, %v3119, 0.0
  %v3285 = vadd.f32 %v3283, %v3284
  %v3286 = vsel %vm3194, %v3124, 0.0
  %v3287 = vadd.f32 %v3285, %v3286
  %v3288 = vsel %vm3194, %v3127, 0.0
  %v3289 = vadd.f32 %v3287, %v3288
  %v3290 = vsel %vm3194, %v3132, 0.0
  %v3291 = vadd.f32 %v3289, %v3290
  %v3292 = vsel %vm3194, %v3135, 0.0
  %v3293 = vadd.f32 %v3291, %v3292
  %v3294 = vsel %vm3194, %v3140, 0.0
  %v3295 = vadd.f32 %v3293, %v3294
  %v3296 = vsel %vm3194, %v3143, 0.0
  %v3297 = vadd.f32 %v3295, %v3296
  %v3298 = vsel %vm3194, %v3148, 0.0
  %v3299 = vadd.f32 %v3297, %v3298
  %v3300 = vsel %vm3194, %v3151, 0.0
  %v3301 = vadd.f32 %v3299, %v3300
  %v3302 = vsel %vm3194, %v3156, 0.0
  %v3303 = vadd.f32 %v3301, %v3302
  %v3304 = vsel %vm3194, %v3159, 0.0
  %v3305 = vadd.f32 %v3303, %v3304
  %v3306 = vsel %vm3194, %v3164, 0.0
  %v3307 = vadd.f32 %v3305, %v3306
  %v3308 = vsel %vm3194, %v3167, 0.0
  %v3309 = vadd.f32 %v3307, %v3308
  %v3310 = vsel %vm3194, %v3172, 0.0
  %v3311 = vadd.f32 %v3309, %v3310
  %v3312 = vsel %vm3194, %v3175, 0.0
  %v3313 = vadd.f32 %v3311, %v3312
  %v3314 = vsel %vm3194, %v3180, 0.0
  %v3315 = vadd.f32 %v3313, %v3314
  %v3316 = vsel %vm3194, %v3183, 0.0
  %v3317 = vadd.f32 %v3315, %v3316
  %v3318 = vsel %vm3194, %v3188, 0.0
  %v3319 = vadd.f32 %v3317, %v3318
  %v3320 = vsel %vm3194, %v3191, 0.0
  %v3321 = vadd.f32 %v3319, %v3320
  %v3322 = vrot.slane %v3321, 4
  %v3323 = vadd.f32 %v3321, %v3322
  %v3324 = vrot.slane %v3323, 2
  %v3325 = vadd.f32 %v3323, %v3324
  %v3326 = vrot.slane %v3325, 1
  %v3327 = vadd.f32 %v3325, %v3326
  %v3328 = vmul.f32 %v3327, 0.001953125
  %v3329 = vmul.f32 %v2940, %v2940
  %v3330 = vmul.f32 %v2943, %v2943
  %v3331 = vmul.f32 %v2948, %v2948
  %v3332 = vmul.f32 %v2951, %v2951
  %v3333 = vmul.f32 %v2956, %v2956
  %v3334 = vmul.f32 %v2959, %v2959
  %v3335 = vmul.f32 %v2964, %v2964
  %v3336 = vmul.f32 %v2967, %v2967
  %v3337 = vmul.f32 %v2972, %v2972
  %v3338 = vmul.f32 %v2975, %v2975
  %v3339 = vmul.f32 %v2980, %v2980
  %v3340 = vmul.f32 %v2983, %v2983
  %v3341 = vmul.f32 %v2988, %v2988
  %v3342 = vmul.f32 %v2991, %v2991
  %v3343 = vmul.f32 %v2996, %v2996
  %v3344 = vmul.f32 %v2999, %v2999
  %v3345 = vmul.f32 %v3004, %v3004
  %v3346 = vmul.f32 %v3007, %v3007
  %v3347 = vmul.f32 %v3012, %v3012
  %v3348 = vmul.f32 %v3015, %v3015
  %v3349 = vmul.f32 %v3020, %v3020
  %v3350 = vmul.f32 %v3023, %v3023
  %v3351 = vmul.f32 %v3028, %v3028
  %v3352 = vmul.f32 %v3031, %v3031
  %v3353 = vmul.f32 %v3036, %v3036
  %v3354 = vmul.f32 %v3039, %v3039
  %v3355 = vmul.f32 %v3044, %v3044
  %v3356 = vmul.f32 %v3047, %v3047
  %v3357 = vmul.f32 %v3052, %v3052
  %v3358 = vmul.f32 %v3055, %v3055
  %v3359 = vmul.f32 %v3060, %v3060
  %v3360 = vmul.f32 %v3063, %v3063
  %v3361 = vmul.f32 %v3068, %v3068
  %v3362 = vmul.f32 %v3071, %v3071
  %v3363 = vmul.f32 %v3076, %v3076
  %v3364 = vmul.f32 %v3079, %v3079
  %v3365 = vmul.f32 %v3084, %v3084
  %v3366 = vmul.f32 %v3087, %v3087
  %v3367 = vmul.f32 %v3092, %v3092
  %v3368 = vmul.f32 %v3095, %v3095
  %v3369 = vmul.f32 %v3100, %v3100
  %v3370 = vmul.f32 %v3103, %v3103
  %v3371 = vmul.f32 %v3108, %v3108
  %v3372 = vmul.f32 %v3111, %v3111
  %v3373 = vmul.f32 %v3116, %v3116
  %v3374 = vmul.f32 %v3119, %v3119
  %v3375 = vmul.f32 %v3124, %v3124
  %v3376 = vmul.f32 %v3127, %v3127
  %v3377 = vmul.f32 %v3132, %v3132
  %v3378 = vmul.f32 %v3135, %v3135
  %v3379 = vmul.f32 %v3140, %v3140
  %v3380 = vmul.f32 %v3143, %v3143
  %v3381 = vmul.f32 %v3148, %v3148
  %v3382 = vmul.f32 %v3151, %v3151
  %v3383 = vmul.f32 %v3156, %v3156
  %v3384 = vmul.f32 %v3159, %v3159
  %v3385 = vmul.f32 %v3164, %v3164
  %v3386 = vmul.f32 %v3167, %v3167
  %v3387 = vmul.f32 %v3172, %v3172
  %v3388 = vmul.f32 %v3175, %v3175
  %v3389 = vmul.f32 %v3180, %v3180
  %v3390 = vmul.f32 %v3183, %v3183
  %v3391 = vmul.f32 %v3188, %v3188
  %v3392 = vmul.f32 %v3191, %v3191
  %v3393 = vsel %vm3194, %v3329, 0.0
  %v3394 = vsel %vm3194, %v3330, 0.0
  %v3395 = vadd.f32 %v3393, %v3394
  %v3396 = vsel %vm3194, %v3331, 0.0
  %v3397 = vadd.f32 %v3395, %v3396
  %v3398 = vsel %vm3194, %v3332, 0.0
  %v3399 = vadd.f32 %v3397, %v3398
  %v3400 = vsel %vm3194, %v3333, 0.0
  %v3401 = vadd.f32 %v3399, %v3400
  %v3402 = vsel %vm3194, %v3334, 0.0
  %v3403 = vadd.f32 %v3401, %v3402
  %v3404 = vsel %vm3194, %v3335, 0.0
  %v3405 = vadd.f32 %v3403, %v3404
  %v3406 = vsel %vm3194, %v3336, 0.0
  %v3407 = vadd.f32 %v3405, %v3406
  %v3408 = vsel %vm3194, %v3337, 0.0
  %v3409 = vadd.f32 %v3407, %v3408
  %v3410 = vsel %vm3194, %v3338, 0.0
  %v3411 = vadd.f32 %v3409, %v3410
  %v3412 = vsel %vm3194, %v3339, 0.0
  %v3413 = vadd.f32 %v3411, %v3412
  %v3414 = vsel %vm3194, %v3340, 0.0
  %v3415 = vadd.f32 %v3413, %v3414
  %v3416 = vsel %vm3194, %v3341, 0.0
  %v3417 = vadd.f32 %v3415, %v3416
  %v3418 = vsel %vm3194, %v3342, 0.0
  %v3419 = vadd.f32 %v3417, %v3418
  %v3420 = vsel %vm3194, %v3343, 0.0
  %v3421 = vadd.f32 %v3419, %v3420
  %v3422 = vsel %vm3194, %v3344, 0.0
  %v3423 = vadd.f32 %v3421, %v3422
  %v3424 = vsel %vm3194, %v3345, 0.0
  %v3425 = vadd.f32 %v3423, %v3424
  %v3426 = vsel %vm3194, %v3346, 0.0
  %v3427 = vadd.f32 %v3425, %v3426
  %v3428 = vsel %vm3194, %v3347, 0.0
  %v3429 = vadd.f32 %v3427, %v3428
  %v3430 = vsel %vm3194, %v3348, 0.0
  %v3431 = vadd.f32 %v3429, %v3430
  %v3432 = vsel %vm3194, %v3349, 0.0
  %v3433 = vadd.f32 %v3431, %v3432
  %v3434 = vsel %vm3194, %v3350, 0.0
  %v3435 = vadd.f32 %v3433, %v3434
  %v3436 = vsel %vm3194, %v3351, 0.0
  %v3437 = vadd.f32 %v3435, %v3436
  %v3438 = vsel %vm3194, %v3352, 0.0
  %v3439 = vadd.f32 %v3437, %v3438
  %v3440 = vsel %vm3194, %v3353, 0.0
  %v3441 = vadd.f32 %v3439, %v3440
  %v3442 = vsel %vm3194, %v3354, 0.0
  %v3443 = vadd.f32 %v3441, %v3442
  %v3444 = vsel %vm3194, %v3355, 0.0
  %v3445 = vadd.f32 %v3443, %v3444
  %v3446 = vsel %vm3194, %v3356, 0.0
  %v3447 = vadd.f32 %v3445, %v3446
  %v3448 = vsel %vm3194, %v3357, 0.0
  %v3449 = vadd.f32 %v3447, %v3448
  %v3450 = vsel %vm3194, %v3358, 0.0
  %v3451 = vadd.f32 %v3449, %v3450
  %v3452 = vsel %vm3194, %v3359, 0.0
  %v3453 = vadd.f32 %v3451, %v3452
  %v3454 = vsel %vm3194, %v3360, 0.0
  %v3455 = vadd.f32 %v3453, %v3454
  %v3456 = vsel %vm3194, %v3361, 0.0
  %v3457 = vadd.f32 %v3455, %v3456
  %v3458 = vsel %vm3194, %v3362, 0.0
  %v3459 = vadd.f32 %v3457, %v3458
  %v3460 = vsel %vm3194, %v3363, 0.0
  %v3461 = vadd.f32 %v3459, %v3460
  %v3462 = vsel %vm3194, %v3364, 0.0
  %v3463 = vadd.f32 %v3461, %v3462
  %v3464 = vsel %vm3194, %v3365, 0.0
  %v3465 = vadd.f32 %v3463, %v3464
  %v3466 = vsel %vm3194, %v3366, 0.0
  %v3467 = vadd.f32 %v3465, %v3466
  %v3468 = vsel %vm3194, %v3367, 0.0
  %v3469 = vadd.f32 %v3467, %v3468
  %v3470 = vsel %vm3194, %v3368, 0.0
  %v3471 = vadd.f32 %v3469, %v3470
  %v3472 = vsel %vm3194, %v3369, 0.0
  %v3473 = vadd.f32 %v3471, %v3472
  %v3474 = vsel %vm3194, %v3370, 0.0
  %v3475 = vadd.f32 %v3473, %v3474
  %v3476 = vsel %vm3194, %v3371, 0.0
  %v3477 = vadd.f32 %v3475, %v3476
  %v3478 = vsel %vm3194, %v3372, 0.0
  %v3479 = vadd.f32 %v3477, %v3478
  %v3480 = vsel %vm3194, %v3373, 0.0
  %v3481 = vadd.f32 %v3479, %v3480
  %v3482 = vsel %vm3194, %v3374, 0.0
  %v3483 = vadd.f32 %v3481, %v3482
  %v3484 = vsel %vm3194, %v3375, 0.0
  %v3485 = vadd.f32 %v3483, %v3484
  %v3486 = vsel %vm3194, %v3376, 0.0
  %v3487 = vadd.f32 %v3485, %v3486
  %v3488 = vsel %vm3194, %v3377, 0.0
  %v3489 = vadd.f32 %v3487, %v3488
  %v3490 = vsel %vm3194, %v3378, 0.0
  %v3491 = vadd.f32 %v3489, %v3490
  %v3492 = vsel %vm3194, %v3379, 0.0
  %v3493 = vadd.f32 %v3491, %v3492
  %v3494 = vsel %vm3194, %v3380, 0.0
  %v3495 = vadd.f32 %v3493, %v3494
  %v3496 = vsel %vm3194, %v3381, 0.0
  %v3497 = vadd.f32 %v3495, %v3496
  %v3498 = vsel %vm3194, %v3382, 0.0
  %v3499 = vadd.f32 %v3497, %v3498
  %v3500 = vsel %vm3194, %v3383, 0.0
  %v3501 = vadd.f32 %v3499, %v3500
  %v3502 = vsel %vm3194, %v3384, 0.0
  %v3503 = vadd.f32 %v3501, %v3502
  %v3504 = vsel %vm3194, %v3385, 0.0
  %v3505 = vadd.f32 %v3503, %v3504
  %v3506 = vsel %vm3194, %v3386, 0.0
  %v3507 = vadd.f32 %v3505, %v3506
  %v3508 = vsel %vm3194, %v3387, 0.0
  %v3509 = vadd.f32 %v3507, %v3508
  %v3510 = vsel %vm3194, %v3388, 0.0
  %v3511 = vadd.f32 %v3509, %v3510
  %v3512 = vsel %vm3194, %v3389, 0.0
  %v3513 = vadd.f32 %v3511, %v3512
  %v3514 = vsel %vm3194, %v3390, 0.0
  %v3515 = vadd.f32 %v3513, %v3514
  %v3516 = vsel %vm3194, %v3391, 0.0
  %v3517 = vadd.f32 %v3515, %v3516
  %v3518 = vsel %vm3194, %v3392, 0.0
  %v3519 = vadd.f32 %v3517, %v3518
  %v3520 = vrot.slane %v3519, 4
  %v3521 = vadd.f32 %v3519, %v3520
  %v3522 = vrot.slane %v3521, 2
  %v3523 = vadd.f32 %v3521, %v3522
  %v3524 = vrot.slane %v3523, 1
  %v3525 = vadd.f32 %v3523, %v3524
  %v3526 = vmul.f32 %v3525, 0.001953125
  %v3527 = vmul.f32 %v3328, %v3328
  %v3528 = vsub.f32 %v3526, %v3527
  %v3529 = vadd.f32 %v3528, 1e-05
  %v3530 = vrsqrt.pop %v3529
  %v3531 = vld [vmem:[%s2] sm:$0x1]
  %v3532 = vmul.f32 %v3530, %v3531
  %v3533 = vsub.f32 %v2940, %v3328
  %v3534 = vsub.f32 %v2943, %v3328
  %v3535 = vsub.f32 %v2948, %v3328
  %v3536 = vsub.f32 %v2951, %v3328
  %v3537 = vsub.f32 %v2956, %v3328
  %v3538 = vsub.f32 %v2959, %v3328
  %v3539 = vsub.f32 %v2964, %v3328
  %v3540 = vsub.f32 %v2967, %v3328
  %v3541 = vsub.f32 %v2972, %v3328
  %v3542 = vsub.f32 %v2975, %v3328
  %v3543 = vsub.f32 %v2980, %v3328
  %v3544 = vsub.f32 %v2983, %v3328
  %v3545 = vsub.f32 %v2988, %v3328
  %v3546 = vsub.f32 %v2991, %v3328
  %v3547 = vsub.f32 %v2996, %v3328
  %v3548 = vsub.f32 %v2999, %v3328
  %v3549 = vsub.f32 %v3004, %v3328
  %v3550 = vsub.f32 %v3007, %v3328
  %v3551 = vsub.f32 %v3012, %v3328
  %v3552 = vsub.f32 %v3015, %v3328
  %v3553 = vsub.f32 %v3020, %v3328
  %v3554 = vsub.f32 %v3023, %v3328
  %v3555 = vsub.f32 %v3028, %v3328
  %v3556 = vsub.f32 %v3031, %v3328
  %v3557 = vsub.f32 %v3036, %v3328
  %v3558 = vsub.f32 %v3039, %v3328
  %v3559 = vsub.f32 %v3044, %v3328
  %v3560 = vsub.f32 %v3047, %v3328
  %v3561 = vsub.f32 %v3052, %v3328
  %v3562 = vsub.f32 %v3055, %v3328
  %v3563 = vsub.f32 %v3060, %v3328
  %v3564 = vsub.f32 %v3063, %v3328
  %v3565 = vsub.f32 %v3068, %v3328
  %v3566 = vsub.f32 %v3071, %v3328
  %v3567 = vsub.f32 %v3076, %v3328
  %v3568 = vsub.f32 %v3079, %v3328
  %v3569 = vsub.f32 %v3084, %v3328
  %v3570 = vsub.f32 %v3087, %v3328
  %v3571 = vsub.f32 %v3092, %v3328
  %v3572 = vsub.f32 %v3095, %v3328
  %v3573 = vsub.f32 %v3100, %v3328
  %v3574 = vsub.f32 %v3103, %v3328
  %v3575 = vsub.f32 %v3108, %v3328
  %v3576 = vsub.f32 %v3111, %v3328
  %v3577 = vsub.f32 %v3116, %v3328
  %v3578 = vsub.f32 %v3119, %v3328
  %v3579 = vsub.f32 %v3124, %v3328
  %v3580 = vsub.f32 %v3127, %v3328
  %v3581 = vsub.f32 %v3132, %v3328
  %v3582 = vsub.f32 %v3135, %v3328
  %v3583 = vsub.f32 %v3140, %v3328
  %v3584 = vsub.f32 %v3143, %v3328
  %v3585 = vsub.f32 %v3148, %v3328
  %v3586 = vsub.f32 %v3151, %v3328
  %v3587 = vsub.f32 %v3156, %v3328
  %v3588 = vsub.f32 %v3159, %v3328
  %v3589 = vsub.f32 %v3164, %v3328
  %v3590 = vsub.f32 %v3167, %v3328
  %v3591 = vsub.f32 %v3172, %v3328
  %v3592 = vsub.f32 %v3175, %v3328
  %v3593 = vsub.f32 %v3180, %v3328
  %v3594 = vsub.f32 %v3183, %v3328
  %v3595 = vsub.f32 %v3188, %v3328
  %v3596 = vsub.f32 %v3191, %v3328
  %v3597 = vlaneseq
  %v3598 = vshrl.u32 %v3597, 7
  %v3599 = vsub.s32 0, %v3598
  %v3600 = vrot.slane %v3532, %v3599
  %v3601 = vmul.f32 %v3533, %v3600
  %v3602 = vmul.f32 %v3534, %v3600
  %v3603 = vmul.f32 %v3535, %v3600
  %v3604 = vmul.f32 %v3536, %v3600
  %v3605 = vmul.f32 %v3537, %v3600
  %v3606 = vmul.f32 %v3538, %v3600
  %v3607 = vmul.f32 %v3539, %v3600
  %v3608 = vmul.f32 %v3540, %v3600
  %v3609 = vmul.f32 %v3541, %v3600
  %v3610 = vmul.f32 %v3542, %v3600
  %v3611 = vmul.f32 %v3543, %v3600
  %v3612 = vmul.f32 %v3544, %v3600
  %v3613 = vmul.f32 %v3545, %v3600
  %v3614 = vmul.f32 %v3546, %v3600
  %v3615 = vmul.f32 %v3547, %v3600
  %v3616 = vmul.f32 %v3548, %v3600
  %v3617 = vmul.f32 %v3549, %v3600
  %v3618 = vmul.f32 %v3550, %v3600
  %v3619 = vmul.f32 %v3551, %v3600
  %v3620 = vmul.f32 %v3552, %v3600
  %v3621 = vmul.f32 %v3553, %v3600
  %v3622 = vmul.f32 %v3554, %v3600
  %v3623 = vmul.f32 %v3555, %v3600
  %v3624 = vmul.f32 %v3556, %v3600
  %v3625 = vmul.f32 %v3557, %v3600
  %v3626 = vmul.f32 %v3558, %v3600
  %v3627 = vmul.f32 %v3559, %v3600
  %v3628 = vmul.f32 %v3560, %v3600
  %v3629 = vmul.f32 %v3561, %v3600
  %v3630 = vmul.f32 %v3562, %v3600
  %v3631 = vmul.f32 %v3563, %v3600
  %v3632 = vmul.f32 %v3564, %v3600
  %v3633 = vmul.f32 %v3565, %v3600
  %v3634 = vmul.f32 %v3566, %v3600
  %v3635 = vmul.f32 %v3567, %v3600
  %v3636 = vmul.f32 %v3568, %v3600
  %v3637 = vmul.f32 %v3569, %v3600
  %v3638 = vmul.f32 %v3570, %v3600
  %v3639 = vmul.f32 %v3571, %v3600
  %v3640 = vmul.f32 %v3572, %v3600
  %v3641 = vmul.f32 %v3573, %v3600
  %v3642 = vmul.f32 %v3574, %v3600
  %v3643 = vmul.f32 %v3575, %v3600
  %v3644 = vmul.f32 %v3576, %v3600
  %v3645 = vmul.f32 %v3577, %v3600
  %v3646 = vmul.f32 %v3578, %v3600
  %v3647 = vmul.f32 %v3579, %v3600
  %v3648 = vmul.f32 %v3580, %v3600
  %v3649 = vmul.f32 %v3581, %v3600
  %v3650 = vmul.f32 %v3582, %v3600
  %v3651 = vmul.f32 %v3583, %v3600
  %v3652 = vmul.f32 %v3584, %v3600
  %v3653 = vmul.f32 %v3585, %v3600
  %v3654 = vmul.f32 %v3586, %v3600
  %v3655 = vmul.f32 %v3587, %v3600
  %v3656 = vmul.f32 %v3588, %v3600
  %v3657 = vmul.f32 %v3589, %v3600
  %v3658 = vmul.f32 %v3590, %v3600
  %v3659 = vmul.f32 %v3591, %v3600
  %v3660 = vmul.f32 %v3592, %v3600
  %v3661 = vmul.f32 %v3593, %v3600
  %v3662 = vmul.f32 %v3594, %v3600
  %v3663 = vmul.f32 %v3595, %v3600
  %v3664 = vmul.f32 %v3596, %v3600
  %v3665 = vld [vmem:[%s3] sm:$0x1]
  %v3667 = vlaneseq
  %v3668 = vshrl.u32 %v3667, 7
  %v3669 = vsub.s32 0, %v3668
  %v3670 = vrot.slane %v3665, %v3669
  %v3672 = vadd.f32 %v3601, %v3670
  %v3673 = vadd.f32 %v3602, %v3670
  %v3674 = vadd.f32 %v3603, %v3670
  %v3675 = vadd.f32 %v3604, %v3670
  %v3676 = vadd.f32 %v3605, %v3670
  %v3677 = vadd.f32 %v3606, %v3670
  %v3678 = vadd.f32 %v3607, %v3670
  %v3679 = vadd.f32 %v3608, %v3670
  %v3680 = vadd.f32 %v3609, %v3670
  %v3681 = vadd.f32 %v3610, %v3670
  %v3682 = vadd.f32 %v3611, %v3670
  %v3683 = vadd.f32 %v3612, %v3670
  %v3684 = vadd.f32 %v3613, %v3670
  %v3685 = vadd.f32 %v3614, %v3670
  %v3686 = vadd.f32 %v3615, %v3670
  %v3687 = vadd.f32 %v3616, %v3670
  %v3688 = vadd.f32 %v3617, %v3670
  %v3689 = vadd.f32 %v3618, %v3670
  %v3690 = vadd.f32 %v3619, %v3670
  %v3691 = vadd.f32 %v3620, %v3670
  %v3692 = vadd.f32 %v3621, %v3670
  %v3693 = vadd.f32 %v3622, %v3670
  %v3694 = vadd.f32 %v3623, %v3670
  %v3695 = vadd.f32 %v3624, %v3670
  %v3696 = vadd.f32 %v3625, %v3670
  %v3697 = vadd.f32 %v3626, %v3670
  %v3698 = vadd.f32 %v3627, %v3670
  %v3699 = vadd.f32 %v3628, %v3670
  %v3700 = vadd.f32 %v3629, %v3670
  %v3701 = vadd.f32 %v3630, %v3670
  %v3702 = vadd.f32 %v3631, %v3670
  %v3703 = vadd.f32 %v3632, %v3670
  %v3704 = vadd.f32 %v3633, %v3670
  %v3705 = vadd.f32 %v3634, %v3670
  %v3706 = vadd.f32 %v3635, %v3670
  %v3707 = vadd.f32 %v3636, %v3670
  %v3708 = vadd.f32 %v3637, %v3670
  %v3709 = vadd.f32 %v3638, %v3670
  %v3710 = vadd.f32 %v3639, %v3670
  %v3711 = vadd.f32 %v3640, %v3670
  %v3712 = vadd.f32 %v3641, %v3670
  %v3713 = vadd.f32 %v3642, %v3670
  %v3714 = vadd.f32 %v3643, %v3670
  %v3715 = vadd.f32 %v3644, %v3670
  %v3716 = vadd.f32 %v3645, %v3670
  %v3717 = vadd.f32 %v3646, %v3670
  %v3718 = vadd.f32 %v3647, %v3670
  %v3719 = vadd.f32 %v3648, %v3670
  %v3720 = vadd.f32 %v3649, %v3670
  %v3721 = vadd.f32 %v3650, %v3670
  %v3722 = vadd.f32 %v3651, %v3670
  %v3723 = vadd.f32 %v3652, %v3670
  %v3724 = vadd.f32 %v3653, %v3670
  %v3725 = vadd.f32 %v3654, %v3670
  %v3726 = vadd.f32 %v3655, %v3670
  %v3727 = vadd.f32 %v3656, %v3670
  %v3728 = vadd.f32 %v3657, %v3670
  %v3729 = vadd.f32 %v3658, %v3670
  %v3730 = vadd.f32 %v3659, %v3670
  %v3731 = vadd.f32 %v3660, %v3670
  %v3732 = vadd.f32 %v3661, %v3670
  %v3733 = vadd.f32 %v3662, %v3670
  %v3734 = vadd.f32 %v3663, %v3670
  %v3735 = vadd.f32 %v3664, %v3670
  %v3736 = vmax.f32 %v3672, 0.0
  %v3737 = vmax.f32 %v3673, 0.0
  %v3738 = vmax.f32 %v3674, 0.0
  %v3739 = vmax.f32 %v3675, 0.0
  %v3740 = vmax.f32 %v3676, 0.0
  %v3741 = vmax.f32 %v3677, 0.0
  %v3742 = vmax.f32 %v3678, 0.0
  %v3743 = vmax.f32 %v3679, 0.0
  %v3744 = vmax.f32 %v3680, 0.0
  %v3745 = vmax.f32 %v3681, 0.0
  %v3746 = vmax.f32 %v3682, 0.0
  %v3747 = vmax.f32 %v3683, 0.0
  %v3748 = vmax.f32 %v3684, 0.0
  %v3749 = vmax.f32 %v3685, 0.0
  %v3750 = vmax.f32 %v3686, 0.0
  %v3751 = vmax.f32 %v3687, 0.0
  %v3752 = vmax.f32 %v3688, 0.0
  %v3753 = vmax.f32 %v3689, 0.0
  %v3754 = vmax.f32 %v3690, 0.0
  %v3755 = vmax.f32 %v3691, 0.0
  %v3756 = vmax.f32 %v3692, 0.0
  %v3757 = vmax.f32 %v3693, 0.0
  %v3758 = vmax.f32 %v3694, 0.0
  %v3759 = vmax.f32 %v3695, 0.0
  %v3760 = vmax.f32 %v3696, 0.0
  %v3761 = vmax.f32 %v3697, 0.0
  %v3762 = vmax.f32 %v3698, 0.0
  %v3763 = vmax.f32 %v3699, 0.0
  %v3764 = vmax.f32 %v3700, 0.0
  %v3765 = vmax.f32 %v3701, 0.0
  %v3766 = vmax.f32 %v3702, 0.0
  %v3767 = vmax.f32 %v3703, 0.0
  %v3768 = vmax.f32 %v3704, 0.0
  %v3769 = vmax.f32 %v3705, 0.0
  %v3770 = vmax.f32 %v3706, 0.0
  %v3771 = vmax.f32 %v3707, 0.0
  %v3772 = vmax.f32 %v3708, 0.0
  %v3773 = vmax.f32 %v3709, 0.0
  %v3774 = vmax.f32 %v3710, 0.0
  %v3775 = vmax.f32 %v3711, 0.0
  %v3776 = vmax.f32 %v3712, 0.0
  %v3777 = vmax.f32 %v3713, 0.0
  %v3778 = vmax.f32 %v3714, 0.0
  %v3779 = vmax.f32 %v3715, 0.0
  %v3780 = vmax.f32 %v3716, 0.0
  %v3781 = vmax.f32 %v3717, 0.0
  %v3782 = vmax.f32 %v3718, 0.0
  %v3783 = vmax.f32 %v3719, 0.0
  %v3784 = vmax.f32 %v3720, 0.0
  %v3785 = vmax.f32 %v3721, 0.0
  %v3786 = vmax.f32 %v3722, 0.0
  %v3787 = vmax.f32 %v3723, 0.0
  %v3788 = vmax.f32 %v3724, 0.0
  %v3789 = vmax.f32 %v3725, 0.0
  %v3790 = vmax.f32 %v3726, 0.0
  %v3791 = vmax.f32 %v3727, 0.0
  %v3792 = vmax.f32 %v3728, 0.0
  %v3793 = vmax.f32 %v3729, 0.0
  %v3794 = vmax.f32 %v3730, 0.0
  %v3795 = vmax.f32 %v3731, 0.0
  %v3796 = vmax.f32 %v3732, 0.0
  %v3797 = vmax.f32 %v3733, 0.0
  %v3798 = vmax.f32 %v3734, 0.0
  %v3799 = vmax.f32 %v3735, 0.0
  %v3800 = vmax.f32 %v3736, %v3738
  %v3801 = vmax.f32 %v3737, %v3739
  %v3802 = vmax.f32 %v3740, %v3742
  %v3803 = vmax.f32 %v3741, %v3743
  %v3804 = vmax.f32 %v3744, %v3746
  %v3805 = vmax.f32 %v3745, %v3747
  %v3806 = vmax.f32 %v3748, %v3750
  %v3807 = vmax.f32 %v3749, %v3751
  %v3808 = vmax.f32 %v3752, %v3754
  %v3809 = vmax.f32 %v3753, %v3755
  %v3810 = vmax.f32 %v3756, %v3758
  %v3811 = vmax.f32 %v3757, %v3759
  %v3812 = vmax.f32 %v3760, %v3762
  %v3813 = vmax.f32 %v3761, %v3763
  %v3814 = vmax.f32 %v3764, %v3766
  %v3815 = vmax.f32 %v3765, %v3767
  %v3816 = vmax.f32 %v3768, %v3770
  %v3817 = vmax.f32 %v3769, %v3771
  %v3818 = vmax.f32 %v3772, %v3774
  %v3819 = vmax.f32 %v3773, %v3775
  %v3820 = vmax.f32 %v3776, %v3778
  %v3821 = vmax.f32 %v3777, %v3779
  %v3822 = vmax.f32 %v3780, %v3782
  %v3823 = vmax.f32 %v3781, %v3783
  %v3824 = vmax.f32 %v3784, %v3786
  %v3825 = vmax.f32 %v3785, %v3787
  %v3826 = vmax.f32 %v3788, %v3790
  %v3827 = vmax.f32 %v3789, %v3791
  %v3828 = vmax.f32 %v3792, %v3794
  %v3829 = vmax.f32 %v3793, %v3795
  %v3830 = vmax.f32 %v3796, %v3798
  %v3831 = vmax.f32 %v3797, %v3799
  %3832 = vst.msk [vmem:[#allocation3] sm:$0xff] %vm3194, %v3800
  %3833 = vst.msk [vmem:[#allocation3 + $0x8] sm:$0xff] %vm3194, %v3801
  %3834 = vst.msk [vmem:[#allocation3 + $0x10] sm:$0xff] %vm3194, %v3802
  %3835 = vst.msk [vmem:[#allocation3 + $0x18] sm:$0xff] %vm3194, %v3803
  %3836 = vst.msk [vmem:[#allocation3 + $0x20] sm:$0xff] %vm3194, %v3804
  %3837 = vst.msk [vmem:[#allocation3 + $0x28] sm:$0xff] %vm3194, %v3805
  %3838 = vst.msk [vmem:[#allocation3 + $0x30] sm:$0xff] %vm3194, %v3806
  %3839 = vst.msk [vmem:[#allocation3 + $0x38] sm:$0xff] %vm3194, %v3807
  %3840 = vst.msk [vmem:[#allocation3 + $0x40] sm:$0xff] %vm3194, %v3808
  %3841 = vst.msk [vmem:[#allocation3 + $0x48] sm:$0xff] %vm3194, %v3809
  %3842 = vst.msk [vmem:[#allocation3 + $0x50] sm:$0xff] %vm3194, %v3810
  %3843 = vst.msk [vmem:[#allocation3 + $0x58] sm:$0xff] %vm3194, %v3811
  %3844 = vst.msk [vmem:[#allocation3 + $0x60] sm:$0xff] %vm3194, %v3812
  %3845 = vst.msk [vmem:[#allocation3 + $0x68] sm:$0xff] %vm3194, %v3813
  %3846 = vst.msk [vmem:[#allocation3 + $0x70] sm:$0xff] %vm3194, %v3814
  %3847 = vst.msk [vmem:[#allocation3 + $0x78] sm:$0xff] %vm3194, %v3815
  %3848 = vst.msk [vmem:[#allocation3 + $0x80] sm:$0xff] %vm3194, %v3816
  %3849 = vst.msk [vmem:[#allocation3 + $0x88] sm:$0xff] %vm3194, %v3817
  %3850 = vst.msk [vmem:[#allocation3 + $0x90] sm:$0xff] %vm3194, %v3818
  %3851 = vst.msk [vmem:[#allocation3 + $0x98] sm:$0xff] %vm3194, %v3819
  %3852 = vst.msk [vmem:[#allocation3 + $0xa0] sm:$0xff] %vm3194, %v3820
  %3853 = vst.msk [vmem:[#allocation3 + $0xa8] sm:$0xff] %vm3194, %v3821
  %3854 = vst.msk [vmem:[#allocation3 + $0xb0] sm:$0xff] %vm3194, %v3822
  %3855 = vst.msk [vmem:[#allocation3 + $0xb8] sm:$0xff] %vm3194, %v3823
  %3856 = vst.msk [vmem:[#allocation3 + $0xc0] sm:$0xff] %vm3194, %v3824
  %3857 = vst.msk [vmem:[#allocation3 + $0xc8] sm:$0xff] %vm3194, %v3825
  %3858 = vst.msk [vmem:[#allocation3 + $0xd0] sm:$0xff] %vm3194, %v3826
  %3859 = vst.msk [vmem:[#allocation3 + $0xd8] sm:$0xff] %vm3194, %v3827
  %3860 = vst.msk [vmem:[#allocation3 + $0xe0] sm:$0xff] %vm3194, %v3828
  %3861 = vst.msk [vmem:[#allocation3 + $0xe8] sm:$0xff] %vm3194, %v3829
  %3862 = vst.msk [vmem:[#allocation3 + $0xf0] sm:$0xff] %vm3194, %v3830
  %3863 = vst.msk [vmem:[#allocation3 + $0xf8] sm:$0xff] %vm3194, %v3831
  %v3864 = vld [vmem:[#allocation3] ss:$2 sm:$0xff]
  %s3865 = scalar_lea.vmem [#allocation3], 16
  %v3866 = vld [vmem:[%s3865] ss:$2 sm:$0xff]
  %s3867 = scalar_lea.vmem [#allocation3], 32
  %v3868 = vld [vmem:[%s3867] ss:$2 sm:$0xff]
  %s3869 = scalar_lea.vmem [#allocation3], 48
  %v3870 = vld [vmem:[%s3869] ss:$2 sm:$0xff]
  %s3871 = scalar_lea.vmem [#allocation3], 64
  %v3872 = vld [vmem:[%s3871] ss:$2 sm:$0xff]
  %s3873 = scalar_lea.vmem [#allocation3], 80
  %v3874 = vld [vmem:[%s3873] ss:$2 sm:$0xff]
  %s3875 = scalar_lea.vmem [#allocation3], 96
  %v3876 = vld [vmem:[%s3875] ss:$2 sm:$0xff]
  %s3877 = scalar_lea.vmem [#allocation3], 112
  %v3878 = vld [vmem:[%s3877] ss:$2 sm:$0xff]
  %s3879 = scalar_lea.vmem [#allocation3], 128
  %v3880 = vld [vmem:[%s3879] ss:$2 sm:$0xff]
  %s3881 = scalar_lea.vmem [#allocation3], 144
  %v3882 = vld [vmem:[%s3881] ss:$2 sm:$0xff]
  %s3883 = scalar_lea.vmem [#allocation3], 160
  %v3884 = vld [vmem:[%s3883] ss:$2 sm:$0xff]
  %s3885 = scalar_lea.vmem [#allocation3], 176
  %v3886 = vld [vmem:[%s3885] ss:$2 sm:$0xff]
  %s3887 = scalar_lea.vmem [#allocation3], 192
  %v3888 = vld [vmem:[%s3887] ss:$2 sm:$0xff]
  %s3889 = scalar_lea.vmem [#allocation3], 208
  %v3890 = vld [vmem:[%s3889] ss:$2 sm:$0xff]
  %s3891 = scalar_lea.vmem [#allocation3], 224
  %v3892 = vld [vmem:[%s3891] ss:$2 sm:$0xff]
  %s3893 = scalar_lea.vmem [#allocation3], 240
  %v3894 = vld [vmem:[%s3893] ss:$2 sm:$0xff]
  %s3895 = scalar_lea.vmem [#allocation3], 1
  %v3896 = vld [vmem:[%s3895] ss:$2 sm:$0xff]
  %s3897 = scalar_lea.vmem [#allocation3], 17
  %v3898 = vld [vmem:[%s3897] ss:$2 sm:$0xff]
  %s3899 = scalar_lea.vmem [#allocation3], 33
  %v3900 = vld [vmem:[%s3899] ss:$2 sm:$0xff]
  %s3901 = scalar_lea.vmem [#allocation3], 49
  %v3902 = vld [vmem:[%s3901] ss:$2 sm:$0xff]
  %s3903 = scalar_lea.vmem [#allocation3], 65
  %v3904 = vld [vmem:[%s3903] ss:$2 sm:$0xff]
  %s3905 = scalar_lea.vmem [#allocation3], 81
  %v3906 = vld [vmem:[%s3905] ss:$2 sm:$0xff]
  %s3907 = scalar_lea.vmem [#allocation3], 97
  %v3908 = vld [vmem:[%s3907] ss:$2 sm:$0xff]
  %s3909 = scalar_lea.vmem [#allocation3], 113
  %v3910 = vld [vmem:[%s3909] ss:$2 sm:$0xff]
  %s3911 = scalar_lea.vmem [#allocation3], 129
  %v3912 = vld [vmem:[%s3911] ss:$2 sm:$0xff]
  %s3913 = scalar_lea.vmem [#allocation3], 145
  %v3914 = vld [vmem:[%s3913] ss:$2 sm:$0xff]
  %s3915 = scalar_lea.vmem [#allocation3], 161
  %v3916 = vld [vmem:[%s3915] ss:$2 sm:$0xff]
  %s3917 = scalar_lea.vmem [#allocation3], 177
  %v3918 = vld [vmem:[%s3917] ss:$2 sm:$0xff]
  %s3919 = scalar_lea.vmem [#allocation3], 193
  %v3920 = vld [vmem:[%s3919] ss:$2 sm:$0xff]
  %s3921 = scalar_lea.vmem [#allocation3], 209
  %v3922 = vld [vmem:[%s3921] ss:$2 sm:$0xff]
  %s3923 = scalar_lea.vmem [#allocation3], 225
  %v3924 = vld [vmem:[%s3923] ss:$2 sm:$0xff]
  %s3925 = scalar_lea.vmem [#allocation3], 241
  %v3926 = vld [vmem:[%s3925] ss:$2 sm:$0xff]
  %v3927 = vmax.f32 %v3864, %v3896
  %v3928 = vmax.f32 %v3866, %v3898
  %v3929 = vmax.f32 %v3868, %v3900
  %v3930 = vmax.f32 %v3870, %v3902
  %v3931 = vmax.f32 %v3872, %v3904
  %v3932 = vmax.f32 %v3874, %v3906
  %v3933 = vmax.f32 %v3876, %v3908
  %v3934 = vmax.f32 %v3878, %v3910
  %v3935 = vmax.f32 %v3880, %v3912
  %v3936 = vmax.f32 %v3882, %v3914
  %v3937 = vmax.f32 %v3884, %v3916
  %v3938 = vmax.f32 %v3886, %v3918
  %v3939 = vmax.f32 %v3888, %v3920
  %v3940 = vmax.f32 %v3890, %v3922
  %v3941 = vmax.f32 %v3892, %v3924
  %v3942 = vmax.f32 %v3894, %v3926
  %v3943 = vpack.c.bf16 %v3928, %v3927
  %v3944 = vpack.c.bf16 %v3930, %v3929
  %v3945 = vpack.c.bf16 %v3932, %v3931
  %v3946 = vpack.c.bf16 %v3934, %v3933
  %v3947 = vpack.c.bf16 %v3936, %v3935
  %v3948 = vpack.c.bf16 %v3938, %v3937
  %v3949 = vpack.c.bf16 %v3940, %v3939
  %v3950 = vpack.c.bf16 %v3942, %v3941
  %v3959 = vunpack.c.l.b16 %v3943
  %v3960 = vunpack.c.h.b16 %v3943
  %v3961 = vunpack.c.l.b16 %v3944
  %v3962 = vunpack.c.h.b16 %v3944
  %v3963 = vunpack.c.l.b16 %v3945
  %v3964 = vunpack.c.h.b16 %v3945
  %v3965 = vunpack.c.l.b16 %v3946
  %v3966 = vunpack.c.h.b16 %v3946
  %v3967 = vunpack.c.l.b16 %v3947
  %v3968 = vunpack.c.h.b16 %v3947
  %v3969 = vunpack.c.l.b16 %v3948
  %v3970 = vunpack.c.h.b16 %v3948
  %v3971 = vunpack.c.l.b16 %v3949
  %v3972 = vunpack.c.h.b16 %v3949
  %v3973 = vunpack.c.l.b16 %v3950
  %v3974 = vunpack.c.h.b16 %v3950
  %v3975 = vpack.c.b16 %v3959, %v3959
  %v3976 = vpack.c.b16 %v3960, %v3960
  %v3977 = vpack.c.b16 %v3961, %v3961
  %v3978 = vpack.c.b16 %v3962, %v3962
  %v3979 = vpack.c.b16 %v3963, %v3963
  %v3980 = vpack.c.b16 %v3964, %v3964
  %v3981 = vpack.c.b16 %v3965, %v3965
  %v3982 = vpack.c.b16 %v3966, %v3966
  %v3983 = vpack.c.b16 %v3967, %v3967
  %v3984 = vpack.c.b16 %v3968, %v3968
  %v3985 = vpack.c.b16 %v3969, %v3969
  %v3986 = vpack.c.b16 %v3970, %v3970
  %v3987 = vpack.c.b16 %v3971, %v3971
  %v3988 = vpack.c.b16 %v3972, %v3972
  %v3989 = vpack.c.b16 %v3973, %v3973
  %v3990 = vpack.c.b16 %v3974, %v3974
  %vm4007 = vcmask 60416
  %4008 = vst.msk [vmem:[%s4] sm:$0xf] %vm4007, %v3975
  %4009 = vst.msk [vmem:[%s4 + $0x4] sm:$0xf] %vm4007, %v3976
  %4010 = vst.msk [vmem:[%s4 + $0x8] sm:$0xf] %vm4007, %v3977
  %4011 = vst.msk [vmem:[%s4 + $0xc] sm:$0xf] %vm4007, %v3978
  %4012 = vst.msk [vmem:[%s4 + $0x10] sm:$0xf] %vm4007, %v3979
  %4013 = vst.msk [vmem:[%s4 + $0x14] sm:$0xf] %vm4007, %v3980
  %4014 = vst.msk [vmem:[%s4 + $0x18] sm:$0xf] %vm4007, %v3981
  %4015 = vst.msk [vmem:[%s4 + $0x1c] sm:$0xf] %vm4007, %v3982
  %4016 = vst.msk [vmem:[%s4 + $0x20] sm:$0xf] %vm4007, %v3983
  %4017 = vst.msk [vmem:[%s4 + $0x24] sm:$0xf] %vm4007, %v3984
  %4018 = vst.msk [vmem:[%s4 + $0x28] sm:$0xf] %vm4007, %v3985
  %4019 = vst.msk [vmem:[%s4 + $0x2c] sm:$0xf] %vm4007, %v3986
  %4020 = vst.msk [vmem:[%s4 + $0x30] sm:$0xf] %vm4007, %v3987
  %4021 = vst.msk [vmem:[%s4 + $0x34] sm:$0xf] %vm4007, %v3988
  %4022 = vst.msk [vmem:[%s4 + $0x38] sm:$0xf] %vm4007, %v3989
  %4023 = vst.msk [vmem:[%s4 + $0x3c] sm:$0xf] %vm4007, %v3990
  // Predicated region
  $region18: #{cnn_forward.3} parent=0 // pred_check
    _
  $region19: #{cnn_forward.3} parent=0 // pred_check_branch
    %4025 = sbr.rel (0) target = $region21
  $region20: #{cnn_forward.3} parent=0 // pred_region
    _
  $region21: #{cnn_forward.3} parent=0 // pred_fallthru
    _
  // Predicated region
  $region22: #{cnn_forward.3} parent=0 // pred_check
    _
  $region23: #{cnn_forward.3} parent=0 // pred_check_branch
    %4027 = sbr.rel (0) target = $region25
  $region24: #{cnn_forward.3} parent=0 // pred_region
    _
  $region25: #{cnn_forward.3} parent=0 // pred_fallthru
    _

</llo_original>
